<compile_context>
chip_gen: v6e
topology: v6e:2x2x1
jax: 0.10.0
libtpu: 0.0.40
codegen_flags: <defaults>
</compile_context>

<pallas_src>
import functools

import jax
import jax.numpy as jnp
from jax.experimental import pallas as pl
from jax.experimental.pallas import tpu as pltpu

NEG_INF = -1000000000.0


# ----------------------------- in-kernel helpers -----------------------------

def _layer_norm(x, gamma, beta, eps):
    """Matches the PyTorch module: unbiased std (N-1) and (x - mean) / (std + eps)."""
    D = x.shape[-1]
    mean = jnp.mean(x, axis=-1, keepdims=True)
    diff = x - mean
    var = jnp.sum(diff * diff, axis=-1, keepdims=True) * (1.0 / (D - 1))
    std = jnp.sqrt(var)
    # One reciprocal per row (instead of D divides per row); exact to keep the
    # tolerance-critical LN form intact.
    inv = pl.reciprocal(std + eps, approx=False)
    return gamma * (diff * inv) + beta


def _split_heads(t, num_heads, d_k, col_offset=0):
    # (S, W) -> (H, S, d_k); head h takes columns [off + h*d_k, off + (h+1)*d_k).
    return jnp.stack(
        [t[:, col_offset + h * d_k:col_offset + (h + 1) * d_k]
         for h in range(num_heads)],
        axis=0)


def _mha(xq, xkv, wq, wkv, wo, mask_is_zero, num_heads, compute_dtype):
    """Multi-head attention of tq query rows against Sk key/value rows.

    xq: (Tq, D) f32, xkv: (Sk, D) f32, wq: (D, D), wkv: (D, 2D) = [W_K | W_V],
    wo: (D, D)  (weights already in compute_dtype), mask_is_zero: (Tq, Sk) bool.
    """
    Tq, D = xq.shape
    d_k = D // num_heads
    scale = 1.0 / jnp.sqrt(jnp.float32(d_k))
    cd = compute_dtype

    # Fused K/V projection (one MXU push with 2x N); Q projected for the tile only.
    q = jnp.dot(xq.astype(cd), wq, preferred_element_type=jnp.float32)      # (Tq, D)
    kv = jnp.dot(xkv.astype(cd), wkv, preferred_element_type=jnp.float32)   # (Sk, 2D)

    # Fold 1/sqrt(d_k) into Q once (instead of scaling every (Tq, Sk) score tile).
    q = q * scale

    q3 = _split_heads(q, num_heads, d_k)         # (H, Tq, d_k)
    k3 = _split_heads(kv, num_heads, d_k, 0)     # (H, Sk, d_k)
    v3 = _split_heads(kv, num_heads, d_k, D)     # (H, Sk, d_k)

    # Head-batched QK^T / masked softmax / PV: single ops across all heads.
    scores = jnp.einsum("hqc,hkc->hqk", q3.astype(cd), k3.astype(cd),
                        preferred_element_type=jnp.float32)                 # (H, Tq, Sk)
    scores = jnp.where(mask_is_zero[None, :, :], NEG_INF, scores)           # masked_fill
    scores = scores - jnp.max(scores, axis=-1, keepdims=True)
    p = jnp.exp(scores)
    p = p * pl.reciprocal(jnp.sum(p, axis=-1, keepdims=True), approx=True)  # EUP recip
    ctx = jnp.einsum("hqk,hkc->hqc", p.astype(cd), v3.astype(cd),
                     preferred_element_type=jnp.float32)                    # (H, Tq, d_k)

    ctx2d = jnp.concatenate([ctx[h] for h in range(num_heads)], axis=-1)    # (Tq, D)
    return jnp.dot(ctx2d.astype(cd), wo, preferred_element_type=jnp.float32)


# --------------------------------- kernel ------------------------------------

def decoder_layer_kernel(
    x_ref, enc_ref, mask_ref, edmask_ref,
    wq1_ref, wkv1_ref, wo1_ref,
    wq2_ref, wkv2_ref, wo2_ref,
    w1_ref, b1_ref, w2_ref, b2_ref,
    g1_ref, be1_ref, g2_ref, be2_ref, g3_ref, be3_ref,
    out_ref,
    *, num_heads, eps, tq, compute_dtype,
):
    cd = compute_dtype
    row0 = pl.multiple_of(pl.program_id(1) * tq, tq)

    x_full = x_ref[0]                           # (S, D)  K/V source for self-attention
    x_tile = x_ref[0, pl.ds(row0, tq), :]       # (tq, D) query rows / residual stream
    enc = enc_ref[0]                            # (Se, D)

    # Hoisted mask compares: one int compare per (tq, Sk) tile, reused by all heads.
    mask0 = mask_ref[...] == 0
    edmask0 = edmask_ref[...] == 0

    # 1) masked self-attention + add & "norm"
    attn = _mha(x_tile, x_full, wq1_ref[...], wkv1_ref[...], wo1_ref[...],
                mask0, num_heads, cd)
    x1 = _layer_norm(x_tile + attn, g1_ref[...], be1_ref[...], eps)

    # 2) encoder-decoder attention + add & "norm"
    attn2 = _mha(x1, enc, wq2_ref[...], wkv2_ref[...], wo2_ref[...],
                 edmask0, num_heads, cd)
    x2 = _layer_norm(x1 + attn2, g2_ref[...], be2_ref[...], eps)

    # 3) feed-forward + add & "norm"
    hidden = jnp.dot(x2.astype(cd), w1_ref[...],
                     preferred_element_type=jnp.float32) + b1_ref[...]
    hidden = jnp.maximum(hidden, 0.0)
    ff = jnp.dot(hidden.astype(cd), w2_ref[...],
                 preferred_element_type=jnp.float32) + b2_ref[...]
    out_ref[0] = _layer_norm(x2 + ff, g3_ref[...], be3_ref[...], eps)


# --------------------------------- wrapper -----------------------------------

def decoder_layer(x, enc, mask, edmask, params, *, num_heads, eps=1e-6,
                  tq=None, compute_dtype=jnp.float32):
    B, S, D = x.shape
    _, Se, _ = enc.shape
    F = params["W_1"].shape[1]
    if tq is None:
        tq = min(S, 128)
    assert S % tq == 0 and tq % 8 == 0, (S, tq)
    n_q = S // tq
    cd = compute_dtype

    # Pack weights once per call: fuse [W_K | W_V], cast matmul operands to the compute
    # dtype (bf16 halves weight DMA bytes / VMEM on v6e/v7x).  Biases and LN params
    # stay f32 (elementwise math is done in f32).
    wq1 = params["a1_WQ"].astype(cd)
    wkv1 = jnp.concatenate([params["a1_WK"], params["a1_WV"]], axis=1).astype(cd)
    wo1 = params["a1_WO"].astype(cd)
    wq2 = params["a2_WQ"].astype(cd)
    wkv2 = jnp.concatenate([params["a2_WK"], params["a2_WV"]], axis=1).astype(cd)
    wo2 = params["a2_WO"].astype(cd)
    w1 = params["W_1"].astype(cd)
    w2 = params["W_2"].astype(cd)

    def const2d(shp):
        return pl.BlockSpec(shp, lambda b, q: (0, 0))

    in_specs = [
        pl.BlockSpec((1, S, D), lambda b, q: (b, 0, 0)),    # x (full rows: K/V + q-tile)
        pl.BlockSpec((1, Se, D), lambda b, q: (b, 0, 0)),   # encoder_output
        pl.BlockSpec((tq, S), lambda b, q: (q, 0)),         # self-attn mask rows
        pl.BlockSpec((tq, Se), lambda b, q: (q, 0)),        # enc-dec mask rows
        const2d((D, D)), const2d((D, 2 * D)), const2d((D, D)),   # attn1 W_Q, [W_K|W_V], W_O
        const2d((D, D)), const2d((D, 2 * D)), const2d((D, D)),   # attn2
        const2d((D, F)), const2d((1, F)), const2d((F, D)), const2d((1, D)),  # FFN
        const2d((1, D)), const2d((1, D)),                   # ln1 gamma, beta
        const2d((1, D)), const2d((1, D)),                   # ln2
        const2d((1, D)), const2d((1, D)),                   # ln3
    ]

    kernel = functools.partial(decoder_layer_kernel, num_heads=num_heads,
                               eps=eps, tq=tq, compute_dtype=cd)

    # Rough cost hint so XLA schedules/overlaps the custom call sensibly.
    flops = 2 * B * (S * D * 3 * D + 2 * S * S * D + S * D * D          # self-attention
                     + S * D * D + 2 * Se * D * D + 2 * S * Se * D + S * D * D  # cross
                     + 2 * S * D * F)                                   # feed-forward
    transcendentals = B * num_heads * S * (S + Se)
    w_bytes = sum(int(w.size) * w.dtype.itemsize
                  for w in (wq1, wkv1, wo1, wq2, wkv2, wo2, w1, w2))
    bytes_accessed = (2 * x.size + enc.size) * 4 + (mask.size + edmask.size) * 4 + w_bytes

    return pl.pallas_call(
        kernel,
        out_shape=jax.ShapeDtypeStruct((B, S, D), jnp.float32),
        grid_spec=pltpu.PrefetchScalarGridSpec(
            num_scalar_prefetch=0,
            grid=(B, n_q),
            in_specs=in_specs,
            out_specs=pl.BlockSpec((1, tq, D), lambda b, q: (b, q, 0)),
        ),
        compiler_params=pltpu.CompilerParams(
            dimension_semantics=("parallel", "parallel"),
            vmem_limit_bytes=64 * 1024 * 1024,
        ),
        cost_estimate=pl.CostEstimate(flops=int(flops),
                                      transcendentals=int(transcendentals),
                                      bytes_accessed=int(bytes_accessed)),
    )(
        x, enc, mask, edmask,
        wq1, wkv1, wo1, wq2, wkv2, wo2,
        w1, params["b_1"], w2, params["b_2"],
        params["g1"], params["be1"], params["g2"], params["be2"],
        params["g3"], params["be3"],
    )


# --------------------------- pure-JAX reference -------------------------------

def _ref_ln(x, g, b, eps):
    mean = jnp.mean(x, axis=-1, keepdims=True)
    std = jnp.std(x, axis=-1, keepdims=True, ddof=1)
    return g * ((x - mean) / (std + eps)) + b


def _ref_mha(q_in, kv_in, wq, wk, wv, wo, mask, num_heads):
    B, Sq, D = q_in.shape
    Sk = kv_in.shape[1]
    d_k = D // num_heads

    def split(t, S):
        return t.reshape(B, S, num_heads, d_k).transpose(0, 2, 1, 3)

    Q = split(q_in @ wq, Sq)
    K = split(kv_in @ wk, Sk)
    V = split(kv_in @ wv, Sk)
    scores = jnp.einsum("bhqd,bhkd->bhqk", Q, K) / jnp.sqrt(jnp.float32(d_k))
    scores = jnp.where(mask[None, None] == 0, NEG_INF, scores)
    w = jax.nn.softmax(scores, axis=-1)
    out = jnp.einsum("bhqk,bhkd->bhqd", w, V)
    out = out.transpose(0, 2, 1, 3).reshape(B, Sq, D)
    return out @ wo


def decoder_layer_ref(x, enc, mask, edmask, p, *, num_heads, eps=1e-6):
    a = _ref_mha(x, x, p["a1_WQ"], p["a1_WK"], p["a1_WV"], p["a1_WO"], mask, num_heads)
    x = _ref_ln(x + a, p["g1"][0], p["be1"][0], eps)
    a2 = _ref_mha(x, enc, p["a2_WQ"], p["a2_WK"], p["a2_WV"], p["a2_WO"], edmask, num_heads)
    x = _ref_ln(x + a2, p["g2"][0], p["be2"][0], eps)
    h = jax.nn.relu(x @ p["W_1"] + p["b_1"][0])
    ff = h @ p["W_2"] + p["b_2"][0]
    return _ref_ln(x + ff, p["g3"][0], p["be3"][0], eps)


# --------------------------------- main ---------------------------------------

def xavier_normal(key, n_in, n_out):
    std = (2.0 / (n_in + n_out)) ** 0.5
    return std * jax.random.normal(key, (n_in, n_out), dtype=jnp.float32)


if __name__ == "__main__":
    B, S, Se = 2, 16, 16
    d_model, num_heads, d_ff = 128, 4, 256   # lane-dense d_model (multiple of 128)

    key = jax.random.PRNGKey(0)
    keys = jax.random.split(key, 12)

    params = {
        "a1_WQ": xavier_normal(keys[0], d_model, d_model),
        "a1_WK": xavier_normal(keys[1], d_model, d_model),
        "a1_WV": xavier_normal(keys[2], d_model, d_model),
        "a1_WO": xavier_normal(keys[3], d_model, d_model),
        "a2_WQ": xavier_normal(keys[4], d_model, d_model),
        "a2_WK": xavier_normal(keys[5], d_model, d_model),
        "a2_WV": xavier_normal(keys[6], d_model, d_model),
        "a2_WO": xavier_normal(keys[7], d_model, d_model),
        "W_1": xavier_normal(keys[8], d_model, d_ff),
        "b_1": jnp.zeros((1, d_ff), jnp.float32),
        "W_2": xavier_normal(keys[9], d_ff, d_model),
        "b_2": jnp.zeros((1, d_model), jnp.float32),
        "g1": jnp.ones((1, d_model), jnp.float32),
        "be1": jnp.zeros((1, d_model), jnp.float32),
        "g2": jnp.ones((1, d_model), jnp.float32),
        "be2": jnp.zeros((1, d_model), jnp.float32),
        "g3": jnp.ones((1, d_model), jnp.float32),
        "be3": jnp.zeros((1, d_model), jnp.float32),
    }

    x = jax.random.normal(keys[10], (B, S, d_model), dtype=jnp.float32)
    enc = jax.random.normal(keys[11], (B, Se, d_model), dtype=jnp.float32)

    # causal mask for masked self-attention; full visibility for enc-dec attention
    mask = jnp.tril(jnp.ones((S, S), jnp.int32))
    edmask = jnp.ones((S, Se), jnp.int32)

    ref = decoder_layer_ref(x, enc, mask, edmask, params, num_heads=num_heads)

    # f32 matmul path (v5e-friendly); tq=8 -> grid (B, 2) = 4 parallel slices.
    out = decoder_layer(x, enc, mask, edmask, params, num_heads=num_heads, tq=8)
    out = jax.block_until_ready(out)
    assert out.shape == (B, S, d_model)
    err = jnp.max(jnp.abs(out - ref))
    # Tolerance is loosened slightly vs pure f32 because the softmax normalisation
    # uses the approximate EUP reciprocal; typical error is far below this bound.
    assert jnp.allclose(out, ref, atol=1e-2, rtol=1e-2), f"f32 max abs err {err}"

    # bf16 matmul operands (v6e/v7x path), f32 MXU accumulation + f32 LN/softmax stats.
    # This run is a sanity bound against the f32 reference; the strict check is above.
    out_bf16 = decoder_layer(x, enc, mask, edmask, params, num_heads=num_heads,
                             tq=8, compute_dtype=jnp.bfloat16)
    out_bf16 = jax.block_until_ready(out_bf16)
    err_bf16 = jnp.max(jnp.abs(out_bf16 - ref))
    assert jnp.allclose(out_bf16, ref, atol=1e-1, rtol=1e-1), \
        f"bf16 max abs err {err_bf16}"

    print("KERNEL_OK")
</pallas_src>

<mosaic_0001>
module attributes {stable_mosaic.version = 11 : i64} {
  func.func @decoder_layer_kernel(%arg0: i32, %arg1: i32, %arg2: memref<1x16x128xf32, #tpu.memory_space<vmem>>, %arg3: memref<1x16x128xf32, #tpu.memory_space<vmem>>, %arg4: memref<8x16xi32, #tpu.memory_space<vmem>>, %arg5: memref<8x16xi32, #tpu.memory_space<vmem>>, %arg6: memref<128x128xf32, #tpu.memory_space<vmem>>, %arg7: memref<128x256xf32, #tpu.memory_space<vmem>>, %arg8: memref<128x128xf32, #tpu.memory_space<vmem>>, %arg9: memref<128x128xf32, #tpu.memory_space<vmem>>, %arg10: memref<128x256xf32, #tpu.memory_space<vmem>>, %arg11: memref<128x128xf32, #tpu.memory_space<vmem>>, %arg12: memref<128x256xf32, #tpu.memory_space<vmem>>, %arg13: memref<1x256xf32, #tpu.memory_space<vmem>>, %arg14: memref<256x128xf32, #tpu.memory_space<vmem>>, %arg15: memref<1x128xf32, #tpu.memory_space<vmem>>, %arg16: memref<1x128xf32, #tpu.memory_space<vmem>>, %arg17: memref<1x128xf32, #tpu.memory_space<vmem>>, %arg18: memref<1x128xf32, #tpu.memory_space<vmem>>, %arg19: memref<1x128xf32, #tpu.memory_space<vmem>>, %arg20: memref<1x128xf32, #tpu.memory_space<vmem>>, %arg21: memref<1x128xf32, #tpu.memory_space<vmem>>, %arg22: memref<1x8x128xf32, #tpu.memory_space<vmem>>) attributes {dimension_semantics = [#tpu.dimension_semantics<parallel>, #tpu.dimension_semantics<parallel>], iteration_bounds = array<i64: 2, 2>, scalar_prefetch = 0 : i64, scratch_operands = 0 : i64, tpu.core_type = #tpu.core_type<tc>, window_params = [{transform_indices = @transform_0, window_bounds = array<i64: 1, 16, 128>}, {transform_indices = @transform_1, window_bounds = array<i64: 1, 16, 128>}, {transform_indices = @transform_2, window_bounds = array<i64: 8, 16>}, {transform_indices = @transform_3, window_bounds = array<i64: 8, 16>}, {pipeline_mode = #tpu.pipeline_mode<synchronous>, transform_indices = @transform_4, window_bounds = array<i64: 128, 128>}, {pipeline_mode = #tpu.pipeline_mode<synchronous>, transform_indices = @transform_5, window_bounds = array<i64: 128, 256>}, {pipeline_mode = #tpu.pipeline_mode<synchronous>, transform_indices = @transform_6, window_bounds = array<i64: 128, 128>}, {pipeline_mode = #tpu.pipeline_mode<synchronous>, transform_indices = @transform_7, window_bounds = array<i64: 128, 128>}, {pipeline_mode = #tpu.pipeline_mode<synchronous>, transform_indices = @transform_8, window_bounds = array<i64: 128, 256>}, {pipeline_mode = #tpu.pipeline_mode<synchronous>, transform_indices = @transform_9, window_bounds = array<i64: 128, 128>}, {pipeline_mode = #tpu.pipeline_mode<synchronous>, transform_indices = @transform_10, window_bounds = array<i64: 128, 256>}, {pipeline_mode = #tpu.pipeline_mode<synchronous>, transform_indices = @transform_11, window_bounds = array<i64: 1, 256>}, {pipeline_mode = #tpu.pipeline_mode<synchronous>, transform_indices = @transform_12, window_bounds = array<i64: 256, 128>}, {pipeline_mode = #tpu.pipeline_mode<synchronous>, transform_indices = @transform_13, window_bounds = array<i64: 1, 128>}, {pipeline_mode = #tpu.pipeline_mode<synchronous>, transform_indices = @transform_14, window_bounds = array<i64: 1, 128>}, {pipeline_mode = #tpu.pipeline_mode<synchronous>, transform_indices = @transform_15, window_bounds = array<i64: 1, 128>}, {pipeline_mode = #tpu.pipeline_mode<synchronous>, transform_indices = @transform_16, window_bounds = array<i64: 1, 128>}, {pipeline_mode = #tpu.pipeline_mode<synchronous>, transform_indices = @transform_17, window_bounds = array<i64: 1, 128>}, {pipeline_mode = #tpu.pipeline_mode<synchronous>, transform_indices = @transform_18, window_bounds = array<i64: 1, 128>}, {pipeline_mode = #tpu.pipeline_mode<synchronous>, transform_indices = @transform_19, window_bounds = array<i64: 1, 128>}, {transform_indices = @transform_20, window_bounds = array<i64: 1, 8, 128>}]} {
    %c8_i32 = arith.constant 8 : i32
    %0 = arith.muli %arg1, %c8_i32 : i32
    %1 = tpu.assume_multiple %0, 8 : i32
    %c0 = arith.constant 0 : index
    %c0_0 = arith.constant 0 : index
    %c0_1 = arith.constant 0 : index
    %2 = vector.load %arg2[%c0, %c0_0, %c0_1] : memref<1x16x128xf32, #tpu.memory_space<vmem>>, vector<1x16x128xf32>
    %3 = vector.shape_cast %2 : vector<1x16x128xf32> to vector<16x128xf32>
    %c0_2 = arith.constant 0 : index
    %4 = arith.index_cast %1 : i32 to index
    %c0_3 = arith.constant 0 : index
    %5 = vector.load %arg2[%c0_2, %4, %c0_3] : memref<1x16x128xf32, #tpu.memory_space<vmem>>, vector<1x8x128xf32>
    %6 = vector.shape_cast %5 : vector<1x8x128xf32> to vector<8x128xf32>
    %c0_4 = arith.constant 0 : index
    %c0_5 = arith.constant 0 : index
    %c0_6 = arith.constant 0 : index
    %7 = vector.load %arg3[%c0_4, %c0_5, %c0_6] : memref<1x16x128xf32, #tpu.memory_space<vmem>>, vector<1x16x128xf32>
    %8 = vector.shape_cast %7 : vector<1x16x128xf32> to vector<16x128xf32>
    %c0_7 = arith.constant 0 : index
    %c0_8 = arith.constant 0 : index
    %9 = vector.load %arg4[%c0_7, %c0_8] : memref<8x16xi32, #tpu.memory_space<vmem>>, vector<8x16xi32>
    %c0_i32 = arith.constant 0 : i32
    %10 = vector.broadcast %c0_i32 : i32 to vector<8x16xi32>
    %11 = arith.cmpi eq, %9, %10 : vector<8x16xi32>
    %c0_9 = arith.constant 0 : index
    %c0_10 = arith.constant 0 : index
    %12 = vector.load %arg5[%c0_9, %c0_10] : memref<8x16xi32, #tpu.memory_space<vmem>>, vector<8x16xi32>
    %c0_i32_11 = arith.constant 0 : i32
    %13 = vector.broadcast %c0_i32_11 : i32 to vector<8x16xi32>
    %14 = arith.cmpi eq, %12, %13 : vector<8x16xi32>
    %c0_12 = arith.constant 0 : index
    %c0_13 = arith.constant 0 : index
    %15 = vector.load %arg6[%c0_12, %c0_13] : memref<128x128xf32, #tpu.memory_space<vmem>>, vector<128x128xf32>
    %c0_14 = arith.constant 0 : index
    %c0_15 = arith.constant 0 : index
    %16 = vector.load %arg7[%c0_14, %c0_15] : memref<128x256xf32, #tpu.memory_space<vmem>>, vector<128x256xf32>
    %c0_16 = arith.constant 0 : index
    %c0_17 = arith.constant 0 : index
    %17 = vector.load %arg8[%c0_16, %c0_17] : memref<128x128xf32, #tpu.memory_space<vmem>>, vector<128x128xf32>
    %cst = arith.constant 3.200000e+01 : f32
    %18 = math.sqrt %cst : f32
    %cst_18 = arith.constant 1.000000e+00 : f32
    %19 = arith.divf %cst_18, %18 : f32
    %cst_19 = arith.constant dense<0.000000e+00> : vector<8x128xf32>
    %20 = tpu.matmul %6, %15, %cst_19 {dimension_numbers = #tpu.dot_dimension_numbers<[1], [0], [0], [1], [0, 0, 1, 1], [], []>} : vector<8x128xf32>, vector<128x128xf32>, vector<8x128xf32> -> vector<8x128xf32>
    %cst_20 = arith.constant dense<0.000000e+00> : vector<16x256xf32>
    %21 = tpu.matmul %3, %16, %cst_20 {dimension_numbers = #tpu.dot_dimension_numbers<[1], [0], [0], [1], [0, 0, 1, 1], [], []>} : vector<16x128xf32>, vector<128x256xf32>, vector<16x256xf32> -> vector<16x256xf32>
    %22 = vector.broadcast %19 : f32 to vector<8x128xf32>
    %23 = arith.mulf %20, %22 : vector<8x128xf32>
    %24 = vector.extract_strided_slice %23 {offsets = [0, 0], sizes = [8, 32], strides = [1, 1]} : vector<8x128xf32> to vector<8x32xf32>
    %25 = vector.extract_strided_slice %23 {offsets = [0, 32], sizes = [8, 32], strides = [1, 1]} : vector<8x128xf32> to vector<8x32xf32>
    %26 = vector.extract_strided_slice %23 {offsets = [0, 64], sizes = [8, 32], strides = [1, 1]} : vector<8x128xf32> to vector<8x32xf32>
    %27 = vector.extract_strided_slice %23 {offsets = [0, 96], sizes = [8, 32], strides = [1, 1]} : vector<8x128xf32> to vector<8x32xf32>
    %28 = vector.shape_cast %24 : vector<8x32xf32> to vector<1x8x32xf32>
    %29 = vector.shape_cast %25 : vector<8x32xf32> to vector<1x8x32xf32>
    %30 = vector.shape_cast %26 : vector<8x32xf32> to vector<1x8x32xf32>
    %31 = vector.shape_cast %27 : vector<8x32xf32> to vector<1x8x32xf32>
    %32 = tpu.concatenate %28, %29, %30, %31 in 0 : vector<1x8x32xf32>, vector<1x8x32xf32>, vector<1x8x32xf32>, vector<1x8x32xf32> -> vector<4x8x32xf32>
    %33 = vector.extract_strided_slice %21 {offsets = [0, 0], sizes = [16, 32], strides = [1, 1]} : vector<16x256xf32> to vector<16x32xf32>
    %34 = vector.extract_strided_slice %21 {offsets = [0, 32], sizes = [16, 32], strides = [1, 1]} : vector<16x256xf32> to vector<16x32xf32>
    %35 = vector.extract_strided_slice %21 {offsets = [0, 64], sizes = [16, 32], strides = [1, 1]} : vector<16x256xf32> to vector<16x32xf32>
    %36 = vector.extract_strided_slice %21 {offsets = [0, 96], sizes = [16, 32], strides = [1, 1]} : vector<16x256xf32> to vector<16x32xf32>
    %37 = vector.shape_cast %33 : vector<16x32xf32> to vector<1x16x32xf32>
    %38 = vector.shape_cast %34 : vector<16x32xf32> to vector<1x16x32xf32>
    %39 = vector.shape_cast %35 : vector<16x32xf32> to vector<1x16x32xf32>
    %40 = vector.shape_cast %36 : vector<16x32xf32> to vector<1x16x32xf32>
    %41 = tpu.concatenate %37, %38, %39, %40 in 0 : vector<1x16x32xf32>, vector<1x16x32xf32>, vector<1x16x32xf32>, vector<1x16x32xf32> -> vector<4x16x32xf32>
    %42 = vector.extract_strided_slice %21 {offsets = [0, 128], sizes = [16, 32], strides = [1, 1]} : vector<16x256xf32> to vector<16x32xf32>
    %43 = vector.extract_strided_slice %21 {offsets = [0, 160], sizes = [16, 32], strides = [1, 1]} : vector<16x256xf32> to vector<16x32xf32>
    %44 = vector.extract_strided_slice %21 {offsets = [0, 192], sizes = [16, 32], strides = [1, 1]} : vector<16x256xf32> to vector<16x32xf32>
    %45 = vector.extract_strided_slice %21 {offsets = [0, 224], sizes = [16, 32], strides = [1, 1]} : vector<16x256xf32> to vector<16x32xf32>
    %46 = vector.shape_cast %42 : vector<16x32xf32> to vector<1x16x32xf32>
    %47 = vector.shape_cast %43 : vector<16x32xf32> to vector<1x16x32xf32>
    %48 = vector.shape_cast %44 : vector<16x32xf32> to vector<1x16x32xf32>
    %49 = vector.shape_cast %45 : vector<16x32xf32> to vector<1x16x32xf32>
    %50 = tpu.concatenate %46, %47, %48, %49 in 0 : vector<1x16x32xf32>, vector<1x16x32xf32>, vector<1x16x32xf32>, vector<1x16x32xf32> -> vector<4x16x32xf32>
    "tpu.trace_start"() <{level = 10 : i32, message = "hqc,hkc->hqk"}> : () -> ()
    %cst_21 = arith.constant dense<0.000000e+00> : vector<4x8x16xf32>
    %51 = tpu.matmul %32, %41, %cst_21 {dimension_numbers = #tpu.dot_dimension_numbers<[2], [2], [1], [1], [0, 0, 0, 1, 1, 1], [0], [0]>} : vector<4x8x32xf32>, vector<4x16x32xf32>, vector<4x8x16xf32> -> vector<4x8x16xf32>
    "tpu.trace_stop"() : () -> ()
    %52 = vector.shape_cast %11 : vector<8x16xi1> to vector<1x8x16xi1>
    %cst_22 = arith.constant -1.000000e+09 : f32
    %53 = vector.shape_cast %52 : vector<1x8x16xi1> to vector<1x8x16xi1>
    %54 = vector.broadcast %53 : vector<1x8x16xi1> to vector<4x8x16xi1>
    %55 = vector.broadcast %cst_22 : f32 to vector<4x8x16xf32>
    %56 = arith.select %54, %55, %51 : vector<4x8x16xi1>, vector<4x8x16xf32>
    %cst_23 = arith.constant dense<0xFF800000> : vector<4x8xf32>
    %57 = vector.multi_reduction <maximumf>, %56, %cst_23 [2] : vector<4x8x16xf32> to vector<4x8xf32>
    %58 = vector.shape_cast %57 : vector<4x8xf32> to vector<4x8x1xf32>
    %59 = vector.broadcast %58 : vector<4x8x1xf32> to vector<4x8x16xf32>
    %60 = arith.subf %56, %59 : vector<4x8x16xf32>
    %61 = math.exp %60 : vector<4x8x16xf32>
    %cst_24 = arith.constant dense<0.000000e+00> : vector<4x8xf32>
    %62 = vector.multi_reduction <add>, %61, %cst_24 [2] : vector<4x8x16xf32> to vector<4x8xf32>
    %63 = vector.shape_cast %62 : vector<4x8xf32> to vector<4x8x1xf32>
    %64 = tpu.reciprocal %63 {approx = true} : vector<4x8x1xf32> -> vector<4x8x1xf32>
    %65 = vector.broadcast %64 : vector<4x8x1xf32> to vector<4x8x16xf32>
    %66 = arith.mulf %61, %65 : vector<4x8x16xf32>
    "tpu.trace_start"() <{level = 10 : i32, message = "hqk,hkc->hqc"}> : () -> ()
    %cst_25 = arith.constant dense<0.000000e+00> : vector<4x8x32xf32>
    %67 = tpu.matmul %66, %50, %cst_25 {dimension_numbers = #tpu.dot_dimension_numbers<[2], [1], [1], [2], [0, 0, 0, 1, 1, 2], [0], [0]>} : vector<4x8x16xf32>, vector<4x16x32xf32>, vector<4x8x32xf32> -> vector<4x8x32xf32>
    "tpu.trace_stop"() : () -> ()
    %68 = vector.extract_strided_slice %67 {offsets = [0, 0, 0], sizes = [1, 8, 32], strides = [1, 1, 1]} : vector<4x8x32xf32> to vector<1x8x32xf32>
    %69 = vector.shape_cast %68 : vector<1x8x32xf32> to vector<8x32xf32>
    %70 = vector.extract_strided_slice %67 {offsets = [1, 0, 0], sizes = [1, 8, 32], strides = [1, 1, 1]} : vector<4x8x32xf32> to vector<1x8x32xf32>
    %71 = vector.shape_cast %70 : vector<1x8x32xf32> to vector<8x32xf32>
    %72 = vector.extract_strided_slice %67 {offsets = [2, 0, 0], sizes = [1, 8, 32], strides = [1, 1, 1]} : vector<4x8x32xf32> to vector<1x8x32xf32>
    %73 = vector.shape_cast %72 : vector<1x8x32xf32> to vector<8x32xf32>
    %74 = vector.extract_strided_slice %67 {offsets = [3, 0, 0], sizes = [1, 8, 32], strides = [1, 1, 1]} : vector<4x8x32xf32> to vector<1x8x32xf32>
    %75 = vector.shape_cast %74 : vector<1x8x32xf32> to vector<8x32xf32>
    %76 = tpu.concatenate %69, %71, %73, %75 in 1 : vector<8x32xf32>, vector<8x32xf32>, vector<8x32xf32>, vector<8x32xf32> -> vector<8x128xf32>
    %cst_26 = arith.constant dense<0.000000e+00> : vector<8x128xf32>
    %77 = tpu.matmul %76, %17, %cst_26 {dimension_numbers = #tpu.dot_dimension_numbers<[1], [0], [0], [1], [0, 0, 1, 1], [], []>} : vector<8x128xf32>, vector<128x128xf32>, vector<8x128xf32> -> vector<8x128xf32>
    %78 = arith.addf %6, %77 : vector<8x128xf32>
    %c0_27 = arith.constant 0 : index
    %c0_28 = arith.constant 0 : index
    %79 = vector.load %arg16[%c0_27, %c0_28] : memref<1x128xf32, #tpu.memory_space<vmem>>, vector<1x128xf32>
    %c0_29 = arith.constant 0 : index
    %c0_30 = arith.constant 0 : index
    %80 = vector.load %arg17[%c0_29, %c0_30] : memref<1x128xf32, #tpu.memory_space<vmem>>, vector<1x128xf32>
    %cst_31 = arith.constant dense<0.000000e+00> : vector<8xf32>
    %81 = vector.multi_reduction <add>, %78, %cst_31 [1] : vector<8x128xf32> to vector<8xf32>
    %82 = vector.shape_cast %81 : vector<8xf32> to vector<8x1xf32>
    %cst_32 = arith.constant 1.280000e+02 : f32
    %83 = vector.broadcast %cst_32 : f32 to vector<8x1xf32>
    %84 = arith.divf %82, %83 : vector<8x1xf32>
    %85 = vector.broadcast %84 : vector<8x1xf32> to vector<8x128xf32>
    %86 = arith.subf %78, %85 : vector<8x128xf32>
    %87 = arith.mulf %86, %86 : vector<8x128xf32>
    %cst_33 = arith.constant dense<0.000000e+00> : vector<8xf32>
    %88 = vector.multi_reduction <add>, %87, %cst_33 [1] : vector<8x128xf32> to vector<8xf32>
    %89 = vector.shape_cast %88 : vector<8xf32> to vector<8x1xf32>
    %cst_34 = arith.constant 0.00787401571 : f32
    %90 = vector.broadcast %cst_34 : f32 to vector<8x1xf32>
    %91 = arith.mulf %89, %90 : vector<8x1xf32>
    %92 = math.sqrt %91 : vector<8x1xf32>
    %cst_35 = arith.constant 9.99999997E-7 : f32
    %93 = vector.broadcast %cst_35 : f32 to vector<8x1xf32>
    %94 = arith.addf %92, %93 : vector<8x1xf32>
    %95 = tpu.reciprocal %94 : vector<8x1xf32> -> vector<8x1xf32>
    %96 = vector.broadcast %95 : vector<8x1xf32> to vector<8x128xf32>
    %97 = arith.mulf %86, %96 : vector<8x128xf32>
    %98 = vector.broadcast %79 : vector<1x128xf32> to vector<8x128xf32>
    %99 = arith.mulf %98, %97 : vector<8x128xf32>
    %100 = vector.broadcast %80 : vector<1x128xf32> to vector<8x128xf32>
    %101 = arith.addf %99, %100 : vector<8x128xf32>
    %c0_36 = arith.constant 0 : index
    %c0_37 = arith.constant 0 : index
    %102 = vector.load %arg9[%c0_36, %c0_37] : memref<128x128xf32, #tpu.memory_space<vmem>>, vector<128x128xf32>
    %c0_38 = arith.constant 0 : index
    %c0_39 = arith.constant 0 : index
    %103 = vector.load %arg10[%c0_38, %c0_39] : memref<128x256xf32, #tpu.memory_space<vmem>>, vector<128x256xf32>
    %c0_40 = arith.constant 0 : index
    %c0_41 = arith.constant 0 : index
    %104 = vector.load %arg11[%c0_40, %c0_41] : memref<128x128xf32, #tpu.memory_space<vmem>>, vector<128x128xf32>
    %cst_42 = arith.constant 3.200000e+01 : f32
    %105 = math.sqrt %cst_42 : f32
    %cst_43 = arith.constant 1.000000e+00 : f32
    %106 = arith.divf %cst_43, %105 : f32
    %cst_44 = arith.constant dense<0.000000e+00> : vector<8x128xf32>
    %107 = tpu.matmul %101, %102, %cst_44 {dimension_numbers = #tpu.dot_dimension_numbers<[1], [0], [0], [1], [0, 0, 1, 1], [], []>} : vector<8x128xf32>, vector<128x128xf32>, vector<8x128xf32> -> vector<8x128xf32>
    %cst_45 = arith.constant dense<0.000000e+00> : vector<16x256xf32>
    %108 = tpu.matmul %8, %103, %cst_45 {dimension_numbers = #tpu.dot_dimension_numbers<[1], [0], [0], [1], [0, 0, 1, 1], [], []>} : vector<16x128xf32>, vector<128x256xf32>, vector<16x256xf32> -> vector<16x256xf32>
    %109 = vector.broadcast %106 : f32 to vector<8x128xf32>
    %110 = arith.mulf %107, %109 : vector<8x128xf32>
    %111 = vector.extract_strided_slice %110 {offsets = [0, 0], sizes = [8, 32], strides = [1, 1]} : vector<8x128xf32> to vector<8x32xf32>
    %112 = vector.extract_strided_slice %110 {offsets = [0, 32], sizes = [8, 32], strides = [1, 1]} : vector<8x128xf32> to vector<8x32xf32>
    %113 = vector.extract_strided_slice %110 {offsets = [0, 64], sizes = [8, 32], strides = [1, 1]} : vector<8x128xf32> to vector<8x32xf32>
    %114 = vector.extract_strided_slice %110 {offsets = [0, 96], sizes = [8, 32], strides = [1, 1]} : vector<8x128xf32> to vector<8x32xf32>
    %115 = vector.shape_cast %111 : vector<8x32xf32> to vector<1x8x32xf32>
    %116 = vector.shape_cast %112 : vector<8x32xf32> to vector<1x8x32xf32>
    %117 = vector.shape_cast %113 : vector<8x32xf32> to vector<1x8x32xf32>
    %118 = vector.shape_cast %114 : vector<8x32xf32> to vector<1x8x32xf32>
    %119 = tpu.concatenate %115, %116, %117, %118 in 0 : vector<1x8x32xf32>, vector<1x8x32xf32>, vector<1x8x32xf32>, vector<1x8x32xf32> -> vector<4x8x32xf32>
    %120 = vector.extract_strided_slice %108 {offsets = [0, 0], sizes = [16, 32], strides = [1, 1]} : vector<16x256xf32> to vector<16x32xf32>
    %121 = vector.extract_strided_slice %108 {offsets = [0, 32], sizes = [16, 32], strides = [1, 1]} : vector<16x256xf32> to vector<16x32xf32>
    %122 = vector.extract_strided_slice %108 {offsets = [0, 64], sizes = [16, 32], strides = [1, 1]} : vector<16x256xf32> to vector<16x32xf32>
    %123 = vector.extract_strided_slice %108 {offsets = [0, 96], sizes = [16, 32], strides = [1, 1]} : vector<16x256xf32> to vector<16x32xf32>
    %124 = vector.shape_cast %120 : vector<16x32xf32> to vector<1x16x32xf32>
    %125 = vector.shape_cast %121 : vector<16x32xf32> to vector<1x16x32xf32>
    %126 = vector.shape_cast %122 : vector<16x32xf32> to vector<1x16x32xf32>
    %127 = vector.shape_cast %123 : vector<16x32xf32> to vector<1x16x32xf32>
    %128 = tpu.concatenate %124, %125, %126, %127 in 0 : vector<1x16x32xf32>, vector<1x16x32xf32>, vector<1x16x32xf32>, vector<1x16x32xf32> -> vector<4x16x32xf32>
    %129 = vector.extract_strided_slice %108 {offsets = [0, 128], sizes = [16, 32], strides = [1, 1]} : vector<16x256xf32> to vector<16x32xf32>
    %130 = vector.extract_strided_slice %108 {offsets = [0, 160], sizes = [16, 32], strides = [1, 1]} : vector<16x256xf32> to vector<16x32xf32>
    %131 = vector.extract_strided_slice %108 {offsets = [0, 192], sizes = [16, 32], strides = [1, 1]} : vector<16x256xf32> to vector<16x32xf32>
    %132 = vector.extract_strided_slice %108 {offsets = [0, 224], sizes = [16, 32], strides = [1, 1]} : vector<16x256xf32> to vector<16x32xf32>
    %133 = vector.shape_cast %129 : vector<16x32xf32> to vector<1x16x32xf32>
    %134 = vector.shape_cast %130 : vector<16x32xf32> to vector<1x16x32xf32>
    %135 = vector.shape_cast %131 : vector<16x32xf32> to vector<1x16x32xf32>
    %136 = vector.shape_cast %132 : vector<16x32xf32> to vector<1x16x32xf32>
    %137 = tpu.concatenate %133, %134, %135, %136 in 0 : vector<1x16x32xf32>, vector<1x16x32xf32>, vector<1x16x32xf32>, vector<1x16x32xf32> -> vector<4x16x32xf32>
    "tpu.trace_start"() <{level = 10 : i32, message = "hqc,hkc->hqk"}> : () -> ()
    %cst_46 = arith.constant dense<0.000000e+00> : vector<4x8x16xf32>
    %138 = tpu.matmul %119, %128, %cst_46 {dimension_numbers = #tpu.dot_dimension_numbers<[2], [2], [1], [1], [0, 0, 0, 1, 1, 1], [0], [0]>} : vector<4x8x32xf32>, vector<4x16x32xf32>, vector<4x8x16xf32> -> vector<4x8x16xf32>
    "tpu.trace_stop"() : () -> ()
    %139 = vector.shape_cast %14 : vector<8x16xi1> to vector<1x8x16xi1>
    %cst_47 = arith.constant -1.000000e+09 : f32
    %140 = vector.shape_cast %139 : vector<1x8x16xi1> to vector<1x8x16xi1>
    %141 = vector.broadcast %140 : vector<1x8x16xi1> to vector<4x8x16xi1>
    %142 = vector.broadcast %cst_47 : f32 to vector<4x8x16xf32>
    %143 = arith.select %141, %142, %138 : vector<4x8x16xi1>, vector<4x8x16xf32>
    %cst_48 = arith.constant dense<0xFF800000> : vector<4x8xf32>
    %144 = vector.multi_reduction <maximumf>, %143, %cst_48 [2] : vector<4x8x16xf32> to vector<4x8xf32>
    %145 = vector.shape_cast %144 : vector<4x8xf32> to vector<4x8x1xf32>
    %146 = vector.broadcast %145 : vector<4x8x1xf32> to vector<4x8x16xf32>
    %147 = arith.subf %143, %146 : vector<4x8x16xf32>
    %148 = math.exp %147 : vector<4x8x16xf32>
    %cst_49 = arith.constant dense<0.000000e+00> : vector<4x8xf32>
    %149 = vector.multi_reduction <add>, %148, %cst_49 [2] : vector<4x8x16xf32> to vector<4x8xf32>
    %150 = vector.shape_cast %149 : vector<4x8xf32> to vector<4x8x1xf32>
    %151 = tpu.reciprocal %150 {approx = true} : vector<4x8x1xf32> -> vector<4x8x1xf32>
    %152 = vector.broadcast %151 : vector<4x8x1xf32> to vector<4x8x16xf32>
    %153 = arith.mulf %148, %152 : vector<4x8x16xf32>
    "tpu.trace_start"() <{level = 10 : i32, message = "hqk,hkc->hqc"}> : () -> ()
    %cst_50 = arith.constant dense<0.000000e+00> : vector<4x8x32xf32>
    %154 = tpu.matmul %153, %137, %cst_50 {dimension_numbers = #tpu.dot_dimension_numbers<[2], [1], [1], [2], [0, 0, 0, 1, 1, 2], [0], [0]>} : vector<4x8x16xf32>, vector<4x16x32xf32>, vector<4x8x32xf32> -> vector<4x8x32xf32>
    "tpu.trace_stop"() : () -> ()
    %155 = vector.extract_strided_slice %154 {offsets = [0, 0, 0], sizes = [1, 8, 32], strides = [1, 1, 1]} : vector<4x8x32xf32> to vector<1x8x32xf32>
    %156 = vector.shape_cast %155 : vector<1x8x32xf32> to vector<8x32xf32>
    %157 = vector.extract_strided_slice %154 {offsets = [1, 0, 0], sizes = [1, 8, 32], strides = [1, 1, 1]} : vector<4x8x32xf32> to vector<1x8x32xf32>
    %158 = vector.shape_cast %157 : vector<1x8x32xf32> to vector<8x32xf32>
    %159 = vector.extract_strided_slice %154 {offsets = [2, 0, 0], sizes = [1, 8, 32], strides = [1, 1, 1]} : vector<4x8x32xf32> to vector<1x8x32xf32>
    %160 = vector.shape_cast %159 : vector<1x8x32xf32> to vector<8x32xf32>
    %161 = vector.extract_strided_slice %154 {offsets = [3, 0, 0], sizes = [1, 8, 32], strides = [1, 1, 1]} : vector<4x8x32xf32> to vector<1x8x32xf32>
    %162 = vector.shape_cast %161 : vector<1x8x32xf32> to vector<8x32xf32>
    %163 = tpu.concatenate %156, %158, %160, %162 in 1 : vector<8x32xf32>, vector<8x32xf32>, vector<8x32xf32>, vector<8x32xf32> -> vector<8x128xf32>
    %cst_51 = arith.constant dense<0.000000e+00> : vector<8x128xf32>
    %164 = tpu.matmul %163, %104, %cst_51 {dimension_numbers = #tpu.dot_dimension_numbers<[1], [0], [0], [1], [0, 0, 1, 1], [], []>} : vector<8x128xf32>, vector<128x128xf32>, vector<8x128xf32> -> vector<8x128xf32>
    %165 = arith.addf %101, %164 : vector<8x128xf32>
    %c0_52 = arith.constant 0 : index
    %c0_53 = arith.constant 0 : index
    %166 = vector.load %arg18[%c0_52, %c0_53] : memref<1x128xf32, #tpu.memory_space<vmem>>, vector<1x128xf32>
    %c0_54 = arith.constant 0 : index
    %c0_55 = arith.constant 0 : index
    %167 = vector.load %arg19[%c0_54, %c0_55] : memref<1x128xf32, #tpu.memory_space<vmem>>, vector<1x128xf32>
    %cst_56 = arith.constant dense<0.000000e+00> : vector<8xf32>
    %168 = vector.multi_reduction <add>, %165, %cst_56 [1] : vector<8x128xf32> to vector<8xf32>
    %169 = vector.shape_cast %168 : vector<8xf32> to vector<8x1xf32>
    %cst_57 = arith.constant 1.280000e+02 : f32
    %170 = vector.broadcast %cst_57 : f32 to vector<8x1xf32>
    %171 = arith.divf %169, %170 : vector<8x1xf32>
    %172 = vector.broadcast %171 : vector<8x1xf32> to vector<8x128xf32>
    %173 = arith.subf %165, %172 : vector<8x128xf32>
    %174 = arith.mulf %173, %173 : vector<8x128xf32>
    %cst_58 = arith.constant dense<0.000000e+00> : vector<8xf32>
    %175 = vector.multi_reduction <add>, %174, %cst_58 [1] : vector<8x128xf32> to vector<8xf32>
    %176 = vector.shape_cast %175 : vector<8xf32> to vector<8x1xf32>
    %cst_59 = arith.constant 0.00787401571 : f32
    %177 = vector.broadcast %cst_59 : f32 to vector<8x1xf32>
    %178 = arith.mulf %176, %177 : vector<8x1xf32>
    %179 = math.sqrt %178 : vector<8x1xf32>
    %cst_60 = arith.constant 9.99999997E-7 : f32
    %180 = vector.broadcast %cst_60 : f32 to vector<8x1xf32>
    %181 = arith.addf %179, %180 : vector<8x1xf32>
    %182 = tpu.reciprocal %181 : vector<8x1xf32> -> vector<8x1xf32>
    %183 = vector.broadcast %182 : vector<8x1xf32> to vector<8x128xf32>
    %184 = arith.mulf %173, %183 : vector<8x128xf32>
    %185 = vector.broadcast %166 : vector<1x128xf32> to vector<8x128xf32>
    %186 = arith.mulf %185, %184 : vector<8x128xf32>
    %187 = vector.broadcast %167 : vector<1x128xf32> to vector<8x128xf32>
    %188 = arith.addf %186, %187 : vector<8x128xf32>
    %c0_61 = arith.constant 0 : index
    %c0_62 = arith.constant 0 : index
    %189 = vector.load %arg12[%c0_61, %c0_62] : memref<128x256xf32, #tpu.memory_space<vmem>>, vector<128x256xf32>
    %cst_63 = arith.constant dense<0.000000e+00> : vector<8x256xf32>
    %190 = tpu.matmul %188, %189, %cst_63 {dimension_numbers = #tpu.dot_dimension_numbers<[1], [0], [0], [1], [0, 0, 1, 1], [], []>} : vector<8x128xf32>, vector<128x256xf32>, vector<8x256xf32> -> vector<8x256xf32>
    %c0_64 = arith.constant 0 : index
    %c0_65 = arith.constant 0 : index
    %191 = vector.load %arg13[%c0_64, %c0_65] : memref<1x256xf32, #tpu.memory_space<vmem>>, vector<1x256xf32>
    %192 = vector.broadcast %191 : vector<1x256xf32> to vector<8x256xf32>
    %193 = arith.addf %190, %192 : vector<8x256xf32>
    %cst_66 = arith.constant 0.000000e+00 : f32
    %194 = vector.broadcast %cst_66 : f32 to vector<8x256xf32>
    %195 = arith.maximumf %193, %194 : vector<8x256xf32>
    %c0_67 = arith.constant 0 : index
    %c0_68 = arith.constant 0 : index
    %196 = vector.load %arg14[%c0_67, %c0_68] : memref<256x128xf32, #tpu.memory_space<vmem>>, vector<256x128xf32>
    %cst_69 = arith.constant dense<0.000000e+00> : vector<8x128xf32>
    %197 = tpu.matmul %195, %196, %cst_69 {dimension_numbers = #tpu.dot_dimension_numbers<[1], [0], [0], [1], [0, 0, 1, 1], [], []>} : vector<8x256xf32>, vector<256x128xf32>, vector<8x128xf32> -> vector<8x128xf32>
    %c0_70 = arith.constant 0 : index
    %c0_71 = arith.constant 0 : index
    %198 = vector.load %arg15[%c0_70, %c0_71] : memref<1x128xf32, #tpu.memory_space<vmem>>, vector<1x128xf32>
    %199 = vector.broadcast %198 : vector<1x128xf32> to vector<8x128xf32>
    %200 = arith.addf %197, %199 : vector<8x128xf32>
    %201 = arith.addf %188, %200 : vector<8x128xf32>
    %c0_72 = arith.constant 0 : index
    %c0_73 = arith.constant 0 : index
    %202 = vector.load %arg20[%c0_72, %c0_73] : memref<1x128xf32, #tpu.memory_space<vmem>>, vector<1x128xf32>
    %c0_74 = arith.constant 0 : index
    %c0_75 = arith.constant 0 : index
    %203 = vector.load %arg21[%c0_74, %c0_75] : memref<1x128xf32, #tpu.memory_space<vmem>>, vector<1x128xf32>
    %cst_76 = arith.constant dense<0.000000e+00> : vector<8xf32>
    %204 = vector.multi_reduction <add>, %201, %cst_76 [1] : vector<8x128xf32> to vector<8xf32>
    %205 = vector.shape_cast %204 : vector<8xf32> to vector<8x1xf32>
    %cst_77 = arith.constant 1.280000e+02 : f32
    %206 = vector.broadcast %cst_77 : f32 to vector<8x1xf32>
    %207 = arith.divf %205, %206 : vector<8x1xf32>
    %208 = vector.broadcast %207 : vector<8x1xf32> to vector<8x128xf32>
    %209 = arith.subf %201, %208 : vector<8x128xf32>
    %210 = arith.mulf %209, %209 : vector<8x128xf32>
    %cst_78 = arith.constant dense<0.000000e+00> : vector<8xf32>
    %211 = vector.multi_reduction <add>, %210, %cst_78 [1] : vector<8x128xf32> to vector<8xf32>
    %212 = vector.shape_cast %211 : vector<8xf32> to vector<8x1xf32>
    %cst_79 = arith.constant 0.00787401571 : f32
    %213 = vector.broadcast %cst_79 : f32 to vector<8x1xf32>
    %214 = arith.mulf %212, %213 : vector<8x1xf32>
    %215 = math.sqrt %214 : vector<8x1xf32>
    %cst_80 = arith.constant 9.99999997E-7 : f32
    %216 = vector.broadcast %cst_80 : f32 to vector<8x1xf32>
    %217 = arith.addf %215, %216 : vector<8x1xf32>
    %218 = tpu.reciprocal %217 : vector<8x1xf32> -> vector<8x1xf32>
    %219 = vector.broadcast %218 : vector<8x1xf32> to vector<8x128xf32>
    %220 = arith.mulf %209, %219 : vector<8x128xf32>
    %221 = vector.broadcast %202 : vector<1x128xf32> to vector<8x128xf32>
    %222 = arith.mulf %221, %220 : vector<8x128xf32>
    %223 = vector.broadcast %203 : vector<1x128xf32> to vector<8x128xf32>
    %224 = arith.addf %222, %223 : vector<8x128xf32>
    %c0_81 = arith.constant 0 : index
    %c0_82 = arith.constant 0 : index
    %c0_83 = arith.constant 0 : index
    %225 = vector.load %arg22[%c0_81, %c0_82, %c0_83] : memref<1x8x128xf32, #tpu.memory_space<vmem>>, vector<1x8x128xf32>
    %226 = vector.shape_cast %225 : vector<1x8x128xf32> to vector<8x128xf32>
    %227 = vector.shape_cast %224 : vector<8x128xf32> to vector<1x8x128xf32>
    tpu.vector_store %arg22[%c0_81, %c0_82, %c0_83], %227 {strides = array<i32>} : memref<1x8x128xf32, #tpu.memory_space<vmem>>, vector<1x8x128xf32>,
    return
  }
  func.func @transform_0(%arg0: i32, %arg1: i32) -> (i32, i32, i32) {
    %c0_i32 = arith.constant 0 : i32
    %c0_i32_0 = arith.constant 0 : i32
    %c0_i32_1 = arith.constant 0 : i32
    return %arg0, %c0_i32, %c0_i32_0 : i32, i32, i32
  }
  func.func @transform_1(%arg0: i32, %arg1: i32) -> (i32, i32, i32) {
    %c0_i32 = arith.constant 0 : i32
    %c0_i32_0 = arith.constant 0 : i32
    %c0_i32_1 = arith.constant 0 : i32
    return %arg0, %c0_i32, %c0_i32_0 : i32, i32, i32
  }
  func.func @transform_2(%arg0: i32, %arg1: i32) -> (i32, i32) {
    %c0_i32 = arith.constant 0 : i32
    %c0_i32_0 = arith.constant 0 : i32
    return %arg1, %c0_i32 : i32, i32
  }
  func.func @transform_3(%arg0: i32, %arg1: i32) -> (i32, i32) {
    %c0_i32 = arith.constant 0 : i32
    %c0_i32_0 = arith.constant 0 : i32
    return %arg1, %c0_i32 : i32, i32
  }
  func.func @transform_4(%arg0: i32, %arg1: i32) -> (i32, i32) {
    %c0_i32 = arith.constant 0 : i32
    %c0_i32_0 = arith.constant 0 : i32
    %c0_i32_1 = arith.constant 0 : i32
    return %c0_i32, %c0_i32_0 : i32, i32
  }
  func.func @transform_5(%arg0: i32, %arg1: i32) -> (i32, i32) {
    %c0_i32 = arith.constant 0 : i32
    %c0_i32_0 = arith.constant 0 : i32
    %c0_i32_1 = arith.constant 0 : i32
    return %c0_i32, %c0_i32_0 : i32, i32
  }
  func.func @transform_6(%arg0: i32, %arg1: i32) -> (i32, i32) {
    %c0_i32 = arith.constant 0 : i32
    %c0_i32_0 = arith.constant 0 : i32
    %c0_i32_1 = arith.constant 0 : i32
    return %c0_i32, %c0_i32_0 : i32, i32
  }
  func.func @transform_7(%arg0: i32, %arg1: i32) -> (i32, i32) {
    %c0_i32 = arith.constant 0 : i32
    %c0_i32_0 = arith.constant 0 : i32
    %c0_i32_1 = arith.constant 0 : i32
    return %c0_i32, %c0_i32_0 : i32, i32
  }
  func.func @transform_8(%arg0: i32, %arg1: i32) -> (i32, i32) {
    %c0_i32 = arith.constant 0 : i32
    %c0_i32_0 = arith.constant 0 : i32
    %c0_i32_1 = arith.constant 0 : i32
    return %c0_i32, %c0_i32_0 : i32, i32
  }
  func.func @transform_9(%arg0: i32, %arg1: i32) -> (i32, i32) {
    %c0_i32 = arith.constant 0 : i32
    %c0_i32_0 = arith.constant 0 : i32
    %c0_i32_1 = arith.constant 0 : i32
    return %c0_i32, %c0_i32_0 : i32, i32
  }
  func.func @transform_10(%arg0: i32, %arg1: i32) -> (i32, i32) {
    %c0_i32 = arith.constant 0 : i32
    %c0_i32_0 = arith.constant 0 : i32
    %c0_i32_1 = arith.constant 0 : i32
    return %c0_i32, %c0_i32_0 : i32, i32
  }
  func.func @transform_11(%arg0: i32, %arg1: i32) -> (i32, i32) {
    %c0_i32 = arith.constant 0 : i32
    %c0_i32_0 = arith.constant 0 : i32
    %c0_i32_1 = arith.constant 0 : i32
    return %c0_i32, %c0_i32_0 : i32, i32
  }
  func.func @transform_12(%arg0: i32, %arg1: i32) -> (i32, i32) {
    %c0_i32 = arith.constant 0 : i32
    %c0_i32_0 = arith.constant 0 : i32
    %c0_i32_1 = arith.constant 0 : i32
    return %c0_i32, %c0_i32_0 : i32, i32
  }
  func.func @transform_13(%arg0: i32, %arg1: i32) -> (i32, i32) {
    %c0_i32 = arith.constant 0 : i32
    %c0_i32_0 = arith.constant 0 : i32
    %c0_i32_1 = arith.constant 0 : i32
    return %c0_i32, %c0_i32_0 : i32, i32
  }
  func.func @transform_14(%arg0: i32, %arg1: i32) -> (i32, i32) {
    %c0_i32 = arith.constant 0 : i32
    %c0_i32_0 = arith.constant 0 : i32
    %c0_i32_1 = arith.constant 0 : i32
    return %c0_i32, %c0_i32_0 : i32, i32
  }
  func.func @transform_15(%arg0: i32, %arg1: i32) -> (i32, i32) {
    %c0_i32 = arith.constant 0 : i32
    %c0_i32_0 = arith.constant 0 : i32
    %c0_i32_1 = arith.constant 0 : i32
    return %c0_i32, %c0_i32_0 : i32, i32
  }
  func.func @transform_16(%arg0: i32, %arg1: i32) -> (i32, i32) {
    %c0_i32 = arith.constant 0 : i32
    %c0_i32_0 = arith.constant 0 : i32
    %c0_i32_1 = arith.constant 0 : i32
    return %c0_i32, %c0_i32_0 : i32, i32
  }
  func.func @transform_17(%arg0: i32, %arg1: i32) -> (i32, i32) {
    %c0_i32 = arith.constant 0 : i32
    %c0_i32_0 = arith.constant 0 : i32
    %c0_i32_1 = arith.constant 0 : i32
    return %c0_i32, %c0_i32_0 : i32, i32
  }
  func.func @transform_18(%arg0: i32, %arg1: i32) -> (i32, i32) {
    %c0_i32 = arith.constant 0 : i32
    %c0_i32_0 = arith.constant 0 : i32
    %c0_i32_1 = arith.constant 0 : i32
    return %c0_i32, %c0_i32_0 : i32, i32
  }
  func.func @transform_19(%arg0: i32, %arg1: i32) -> (i32, i32) {
    %c0_i32 = arith.constant 0 : i32
    %c0_i32_0 = arith.constant 0 : i32
    %c0_i32_1 = arith.constant 0 : i32
    return %c0_i32, %c0_i32_0 : i32, i32
  }
  func.func @transform_20(%arg0: i32, %arg1: i32) -> (i32, i32, i32) {
    %c0_i32 = arith.constant 0 : i32
    %c0_i32_0 = arith.constant 0 : i32
    return %arg0, %arg1, %c0_i32 : i32, i32, i32
  }
}

</mosaic_0001>

<llo_original>
// kernel: tpu_custom_call.1
$region0: #{tpu_custom_call.1}
  #allocation0 [shape = 'u32[]', space=smem, size = 0x4, offset = 0x4, fixed_abs, tag = 'smem constant byte address 0x4 - core index']
  #allocation1 [shape = 'u32[144,128]{1,0:T(1,128)}', space=vmem, size = 0x12000, scoped, tag = 'internal scratch']
  %s0 = inlined_call_operand.hbm [shape: f32[2,16,128], index: 0, kind: input, shape index: {}]
  %s1 = inlined_call_operand.hbm [shape: f32[2,16,128], index: 1, kind: input, shape index: {}]
  %s2 = inlined_call_operand.hbm [shape: s32[16,16], index: 2, kind: input, shape index: {}]
  %s3 = inlined_call_operand.hbm [shape: s32[16,16], index: 3, kind: input, shape index: {}]
  %s4 = inlined_call_operand.hbm [shape: f32[128,128], index: 4, kind: input, shape index: {}]
  %s5 = inlined_call_operand.hbm [shape: f32[128,256], index: 5, kind: input, shape index: {}]
  %s6 = inlined_call_operand.hbm [shape: f32[128,128], index: 6, kind: input, shape index: {}]
  %s7 = inlined_call_operand.hbm [shape: f32[128,128], index: 7, kind: input, shape index: {}]
  %s8 = inlined_call_operand.hbm [shape: f32[128,256], index: 8, kind: input, shape index: {}]
  %s9 = inlined_call_operand.hbm [shape: f32[128,128], index: 9, kind: input, shape index: {}]
  %s10 = inlined_call_operand.hbm [shape: f32[128,256], index: 10, kind: input, shape index: {}]
  %s11 = inlined_call_operand.vmem [shape: f32[1,256], index: 11, kind: input, shape index: {}]
  %s12 = inlined_call_operand.hbm [shape: f32[256,128], index: 12, kind: input, shape index: {}]
  %s13 = inlined_call_operand.vmem [shape: f32[1,128], index: 13, kind: input, shape index: {}]
  %s14 = inlined_call_operand.vmem [shape: f32[1,128], index: 14, kind: input, shape index: {}]
  %s15 = inlined_call_operand.vmem [shape: f32[1,128], index: 15, kind: input, shape index: {}]
  %s16 = inlined_call_operand.vmem [shape: f32[1,128], index: 16, kind: input, shape index: {}]
  %s17 = inlined_call_operand.vmem [shape: f32[1,128], index: 17, kind: input, shape index: {}]
  %s18 = inlined_call_operand.vmem [shape: f32[1,128], index: 18, kind: input, shape index: {}]
  %s19 = inlined_call_operand.vmem [shape: f32[1,128], index: 19, kind: input, shape index: {}]
  %s20 = inlined_call_operand.hbm [shape: f32[2,16,128], index: 20, kind: output, shape index: {}]
  %s21 = sld [smem:[#allocation0]]
  $region161: #{tpu_custom_call.1} parent=0
    _
  %s23 = ssub.s32 1, %s21
  %s24 = scalar_select 0, %s23, %s21
  $region1: #{tpu_custom_call.1} parent=0
    #allocation2 [shape = 'u8[16384]{0}', space=vmem, size = 0x4000, scoped, tag = 'input window, operand 0']
    #allocation3 [shape = 's32[2]{0}', space=sflag, size = 0x8, scoped, tag = 'scoped memory for tpu_custom_call.1']
    #allocation4 [shape = 's32[2]{0}', space=sflag, size = 0x8, scoped, tag = 'scoped memory for tpu_custom_call.1']
    #allocation5 [shape = 'u8[16384]{0}', space=vmem, size = 0x4000, scoped, tag = 'input window, operand 1']
    #allocation6 [shape = 's32[2]{0}', space=sflag, size = 0x8, scoped, tag = 'scoped memory for tpu_custom_call.1']
    #allocation7 [shape = 'u8[8192]{0}', space=vmem, size = 0x2000, scoped, tag = 'input window, operand 2']
    #allocation8 [shape = 'u8[8192]{0}', space=vmem, size = 0x2000, scoped, tag = 'input window, operand 3']
    #allocation9 [shape = 's32[2]{0}', space=sflag, size = 0x8, scoped, tag = 'scoped memory for tpu_custom_call.1']
    #allocation10 [shape = 'u8[65536]{0}', space=vmem, size = 0x10000, scoped, tag = 'input window, operand 4, single buffered']
    #allocation11 [shape = 'u8[131072]{0}', space=vmem, size = 0x20000, scoped, tag = 'input window, operand 5, single buffered']
    #allocation12 [shape = 's32[1]{0}', space=sflag, size = 0x4, scoped, tag = 'scoped memory for tpu_custom_call.1']
    #allocation13 [shape = 'u8[65536]{0}', space=vmem, size = 0x10000, scoped, tag = 'input window, operand 6, single buffered']
    #allocation14 [shape = 'u8[65536]{0}', space=vmem, size = 0x10000, scoped, tag = 'input window, operand 7, single buffered']
    #allocation15 [shape = 's32[1]{0}', space=sflag, size = 0x4, scoped, tag = 'scoped memory for tpu_custom_call.1']
    #allocation16 [shape = 'u8[131072]{0}', space=vmem, size = 0x20000, scoped, tag = 'input window, operand 8, single buffered']
    #allocation17 [shape = 'u8[65536]{0}', space=vmem, size = 0x10000, scoped, tag = 'input window, operand 9, single buffered']
    #allocation18 [shape = 's32[1]{0}', space=sflag, size = 0x4, scoped, tag = 'scoped memory for tpu_custom_call.1']
    #allocation19 [shape = 'u8[131072]{0}', space=vmem, size = 0x20000, scoped, tag = 'input window, operand 10, single buffered']
    #allocation20 [shape = 'u8[131072]{0}', space=vmem, size = 0x20000, scoped, tag = 'input window, operand 12, single buffered']
    #allocation21 [shape = 's32[1]{0}', space=sflag, size = 0x4, scoped, tag = 'scoped memory for tpu_custom_call.1']
    #allocation22 [shape = 'u8[8192]{0}', space=vmem, size = 0x2000, scoped, tag = 'output window, operand 0']
    %25 = vsyncpa [#allocation3], 0
    %s26 = scalar_lea.sflag [#allocation3], 1
    %27 = vsyncpa %s26, 0
    %28 = vsyncpa [#allocation6], 0
    %s29 = scalar_lea.sflag [#allocation6], 1
    %30 = vsyncpa %s29, 0
    %31 = vsyncpa [#allocation9], 0
    %s32 = scalar_lea.sflag [#allocation9], 1
    %33 = vsyncpa %s32, 0
    %34 = vsyncpa [#allocation12], 0
    %35 = vsyncpa [#allocation15], 0
    %36 = vsyncpa [#allocation18], 0
    %37 = vsyncpa [#allocation21], 0
    %38 = vsyncpa [#allocation4], 0
    %s39 = scalar_lea.sflag [#allocation4], 1
    %40 = vsyncpa %s39, 0
    loop: start=0, step=1, limit=6
    $region2: #{tpu_custom_call.1} parent=1 // loop_pre_header
      _
    $region3: #{tpu_custom_call.1} parent=1 // loop_header
      %s42 = sphi 0, %s46
      %p43 = scmp.ge.s32.totalorder %s42, 6
      %s49 = sphi 0, %s61
      %s50 = sphi 0, %s57
      %s51 = sphi 0, %s49
      %s52 = sphi 0, %s50
      %s53 = sphi 0, %s51
      %s54 = sphi 0, %s52
      %s64 = sphi 0, %s66
      %s67 = sphi 0, %s64
      %s68 = sphi 0, %s67
      %s84 = sphi 0, %s68
      %s90 = sphi 0, %s92
      %s93 = sphi 0, %s90
      %s94 = sphi 0, %s93
      %s110 = sphi 0, %s94
      %s116 = sphi 0, %s118
      %s119 = sphi 0, %s116
      %s120 = sphi 0, %s119
      %s136 = sphi 0, %s120
      %s142 = sphi 0, %s144
      %s145 = sphi 0, %s142
      %s146 = sphi 0, %s145
      %s162 = sphi 0, %s146
      %s166 = sphi 0, %s166
      %s168 = sphi 0, %s166
      %s169 = sphi 0, %s168
      %s183 = sphi 0, %s169
      %s187 = sphi 0, %s187
      %s189 = sphi 0, %s187
      %s190 = sphi 0, %s189
      %s204 = sphi 0, %s190
      %s208 = sphi 0, %s208
      %s210 = sphi 0, %s208
      %s211 = sphi 0, %s210
      %s225 = sphi 0, %s211
      %s229 = sphi 0, %s229
      %s231 = sphi 0, %s229
      %s232 = sphi 0, %s231
      %s246 = sphi 0, %s232
      %s250 = sphi 0, %s250
      %s252 = sphi 0, %s250
      %s253 = sphi 0, %s252
      %s267 = sphi 0, %s253
      %s271 = sphi 0, %s271
      %s273 = sphi 0, %s271
      %s274 = sphi 0, %s273
      %s288 = sphi 0, %s274
      %s292 = sphi 0, %s292
      %s294 = sphi 0, %s292
      %s295 = sphi 0, %s294
      %s309 = sphi 0, %s295
      %s313 = sphi 0, %s313
      %s315 = sphi 0, %s313
      %s316 = sphi 0, %s315
      %s330 = sphi 0, %s316
      %s334 = sphi 0, %s334
      %s336 = sphi 0, %s334
      %s337 = sphi 0, %s336
      %s351 = sphi 0, %s337
      %s355 = sphi 0, %s355
      %s357 = sphi 0, %s355
      %s358 = sphi 0, %s357
      %s372 = sphi 0, %s358
      %s376 = sphi 0, %s376
      %s378 = sphi 0, %s376
      %s379 = sphi 0, %s378
      %s393 = sphi 0, %s379
      %s397 = sphi 0, %s397
      %s399 = sphi 0, %s397
      %s400 = sphi 0, %s399
      %s414 = sphi 0, %s400
      %s418 = sphi 0, %s418
      %s420 = sphi 0, %s418
      %s421 = sphi 0, %s420
      %s435 = sphi 0, %s421
      %s439 = sphi 0, %s439
      %s441 = sphi 0, %s439
      %s442 = sphi 0, %s441
      %s456 = sphi 0, %s442
      %s460 = sphi 0, %s460
      %s462 = sphi 0, %s460
      %s463 = sphi 0, %s462
      %s477 = sphi 0, %s463
      %s481 = sphi 0, %s481
      %s483 = sphi 0, %s481
      %s484 = sphi 0, %s483
      %s498 = sphi 0, %s484
      %s506 = sphi 0, %s508
      %s509 = sphi 0, %s506
      %s510 = sphi 0, %s509
      %s526 = sphi 0, %s510
    $region4: #{tpu_custom_call.1} parent=1 // loop_header_branch
      %45 = sbr.rel (%p43) target = $region8
    $region5: #{tpu_custom_call.1} parent=1 // loop_body
      %s47 = ssub.s32 %s42, 1
      %s48 = ssub.s32 %s42, 2
      %s55 = sadd.s32 1, %s50
      %p56 = scmp.ge.s32.totalorder %s55, 2
      %s57 = scalar_select %p56, 0, %s55
      %s58 = sadd.s32 1, %s49
      %s59 = scalar_select %p56, %s58, %s49
      %p60 = scmp.ge.s32.totalorder %s59, 2
      %s61 = scalar_select %p60, 0, %s59
      %s62 = ssub.s32 %s49, %s61
      %p63 = scmp.eq.s32.totalorder %s62, 0
      %s65 = sadd.s32 %s64, 1
      %s66 = scalar_select %p63, %s64, %s65
      %p69 = pneg %p63
      %p70 = scmp.eq.s32.totalorder %s42, 3
      %p71 = por %p69, %p70
      %p72 = scmp.ne.s32.totalorder %s64, %s67
      %p73 = scmp.eq.s32.totalorder %s42, 0
      %p74 = por %p72, %p73
      %p75 = scmp.ne.s32.totalorder %s64, %s67
      %p76 = scmp.eq.s32.totalorder %s47, 3
      %p77 = por %p75, %p76
      %p78 = scmp.ne.s32.totalorder %s67, %s68
      %p79 = scmp.eq.s32.totalorder %s47, 0
      %p80 = por %p78, %p79
      %p81 = scmp.ne.s32.totalorder %s67, %s68
      %p82 = scmp.eq.s32.totalorder %s48, 3
      %p83 = por %p81, %p82
      %p85 = scmp.ne.s32.totalorder %s68, %s84
      %p86 = scmp.eq.s32.totalorder %s48, 0
      %p87 = por %p85, %p86
      %s88 = ssub.s32 %s49, %s61
      %p89 = scmp.eq.s32.totalorder %s88, 0
      %s91 = sadd.s32 %s90, 1
      %s92 = scalar_select %p89, %s90, %s91
      %p95 = pneg %p89
      %p96 = scmp.eq.s32.totalorder %s42, 3
      %p97 = por %p95, %p96
      %p98 = scmp.ne.s32.totalorder %s90, %s93
      %p99 = scmp.eq.s32.totalorder %s42, 0
      %p100 = por %p98, %p99
      %p101 = scmp.ne.s32.totalorder %s90, %s93
      %p102 = scmp.eq.s32.totalorder %s47, 3
      %p103 = por %p101, %p102
      %p104 = scmp.ne.s32.totalorder %s93, %s94
      %p105 = scmp.eq.s32.totalorder %s47, 0
      %p106 = por %p104, %p105
      %p107 = scmp.ne.s32.totalorder %s93, %s94
      %p108 = scmp.eq.s32.totalorder %s48, 3
      %p109 = por %p107, %p108
      %p111 = scmp.ne.s32.totalorder %s94, %s110
      %p112 = scmp.eq.s32.totalorder %s48, 0
      %p113 = por %p111, %p112
      %s114 = ssub.s32 %s50, %s57
      %p115 = scmp.eq.s32.totalorder %s114, 0
      %s117 = sadd.s32 %s116, 1
      %s118 = scalar_select %p115, %s116, %s117
      %p121 = pneg %p115
      %p122 = scmp.eq.s32.totalorder %s42, 3
      %p123 = por %p121, %p122
      %p124 = scmp.ne.s32.totalorder %s116, %s119
      %p125 = scmp.eq.s32.totalorder %s42, 0
      %p126 = por %p124, %p125
      %p127 = scmp.ne.s32.totalorder %s116, %s119
      %p128 = scmp.eq.s32.totalorder %s47, 3
      %p129 = por %p127, %p128
      %p130 = scmp.ne.s32.totalorder %s119, %s120
      %p131 = scmp.eq.s32.totalorder %s47, 0
      %p132 = por %p130, %p131
      %p133 = scmp.ne.s32.totalorder %s119, %s120
      %p134 = scmp.eq.s32.totalorder %s48, 3
      %p135 = por %p133, %p134
      %p137 = scmp.ne.s32.totalorder %s120, %s136
      %p138 = scmp.eq.s32.totalorder %s48, 0
      %p139 = por %p137, %p138
      %s140 = ssub.s32 %s50, %s57
      %p141 = scmp.eq.s32.totalorder %s140, 0
      %s143 = sadd.s32 %s142, 1
      %s144 = scalar_select %p141, %s142, %s143
      %p147 = pneg %p141
      %p148 = scmp.eq.s32.totalorder %s42, 3
      %p149 = por %p147, %p148
      %p150 = scmp.ne.s32.totalorder %s142, %s145
      %p151 = scmp.eq.s32.totalorder %s42, 0
      %p152 = por %p150, %p151
      %p153 = scmp.ne.s32.totalorder %s142, %s145
      %p154 = scmp.eq.s32.totalorder %s47, 3
      %p155 = por %p153, %p154
      %p156 = scmp.ne.s32.totalorder %s145, %s146
      %p157 = scmp.eq.s32.totalorder %s47, 0
      %p158 = por %p156, %p157
      %p159 = scmp.ne.s32.totalorder %s145, %s146
      %p160 = scmp.eq.s32.totalorder %s48, 3
      %p161 = por %p159, %p160
      %p163 = scmp.ne.s32.totalorder %s146, %s162
      %p164 = scmp.eq.s32.totalorder %s48, 0
      %p165 = por %p163, %p164
      %s167 = sadd.s32 %s166, 1
      %p170 = scmp.eq.s32.totalorder %s42, 3
      %p171 = scmp.ne.s32.totalorder %s166, %s168
      %p172 = scmp.eq.s32.totalorder %s42, 0
      %p173 = por %p171, %p172
      %p174 = scmp.ne.s32.totalorder %s166, %s168
      %p175 = scmp.eq.s32.totalorder %s47, 3
      %p176 = por %p174, %p175
      %p177 = scmp.ne.s32.totalorder %s168, %s169
      %p178 = scmp.eq.s32.totalorder %s47, 0
      %p179 = por %p177, %p178
      %p180 = scmp.ne.s32.totalorder %s168, %s169
      %p181 = scmp.eq.s32.totalorder %s48, 3
      %p182 = por %p180, %p181
      %p184 = scmp.ne.s32.totalorder %s169, %s183
      %p185 = scmp.eq.s32.totalorder %s48, 0
      %p186 = por %p184, %p185
      %s188 = sadd.s32 %s187, 1
      %p191 = scmp.eq.s32.totalorder %s42, 3
      %p192 = scmp.ne.s32.totalorder %s187, %s189
      %p193 = scmp.eq.s32.totalorder %s42, 0
      %p194 = por %p192, %p193
      %p195 = scmp.ne.s32.totalorder %s187, %s189
      %p196 = scmp.eq.s32.totalorder %s47, 3
      %p197 = por %p195, %p196
      %p198 = scmp.ne.s32.totalorder %s189, %s190
      %p199 = scmp.eq.s32.totalorder %s47, 0
      %p200 = por %p198, %p199
      %p201 = scmp.ne.s32.totalorder %s189, %s190
      %p202 = scmp.eq.s32.totalorder %s48, 3
      %p203 = por %p201, %p202
      %p205 = scmp.ne.s32.totalorder %s190, %s204
      %p206 = scmp.eq.s32.totalorder %s48, 0
      %p207 = por %p205, %p206
      %s209 = sadd.s32 %s208, 1
      %p212 = scmp.eq.s32.totalorder %s42, 3
      %p213 = scmp.ne.s32.totalorder %s208, %s210
      %p214 = scmp.eq.s32.totalorder %s42, 0
      %p215 = por %p213, %p214
      %p216 = scmp.ne.s32.totalorder %s208, %s210
      %p217 = scmp.eq.s32.totalorder %s47, 3
      %p218 = por %p216, %p217
      %p219 = scmp.ne.s32.totalorder %s210, %s211
      %p220 = scmp.eq.s32.totalorder %s47, 0
      %p221 = por %p219, %p220
      %p222 = scmp.ne.s32.totalorder %s210, %s211
      %p223 = scmp.eq.s32.totalorder %s48, 3
      %p224 = por %p222, %p223
      %p226 = scmp.ne.s32.totalorder %s211, %s225
      %p227 = scmp.eq.s32.totalorder %s48, 0
      %p228 = por %p226, %p227
      %s230 = sadd.s32 %s229, 1
      %p233 = scmp.eq.s32.totalorder %s42, 3
      %p234 = scmp.ne.s32.totalorder %s229, %s231
      %p235 = scmp.eq.s32.totalorder %s42, 0
      %p236 = por %p234, %p235
      %p237 = scmp.ne.s32.totalorder %s229, %s231
      %p238 = scmp.eq.s32.totalorder %s47, 3
      %p239 = por %p237, %p238
      %p240 = scmp.ne.s32.totalorder %s231, %s232
      %p241 = scmp.eq.s32.totalorder %s47, 0
      %p242 = por %p240, %p241
      %p243 = scmp.ne.s32.totalorder %s231, %s232
      %p244 = scmp.eq.s32.totalorder %s48, 3
      %p245 = por %p243, %p244
      %p247 = scmp.ne.s32.totalorder %s232, %s246
      %p248 = scmp.eq.s32.totalorder %s48, 0
      %p249 = por %p247, %p248
      %s251 = sadd.s32 %s250, 1
      %p254 = scmp.eq.s32.totalorder %s42, 3
      %p255 = scmp.ne.s32.totalorder %s250, %s252
      %p256 = scmp.eq.s32.totalorder %s42, 0
      %p257 = por %p255, %p256
      %p258 = scmp.ne.s32.totalorder %s250, %s252
      %p259 = scmp.eq.s32.totalorder %s47, 3
      %p260 = por %p258, %p259
      %p261 = scmp.ne.s32.totalorder %s252, %s253
      %p262 = scmp.eq.s32.totalorder %s47, 0
      %p263 = por %p261, %p262
      %p264 = scmp.ne.s32.totalorder %s252, %s253
      %p265 = scmp.eq.s32.totalorder %s48, 3
      %p266 = por %p264, %p265
      %p268 = scmp.ne.s32.totalorder %s253, %s267
      %p269 = scmp.eq.s32.totalorder %s48, 0
      %p270 = por %p268, %p269
      %s272 = sadd.s32 %s271, 1
      %p275 = scmp.eq.s32.totalorder %s42, 3
      %p276 = scmp.ne.s32.totalorder %s271, %s273
      %p277 = scmp.eq.s32.totalorder %s42, 0
      %p278 = por %p276, %p277
      %p279 = scmp.ne.s32.totalorder %s271, %s273
      %p280 = scmp.eq.s32.totalorder %s47, 3
      %p281 = por %p279, %p280
      %p282 = scmp.ne.s32.totalorder %s273, %s274
      %p283 = scmp.eq.s32.totalorder %s47, 0
      %p284 = por %p282, %p283
      %p285 = scmp.ne.s32.totalorder %s273, %s274
      %p286 = scmp.eq.s32.totalorder %s48, 3
      %p287 = por %p285, %p286
      %p289 = scmp.ne.s32.totalorder %s274, %s288
      %p290 = scmp.eq.s32.totalorder %s48, 0
      %p291 = por %p289, %p290
      %s293 = sadd.s32 %s292, 1
      %p296 = scmp.eq.s32.totalorder %s42, 3
      %p297 = scmp.ne.s32.totalorder %s292, %s294
      %p298 = scmp.eq.s32.totalorder %s42, 0
      %p299 = por %p297, %p298
      %p300 = scmp.ne.s32.totalorder %s292, %s294
      %p301 = scmp.eq.s32.totalorder %s47, 3
      %p302 = por %p300, %p301
      %p303 = scmp.ne.s32.totalorder %s294, %s295
      %p304 = scmp.eq.s32.totalorder %s47, 0
      %p305 = por %p303, %p304
      %p306 = scmp.ne.s32.totalorder %s294, %s295
      %p307 = scmp.eq.s32.totalorder %s48, 3
      %p308 = por %p306, %p307
      %p310 = scmp.ne.s32.totalorder %s295, %s309
      %p311 = scmp.eq.s32.totalorder %s48, 0
      %p312 = por %p310, %p311
      %s314 = sadd.s32 %s313, 1
      %p317 = scmp.eq.s32.totalorder %s42, 3
      %p318 = scmp.ne.s32.totalorder %s313, %s315
      %p319 = scmp.eq.s32.totalorder %s42, 0
      %p320 = por %p318, %p319
      %p321 = scmp.ne.s32.totalorder %s313, %s315
      %p322 = scmp.eq.s32.totalorder %s47, 3
      %p323 = por %p321, %p322
      %p324 = scmp.ne.s32.totalorder %s315, %s316
      %p325 = scmp.eq.s32.totalorder %s47, 0
      %p326 = por %p324, %p325
      %p327 = scmp.ne.s32.totalorder %s315, %s316
      %p328 = scmp.eq.s32.totalorder %s48, 3
      %p329 = por %p327, %p328
      %p331 = scmp.ne.s32.totalorder %s316, %s330
      %p332 = scmp.eq.s32.totalorder %s48, 0
      %p333 = por %p331, %p332
      %s335 = sadd.s32 %s334, 1
      %p338 = scmp.eq.s32.totalorder %s42, 3
      %p339 = scmp.ne.s32.totalorder %s334, %s336
      %p340 = scmp.eq.s32.totalorder %s42, 0
      %p341 = por %p339, %p340
      %p342 = scmp.ne.s32.totalorder %s334, %s336
      %p343 = scmp.eq.s32.totalorder %s47, 3
      %p344 = por %p342, %p343
      %p345 = scmp.ne.s32.totalorder %s336, %s337
      %p346 = scmp.eq.s32.totalorder %s47, 0
      %p347 = por %p345, %p346
      %p348 = scmp.ne.s32.totalorder %s336, %s337
      %p349 = scmp.eq.s32.totalorder %s48, 3
      %p350 = por %p348, %p349
      %p352 = scmp.ne.s32.totalorder %s337, %s351
      %p353 = scmp.eq.s32.totalorder %s48, 0
      %p354 = por %p352, %p353
      %s356 = sadd.s32 %s355, 1
      %p359 = scmp.eq.s32.totalorder %s42, 3
      %p360 = scmp.ne.s32.totalorder %s355, %s357
      %p361 = scmp.eq.s32.totalorder %s42, 0
      %p362 = por %p360, %p361
      %p363 = scmp.ne.s32.totalorder %s355, %s357
      %p364 = scmp.eq.s32.totalorder %s47, 3
      %p365 = por %p363, %p364
      %p366 = scmp.ne.s32.totalorder %s357, %s358
      %p367 = scmp.eq.s32.totalorder %s47, 0
      %p368 = por %p366, %p367
      %p369 = scmp.ne.s32.totalorder %s357, %s358
      %p370 = scmp.eq.s32.totalorder %s48, 3
      %p371 = por %p369, %p370
      %p373 = scmp.ne.s32.totalorder %s358, %s372
      %p374 = scmp.eq.s32.totalorder %s48, 0
      %p375 = por %p373, %p374
      %s377 = sadd.s32 %s376, 1
      %p380 = scmp.eq.s32.totalorder %s42, 3
      %p381 = scmp.ne.s32.totalorder %s376, %s378
      %p382 = scmp.eq.s32.totalorder %s42, 0
      %p383 = por %p381, %p382
      %p384 = scmp.ne.s32.totalorder %s376, %s378
      %p385 = scmp.eq.s32.totalorder %s47, 3
      %p386 = por %p384, %p385
      %p387 = scmp.ne.s32.totalorder %s378, %s379
      %p388 = scmp.eq.s32.totalorder %s47, 0
      %p389 = por %p387, %p388
      %p390 = scmp.ne.s32.totalorder %s378, %s379
      %p391 = scmp.eq.s32.totalorder %s48, 3
      %p392 = por %p390, %p391
      %p394 = scmp.ne.s32.totalorder %s379, %s393
      %p395 = scmp.eq.s32.totalorder %s48, 0
      %p396 = por %p394, %p395
      %s398 = sadd.s32 %s397, 1
      %p401 = scmp.eq.s32.totalorder %s42, 3
      %p402 = scmp.ne.s32.totalorder %s397, %s399
      %p403 = scmp.eq.s32.totalorder %s42, 0
      %p404 = por %p402, %p403
      %p405 = scmp.ne.s32.totalorder %s397, %s399
      %p406 = scmp.eq.s32.totalorder %s47, 3
      %p407 = por %p405, %p406
      %p408 = scmp.ne.s32.totalorder %s399, %s400
      %p409 = scmp.eq.s32.totalorder %s47, 0
      %p410 = por %p408, %p409
      %p411 = scmp.ne.s32.totalorder %s399, %s400
      %p412 = scmp.eq.s32.totalorder %s48, 3
      %p413 = por %p411, %p412
      %p415 = scmp.ne.s32.totalorder %s400, %s414
      %p416 = scmp.eq.s32.totalorder %s48, 0
      %p417 = por %p415, %p416
      %s419 = sadd.s32 %s418, 1
      %p422 = scmp.eq.s32.totalorder %s42, 3
      %p423 = scmp.ne.s32.totalorder %s418, %s420
      %p424 = scmp.eq.s32.totalorder %s42, 0
      %p425 = por %p423, %p424
      %p426 = scmp.ne.s32.totalorder %s418, %s420
      %p427 = scmp.eq.s32.totalorder %s47, 3
      %p428 = por %p426, %p427
      %p429 = scmp.ne.s32.totalorder %s420, %s421
      %p430 = scmp.eq.s32.totalorder %s47, 0
      %p431 = por %p429, %p430
      %p432 = scmp.ne.s32.totalorder %s420, %s421
      %p433 = scmp.eq.s32.totalorder %s48, 3
      %p434 = por %p432, %p433
      %p436 = scmp.ne.s32.totalorder %s421, %s435
      %p437 = scmp.eq.s32.totalorder %s48, 0
      %p438 = por %p436, %p437
      %s440 = sadd.s32 %s439, 1
      %p443 = scmp.eq.s32.totalorder %s42, 3
      %p444 = scmp.ne.s32.totalorder %s439, %s441
      %p445 = scmp.eq.s32.totalorder %s42, 0
      %p446 = por %p444, %p445
      %p447 = scmp.ne.s32.totalorder %s439, %s441
      %p448 = scmp.eq.s32.totalorder %s47, 3
      %p449 = por %p447, %p448
      %p450 = scmp.ne.s32.totalorder %s441, %s442
      %p451 = scmp.eq.s32.totalorder %s47, 0
      %p452 = por %p450, %p451
      %p453 = scmp.ne.s32.totalorder %s441, %s442
      %p454 = scmp.eq.s32.totalorder %s48, 3
      %p455 = por %p453, %p454
      %p457 = scmp.ne.s32.totalorder %s442, %s456
      %p458 = scmp.eq.s32.totalorder %s48, 0
      %p459 = por %p457, %p458
      %s461 = sadd.s32 %s460, 1
      %p464 = scmp.eq.s32.totalorder %s42, 3
      %p465 = scmp.ne.s32.totalorder %s460, %s462
      %p466 = scmp.eq.s32.totalorder %s42, 0
      %p467 = por %p465, %p466
      %p468 = scmp.ne.s32.totalorder %s460, %s462
      %p469 = scmp.eq.s32.totalorder %s47, 3
      %p470 = por %p468, %p469
      %p471 = scmp.ne.s32.totalorder %s462, %s463
      %p472 = scmp.eq.s32.totalorder %s47, 0
      %p473 = por %p471, %p472
      %p474 = scmp.ne.s32.totalorder %s462, %s463
      %p475 = scmp.eq.s32.totalorder %s48, 3
      %p476 = por %p474, %p475
      %p478 = scmp.ne.s32.totalorder %s463, %s477
      %p479 = scmp.eq.s32.totalorder %s48, 0
      %p480 = por %p478, %p479
      %s482 = sadd.s32 %s481, 1
      %p485 = scmp.eq.s32.totalorder %s42, 3
      %p486 = scmp.ne.s32.totalorder %s481, %s483
      %p487 = scmp.eq.s32.totalorder %s42, 0
      %p488 = por %p486, %p487
      %p489 = scmp.ne.s32.totalorder %s481, %s483
      %p490 = scmp.eq.s32.totalorder %s47, 3
      %p491 = por %p489, %p490
      %p492 = scmp.ne.s32.totalorder %s483, %s484
      %p493 = scmp.eq.s32.totalorder %s47, 0
      %p494 = por %p492, %p493
      %p495 = scmp.ne.s32.totalorder %s483, %s484
      %p496 = scmp.eq.s32.totalorder %s48, 3
      %p497 = por %p495, %p496
      %p499 = scmp.ne.s32.totalorder %s484, %s498
      %p500 = scmp.eq.s32.totalorder %s48, 0
      %p501 = por %p499, %p500
      %s502 = ssub.s32 %s49, %s61
      %s503 = ssub.s32 %s50, %s57
      %s504 = sor.u32 %s502, %s503
      %p505 = scmp.eq.s32.totalorder %s504, 0
      %s507 = sadd.s32 %s506, 1
      %s508 = scalar_select %p505, %s506, %s507
      %p511 = pneg %p505
      %p512 = scmp.eq.s32.totalorder %s42, 3
      %p513 = por %p511, %p512
      %p514 = scmp.ne.s32.totalorder %s506, %s509
      %p515 = scmp.eq.s32.totalorder %s42, 0
      %p516 = por %p514, %p515
      %p517 = scmp.ne.s32.totalorder %s506, %s509
      %p518 = scmp.eq.s32.totalorder %s47, 3
      %p519 = por %p517, %p518
      %p520 = scmp.ne.s32.totalorder %s509, %s510
      %p521 = scmp.eq.s32.totalorder %s47, 0
      %p522 = por %p520, %p521
      %p523 = scmp.ne.s32.totalorder %s509, %s510
      %p524 = scmp.eq.s32.totalorder %s48, 3
      %p525 = por %p523, %p524
      %p527 = scmp.ne.s32.totalorder %s510, %s526
      %p528 = scmp.eq.s32.totalorder %s48, 0
      %p529 = por %p527, %p528
      %p530 = scmp.le.s32.totalorder 1, %s42
      %p531 = scmp.lt.s32.totalorder %s42, 5
      %p532 = pnand %p530, %p531
      %p533 = pneg %p532
      // Predicated region
      $region9: #{tpu_custom_call.1} parent=5 // pred_check
        _
      $region10: #{tpu_custom_call.1} parent=5 // pred_check_branch
        %535 = sbr.rel (%p532) target = $region12
      $region11: #{tpu_custom_call.1} parent=5 // pred_region
        %s536 = ssub.s32 %s42, 1
        // Predicated region
        $region13: #{tpu_custom_call.1} parent=11 // pred_check
          %p537 = pneg %p179
        $region14: #{tpu_custom_call.1} parent=11 // pred_check_branch
          %539 = sbr.rel (%p537) target = $region16
        $region15: #{tpu_custom_call.1} parent=11 // pred_region
          %s541 = ssub.s32 2048, 2048
          %542 = vsyncadd [#allocation9], %s541
          %s543 = sshll.u32 [#allocation10], 4
          %s544 = int_to_ptr.vmem [resolvable:$true] %s543
          %549 = dma.hbm_to_vmem [thread:$0]  %s4, 2048, %s544, [#allocation9], 128, 128, 8
        $region16: #{tpu_custom_call.1} parent=11 // pred_fallthru
          _
        // Predicated region
        $region17: #{tpu_custom_call.1} parent=11 // pred_check
          %p550 = pneg %p200
        $region18: #{tpu_custom_call.1} parent=11 // pred_check_branch
          %552 = sbr.rel (%p550) target = $region20
        $region19: #{tpu_custom_call.1} parent=11 // pred_region
          %s554 = ssub.s32 4096, 4096
          %555 = vsyncadd [#allocation12], %s554
          %s556 = sshll.u32 [#allocation11], 4
          %s557 = int_to_ptr.vmem [resolvable:$true] %s556
          %562 = dma.hbm_to_vmem [thread:$0]  %s5, 4096, %s557, [#allocation12], 256, 256, 16
        $region20: #{tpu_custom_call.1} parent=11 // pred_fallthru
          _
        // Predicated region
        $region21: #{tpu_custom_call.1} parent=11 // pred_check
          %p563 = pneg %p221
        $region22: #{tpu_custom_call.1} parent=11 // pred_check_branch
          %565 = sbr.rel (%p563) target = $region24
        $region23: #{tpu_custom_call.1} parent=11 // pred_region
          %s567 = ssub.s32 2048, 2048
          %568 = vsyncadd [#allocation12], %s567
          %s569 = sshll.u32 [#allocation13], 4
          %s570 = int_to_ptr.vmem [resolvable:$true] %s569
          %575 = dma.hbm_to_vmem [thread:$0]  %s6, 2048, %s570, [#allocation12], 128, 128, 8
        $region24: #{tpu_custom_call.1} parent=11 // pred_fallthru
          _
        // Predicated region
        $region25: #{tpu_custom_call.1} parent=11 // pred_check
          %p576 = pneg %p242
        $region26: #{tpu_custom_call.1} parent=11 // pred_check_branch
          %578 = sbr.rel (%p576) target = $region28
        $region27: #{tpu_custom_call.1} parent=11 // pred_region
          %s580 = ssub.s32 2048, 2048
          %581 = vsyncadd [#allocation15], %s580
          %s582 = sshll.u32 [#allocation14], 4
          %s583 = int_to_ptr.vmem [resolvable:$true] %s582
          %588 = dma.hbm_to_vmem [thread:$0]  %s7, 2048, %s583, [#allocation15], 128, 128, 8
        $region28: #{tpu_custom_call.1} parent=11 // pred_fallthru
          _
        // Predicated region
        $region29: #{tpu_custom_call.1} parent=11 // pred_check
          %p589 = pneg %p263
        $region30: #{tpu_custom_call.1} parent=11 // pred_check_branch
          %591 = sbr.rel (%p589) target = $region32
        $region31: #{tpu_custom_call.1} parent=11 // pred_region
          %s593 = ssub.s32 4096, 4096
          %594 = vsyncadd [#allocation15], %s593
          %s595 = sshll.u32 [#allocation16], 4
          %s596 = int_to_ptr.vmem [resolvable:$true] %s595
          %601 = dma.hbm_to_vmem [thread:$0]  %s8, 4096, %s596, [#allocation15], 256, 256, 16
        $region32: #{tpu_custom_call.1} parent=11 // pred_fallthru
          _
        // Predicated region
        $region33: #{tpu_custom_call.1} parent=11 // pred_check
          %p602 = pneg %p284
        $region34: #{tpu_custom_call.1} parent=11 // pred_check_branch
          %604 = sbr.rel (%p602) target = $region36
        $region35: #{tpu_custom_call.1} parent=11 // pred_region
          %s606 = ssub.s32 2048, 2048
          %607 = vsyncadd [#allocation18], %s606
          %s608 = sshll.u32 [#allocation17], 4
          %s609 = int_to_ptr.vmem [resolvable:$true] %s608
          %614 = dma.hbm_to_vmem [thread:$0]  %s9, 2048, %s609, [#allocation18], 128, 128, 8
        $region36: #{tpu_custom_call.1} parent=11 // pred_fallthru
          _
        // Predicated region
        $region37: #{tpu_custom_call.1} parent=11 // pred_check
          %p615 = pneg %p305
        $region38: #{tpu_custom_call.1} parent=11 // pred_check_branch
          %617 = sbr.rel (%p615) target = $region40
        $region39: #{tpu_custom_call.1} parent=11 // pred_region
          %s619 = ssub.s32 4096, 4096
          %620 = vsyncadd [#allocation18], %s619
          %s621 = sshll.u32 [#allocation19], 4
          %s622 = int_to_ptr.vmem [resolvable:$true] %s621
          %627 = dma.hbm_to_vmem [thread:$0]  %s10, 4096, %s622, [#allocation18], 256, 256, 16
        $region40: #{tpu_custom_call.1} parent=11 // pred_fallthru
          _
        // Predicated region
        $region41: #{tpu_custom_call.1} parent=11 // pred_check
          %p628 = pneg %p326
        $region42: #{tpu_custom_call.1} parent=11 // pred_check_branch
          %630 = sbr.rel (%p628) target = $region44
        $region43: #{tpu_custom_call.1} parent=11 // pred_region
          _
        $region44: #{tpu_custom_call.1} parent=11 // pred_fallthru
          _
        // Predicated region
        $region45: #{tpu_custom_call.1} parent=11 // pred_check
          %p631 = pneg %p347
        $region46: #{tpu_custom_call.1} parent=11 // pred_check_branch
          %633 = sbr.rel (%p631) target = $region48
        $region47: #{tpu_custom_call.1} parent=11 // pred_region
          %s635 = ssub.s32 4096, 4096
          %636 = vsyncadd [#allocation21], %s635
          %s637 = sshll.u32 [#allocation20], 4
          %s638 = int_to_ptr.vmem [resolvable:$true] %s637
          %643 = dma.hbm_to_vmem [thread:$0]  %s12, 4096, %s638, [#allocation21], 128, 128, 8
        $region48: #{tpu_custom_call.1} parent=11 // pred_fallthru
          _
        // Predicated region
        $region49: #{tpu_custom_call.1} parent=11 // pred_check
          %p644 = pneg %p368
        $region50: #{tpu_custom_call.1} parent=11 // pred_check_branch
          %646 = sbr.rel (%p644) target = $region52
        $region51: #{tpu_custom_call.1} parent=11 // pred_region
          _
        $region52: #{tpu_custom_call.1} parent=11 // pred_fallthru
          _
        // Predicated region
        $region53: #{tpu_custom_call.1} parent=11 // pred_check
          %p647 = pneg %p389
        $region54: #{tpu_custom_call.1} parent=11 // pred_check_branch
          %649 = sbr.rel (%p647) target = $region56
        $region55: #{tpu_custom_call.1} parent=11 // pred_region
          _
        $region56: #{tpu_custom_call.1} parent=11 // pred_fallthru
          _
        // Predicated region
        $region57: #{tpu_custom_call.1} parent=11 // pred_check
          %p650 = pneg %p410
        $region58: #{tpu_custom_call.1} parent=11 // pred_check_branch
          %652 = sbr.rel (%p650) target = $region60
        $region59: #{tpu_custom_call.1} parent=11 // pred_region
          _
        $region60: #{tpu_custom_call.1} parent=11 // pred_fallthru
          _
        // Predicated region
        $region61: #{tpu_custom_call.1} parent=11 // pred_check
          %p653 = pneg %p431
        $region62: #{tpu_custom_call.1} parent=11 // pred_check_branch
          %655 = sbr.rel (%p653) target = $region64
        $region63: #{tpu_custom_call.1} parent=11 // pred_region
          _
        $region64: #{tpu_custom_call.1} parent=11 // pred_fallthru
          _
        // Predicated region
        $region65: #{tpu_custom_call.1} parent=11 // pred_check
          %p656 = pneg %p452
        $region66: #{tpu_custom_call.1} parent=11 // pred_check_branch
          %658 = sbr.rel (%p656) target = $region68
        $region67: #{tpu_custom_call.1} parent=11 // pred_region
          _
        $region68: #{tpu_custom_call.1} parent=11 // pred_fallthru
          _
        // Predicated region
        $region69: #{tpu_custom_call.1} parent=11 // pred_check
          %p659 = pneg %p473
        $region70: #{tpu_custom_call.1} parent=11 // pred_check_branch
          %661 = sbr.rel (%p659) target = $region72
        $region71: #{tpu_custom_call.1} parent=11 // pred_region
          _
        $region72: #{tpu_custom_call.1} parent=11 // pred_fallthru
          _
        // Predicated region
        $region73: #{tpu_custom_call.1} parent=11 // pred_check
          %p662 = pneg %p494
        $region74: #{tpu_custom_call.1} parent=11 // pred_check_branch
          %664 = sbr.rel (%p662) target = $region76
        $region75: #{tpu_custom_call.1} parent=11 // pred_region
          _
        $region76: #{tpu_custom_call.1} parent=11 // pred_fallthru
          _
      $region12: #{tpu_custom_call.1} parent=5 // pred_fallthru
        _
      %p665 = scmp.lt.s32.totalorder %s42, 4
      // Predicated region
      $region77: #{tpu_custom_call.1} parent=5 // pred_check
        %p666 = pneg %p665
      $region78: #{tpu_custom_call.1} parent=5 // pred_check_branch
        %668 = sbr.rel (%p666) target = $region80
      $region79: #{tpu_custom_call.1} parent=5 // pred_region
        // Predicated region
        $region81: #{tpu_custom_call.1} parent=79 // pred_check
          %p669 = pneg %p74
        $region82: #{tpu_custom_call.1} parent=79 // pred_check_branch
          %671 = sbr.rel (%p669) target = $region84
        $region83: #{tpu_custom_call.1} parent=79 // pred_region
          %s672 = sand.u32 %s64, 1
          %s673 = scalar_lea.sflag [#allocation3], %s672
          %s674 = sand.u32 %s64, 1
          %s675 = smul.addr %s674, 16
          %s676 = scalar_lea.vmem [#allocation2], %s675
          %s678 = ssub.s32 256, 256
          %679 = vsyncadd %s673, %s678
          %s680 = smul.addr %s49, 2
          %s681 = smul.addr %s680, 128
          %s682 = scalar_lea.hbm %s0, %s681
          %s683 = sshll.u32 %s676, 4
          %s684 = int_to_ptr.vmem [resolvable:$true] %s683
          %689 = dma.hbm_to_vmem [thread:$0]  %s682, 256, %s684, %s673, 128, 128, 8
        $region84: #{tpu_custom_call.1} parent=79 // pred_fallthru
          _
        // Predicated region
        $region85: #{tpu_custom_call.1} parent=79 // pred_check
          %p690 = pneg %p100
        $region86: #{tpu_custom_call.1} parent=79 // pred_check_branch
          %692 = sbr.rel (%p690) target = $region88
        $region87: #{tpu_custom_call.1} parent=79 // pred_region
          %s693 = sand.u32 %s42, 1
          %s694 = scalar_lea.sflag [#allocation6], %s693
          %s695 = sand.u32 %s90, 1
          %s696 = smul.addr %s695, 16
          %s697 = scalar_lea.vmem [#allocation5], %s696
          %s699 = ssub.s32 256, 256
          %700 = vsyncadd %s694, %s699
          %s701 = smul.addr %s49, 2
          %s702 = smul.addr %s701, 128
          %s703 = scalar_lea.hbm %s1, %s702
          %s704 = sshll.u32 %s697, 4
          %s705 = int_to_ptr.vmem [resolvable:$true] %s704
          %710 = dma.hbm_to_vmem [thread:$0]  %s703, 256, %s705, %s694, 128, 128, 8
        $region88: #{tpu_custom_call.1} parent=79 // pred_fallthru
          _
        // Predicated region
        $region89: #{tpu_custom_call.1} parent=79 // pred_check
          %p711 = pneg %p126
        $region90: #{tpu_custom_call.1} parent=79 // pred_check_branch
          %713 = sbr.rel (%p711) target = $region92
        $region91: #{tpu_custom_call.1} parent=79 // pred_region
          %s714 = sand.u32 %s42, 1
          %s715 = scalar_lea.sflag [#allocation6], %s714
          %s716 = sand.u32 %s116, 1
          %s717 = smul.addr %s716, 8
          %s718 = scalar_lea.vmem [#allocation7], %s717
          %s720 = ssub.s32 128, 128
          %721 = vsyncadd %s715, %s720
          %s722 = smul.addr %s50, 128
          %s723 = scalar_lea.hbm %s2, %s722
          %s725 = sshll.u32 %s718, 4
          %s726 = int_to_ptr.vmem [resolvable:$true] %s725
          %728 = dma.hbm_to_vmem [thread:$0]  %s723, 128, %s726, %s715
        $region92: #{tpu_custom_call.1} parent=79 // pred_fallthru
          _
        // Predicated region
        $region93: #{tpu_custom_call.1} parent=79 // pred_check
          %p729 = pneg %p152
        $region94: #{tpu_custom_call.1} parent=79 // pred_check_branch
          %731 = sbr.rel (%p729) target = $region96
        $region95: #{tpu_custom_call.1} parent=79 // pred_region
          %s732 = sand.u32 %s42, 1
          %s733 = scalar_lea.sflag [#allocation9], %s732
          %s734 = sand.u32 %s142, 1
          %s735 = smul.addr %s734, 8
          %s736 = scalar_lea.vmem [#allocation8], %s735
          %s738 = ssub.s32 128, 128
          %739 = vsyncadd %s733, %s738
          %s740 = smul.addr %s50, 128
          %s741 = scalar_lea.hbm %s3, %s740
          %s743 = sshll.u32 %s736, 4
          %s744 = int_to_ptr.vmem [resolvable:$true] %s743
          %746 = dma.hbm_to_vmem [thread:$0]  %s741, 128, %s744, %s733
        $region96: #{tpu_custom_call.1} parent=79 // pred_fallthru
          _
      $region80: #{tpu_custom_call.1} parent=5 // pred_fallthru
        _
      %p747 = scmp.le.s32.totalorder 1, %s42
      %p748 = scmp.lt.s32.totalorder %s42, 5
      %p749 = pnand %p747, %p748
      %p750 = pneg %p749
      // Predicated region
      $region97: #{tpu_custom_call.1} parent=5 // pred_check
        _
      $region98: #{tpu_custom_call.1} parent=5 // pred_check_branch
        %752 = sbr.rel (%p749) target = $region100
      $region99: #{tpu_custom_call.1} parent=5 // pred_region
        %s753 = ssub.s32 %s42, 1
        %s754 = sand.u32 %s67, 1
        %s755 = scalar_lea.sflag [#allocation3], %s754
        %s756 = sand.u32 %s67, 1
        %s757 = smul.addr %s756, 16
        %s758 = scalar_lea.vmem [#allocation2], %s757
        // Predicated region
        $region101: #{tpu_custom_call.1} parent=99 // pred_check
          %p759 = pneg %p80
        $region102: #{tpu_custom_call.1} parent=99 // pred_check_branch
          %761 = sbr.rel (%p759) target = $region104
        $region103: #{tpu_custom_call.1} parent=99 // pred_region
          %762 = dma.done %s755, 256
        $region104: #{tpu_custom_call.1} parent=99 // pred_fallthru
          _
        %s763 = sand.u32 %s47, 1
        %s764 = scalar_lea.sflag [#allocation6], %s763
        %s765 = sand.u32 %s93, 1
        %s766 = smul.addr %s765, 16
        %s767 = scalar_lea.vmem [#allocation5], %s766
        // Predicated region
        $region105: #{tpu_custom_call.1} parent=99 // pred_check
          %p768 = pneg %p106
        $region106: #{tpu_custom_call.1} parent=99 // pred_check_branch
          %770 = sbr.rel (%p768) target = $region108
        $region107: #{tpu_custom_call.1} parent=99 // pred_region
          %771 = dma.done %s764, 256
        $region108: #{tpu_custom_call.1} parent=99 // pred_fallthru
          _
        %s772 = sand.u32 %s47, 1
        %s773 = scalar_lea.sflag [#allocation6], %s772
        %s774 = sand.u32 %s119, 1
        %s775 = smul.addr %s774, 8
        %s776 = scalar_lea.vmem [#allocation7], %s775
        // Predicated region
        $region109: #{tpu_custom_call.1} parent=99 // pred_check
          %p777 = pneg %p132
        $region110: #{tpu_custom_call.1} parent=99 // pred_check_branch
          %779 = sbr.rel (%p777) target = $region112
        $region111: #{tpu_custom_call.1} parent=99 // pred_region
          %780 = dma.done %s773, 128
        $region112: #{tpu_custom_call.1} parent=99 // pred_fallthru
          _
        %s781 = sand.u32 %s47, 1
        %s782 = scalar_lea.sflag [#allocation9], %s781
        %s783 = sand.u32 %s145, 1
        %s784 = smul.addr %s783, 8
        %s785 = scalar_lea.vmem [#allocation8], %s784
        // Predicated region
        $region113: #{tpu_custom_call.1} parent=99 // pred_check
          %p786 = pneg %p158
        $region114: #{tpu_custom_call.1} parent=99 // pred_check_branch
          %788 = sbr.rel (%p786) target = $region116
        $region115: #{tpu_custom_call.1} parent=99 // pred_region
          %789 = dma.done %s782, 128
        $region116: #{tpu_custom_call.1} parent=99 // pred_fallthru
          _
        // Predicated region
        $region117: #{tpu_custom_call.1} parent=99 // pred_check
          %p790 = pneg %p179
        $region118: #{tpu_custom_call.1} parent=99 // pred_check_branch
          %792 = sbr.rel (%p790) target = $region120
        $region119: #{tpu_custom_call.1} parent=99 // pred_region
          %793 = dma.done [#allocation9], 2048
        $region120: #{tpu_custom_call.1} parent=99 // pred_fallthru
          _
        // Predicated region
        $region121: #{tpu_custom_call.1} parent=99 // pred_check
          %p794 = pneg %p200
        $region122: #{tpu_custom_call.1} parent=99 // pred_check_branch
          %796 = sbr.rel (%p794) target = $region124
        $region123: #{tpu_custom_call.1} parent=99 // pred_region
          %797 = dma.done [#allocation12], 4096
        $region124: #{tpu_custom_call.1} parent=99 // pred_fallthru
          _
        // Predicated region
        $region125: #{tpu_custom_call.1} parent=99 // pred_check
          %p798 = pneg %p221
        $region126: #{tpu_custom_call.1} parent=99 // pred_check_branch
          %800 = sbr.rel (%p798) target = $region128
        $region127: #{tpu_custom_call.1} parent=99 // pred_region
          %801 = dma.done [#allocation12], 2048
        $region128: #{tpu_custom_call.1} parent=99 // pred_fallthru
          _
        // Predicated region
        $region129: #{tpu_custom_call.1} parent=99 // pred_check
          %p802 = pneg %p242
        $region130: #{tpu_custom_call.1} parent=99 // pred_check_branch
          %804 = sbr.rel (%p802) target = $region132
        $region131: #{tpu_custom_call.1} parent=99 // pred_region
          %805 = dma.done [#allocation15], 2048
        $region132: #{tpu_custom_call.1} parent=99 // pred_fallthru
          _
        // Predicated region
        $region133: #{tpu_custom_call.1} parent=99 // pred_check
          %p806 = pneg %p263
        $region134: #{tpu_custom_call.1} parent=99 // pred_check_branch
          %808 = sbr.rel (%p806) target = $region136
        $region135: #{tpu_custom_call.1} parent=99 // pred_region
          %809 = dma.done [#allocation15], 4096
        $region136: #{tpu_custom_call.1} parent=99 // pred_fallthru
          _
        // Predicated region
        $region137: #{tpu_custom_call.1} parent=99 // pred_check
          %p810 = pneg %p284
        $region138: #{tpu_custom_call.1} parent=99 // pred_check_branch
          %812 = sbr.rel (%p810) target = $region140
        $region139: #{tpu_custom_call.1} parent=99 // pred_region
          %813 = dma.done [#allocation18], 2048
        $region140: #{tpu_custom_call.1} parent=99 // pred_fallthru
          _
        // Predicated region
        $region141: #{tpu_custom_call.1} parent=99 // pred_check
          %p814 = pneg %p305
        $region142: #{tpu_custom_call.1} parent=99 // pred_check_branch
          %816 = sbr.rel (%p814) target = $region144
        $region143: #{tpu_custom_call.1} parent=99 // pred_region
          %817 = dma.done [#allocation18], 4096
        $region144: #{tpu_custom_call.1} parent=99 // pred_fallthru
          _
        // Predicated region
        $region145: #{tpu_custom_call.1} parent=99 // pred_check
          %p818 = pneg %p347
        $region146: #{tpu_custom_call.1} parent=99 // pred_check_branch
          %820 = sbr.rel (%p818) target = $region148
        $region147: #{tpu_custom_call.1} parent=99 // pred_region
          %821 = dma.done [#allocation21], 4096
        $region148: #{tpu_custom_call.1} parent=99 // pred_fallthru
          _
        %s822 = sand.u32 %s67, 1
        %s823 = scalar_lea.sflag [#allocation3], %s822
        %s824 = sand.u32 %s67, 1
        %s825 = smul.addr %s824, 16
        %s826 = scalar_lea.vmem [#allocation2], %s825
        %p827 = pneg %p80
        %p828 = pneg %p77
        %s829 = sand.u32 %s47, 1
        %s830 = scalar_lea.sflag [#allocation6], %s829
        %s831 = sand.u32 %s93, 1
        %s832 = smul.addr %s831, 16
        %s833 = scalar_lea.vmem [#allocation5], %s832
        %p834 = pneg %p106
        %p835 = pneg %p103
        %s836 = sand.u32 %s47, 1
        %s837 = scalar_lea.sflag [#allocation6], %s836
        %s838 = sand.u32 %s119, 1
        %s839 = smul.addr %s838, 8
        %s840 = scalar_lea.vmem [#allocation7], %s839
        %p841 = pneg %p132
        %p842 = pneg %p129
        %s843 = sand.u32 %s47, 1
        %s844 = scalar_lea.sflag [#allocation9], %s843
        %s845 = sand.u32 %s145, 1
        %s846 = smul.addr %s845, 8
        %s847 = scalar_lea.vmem [#allocation8], %s846
        %p848 = pneg %p158
        %p849 = pneg %p155
        %p850 = pneg %p179
        %p851 = pneg %p176
        %p852 = pneg %p200
        %p853 = pneg %p197
        %p854 = pneg %p221
        %p855 = pneg %p218
        %p856 = pneg %p242
        %p857 = pneg %p239
        %p858 = pneg %p263
        %p859 = pneg %p260
        %p860 = pneg %p284
        %p861 = pneg %p281
        %p862 = pneg %p305
        %p863 = pneg %p302
        %p864 = pneg %p326
        %p865 = pneg %p323
        %p866 = pneg %p347
        %p867 = pneg %p344
        %p868 = pneg %p368
        %p869 = pneg %p365
        %p870 = pneg %p389
        %p871 = pneg %p386
        %p872 = pneg %p410
        %p873 = pneg %p407
        %p874 = pneg %p431
        %p875 = pneg %p428
        %p876 = pneg %p452
        %p877 = pneg %p449
        %p878 = pneg %p473
        %p879 = pneg %p470
        %p880 = pneg %p494
        %p881 = pneg %p491
        %p882 = pneg %p522
        %p883 = pneg %p519
        %s884 = sand.u32 %s509, 1
        %s885 = scalar_lea.sflag [#allocation4], %s884
        %s886 = sand.u32 %s509, 1
        %s887 = smul.addr %s886, 8
        %s888 = scalar_lea.vmem [#allocation22], %s887
        %s889 = smul.u32 %s52, 8
        %v890 = vld [vmem:[%s758] sm:$0xff]
        %v891 = vld [vmem:[%s758 + $0x8] sm:$0xff]
        %s892 = scalar_lea.vmem %s758, %s889 [#allocation2]
        %v893 = vld [vmem:[%s892] sm:$0xff]
        %v894 = vld [vmem:[%s767] sm:$0xff]
        %v895 = vld [vmem:[%s767 + $0x8] sm:$0xff]
        %v896 = vld [vmem:[%s776] sm:$0xff]
        %vm897 = vcmp.eq.s32.totalorder %v896, 0
        %v898 = vld [vmem:[%s785] sm:$0xff]
        %vm899 = vcmp.eq.s32.totalorder %v898, 0
        %v900 = vld [vmem:[#allocation10] sm:$0xff]
        %v901 = vld [vmem:[#allocation10 + $0x8] sm:$0xff]
        %v902 = vld [vmem:[#allocation10 + $0x10] sm:$0xff]
        %v903 = vld [vmem:[#allocation10 + $0x18] sm:$0xff]
        %v904 = vld [vmem:[#allocation10 + $0x20] sm:$0xff]
        %v905 = vld [vmem:[#allocation10 + $0x28] sm:$0xff]
        %v906 = vld [vmem:[#allocation10 + $0x30] sm:$0xff]
        %v907 = vld [vmem:[#allocation10 + $0x38] sm:$0xff]
        %v908 = vld [vmem:[#allocation10 + $0x40] sm:$0xff]
        %v909 = vld [vmem:[#allocation10 + $0x48] sm:$0xff]
        %v910 = vld [vmem:[#allocation10 + $0x50] sm:$0xff]
        %v911 = vld [vmem:[#allocation10 + $0x58] sm:$0xff]
        %v912 = vld [vmem:[#allocation10 + $0x60] sm:$0xff]
        %v913 = vld [vmem:[#allocation10 + $0x68] sm:$0xff]
        %v914 = vld [vmem:[#allocation10 + $0x70] sm:$0xff]
        %v915 = vld [vmem:[#allocation10 + $0x78] sm:$0xff]
        %v916 = vld [vmem:[#allocation11] sm:$0xff]
        %v917 = vld [vmem:[#allocation11 + $0x8] sm:$0xff]
        %v918 = vld [vmem:[#allocation11 + $0x10] sm:$0xff]
        %v919 = vld [vmem:[#allocation11 + $0x18] sm:$0xff]
        %v920 = vld [vmem:[#allocation11 + $0x20] sm:$0xff]
        %v921 = vld [vmem:[#allocation11 + $0x28] sm:$0xff]
        %v922 = vld [vmem:[#allocation11 + $0x30] sm:$0xff]
        %v923 = vld [vmem:[#allocation11 + $0x38] sm:$0xff]
        %v924 = vld [vmem:[#allocation11 + $0x40] sm:$0xff]
        %v925 = vld [vmem:[#allocation11 + $0x48] sm:$0xff]
        %v926 = vld [vmem:[#allocation11 + $0x50] sm:$0xff]
        %v927 = vld [vmem:[#allocation11 + $0x58] sm:$0xff]
        %v928 = vld [vmem:[#allocation11 + $0x60] sm:$0xff]
        %v929 = vld [vmem:[#allocation11 + $0x68] sm:$0xff]
        %v930 = vld [vmem:[#allocation11 + $0x70] sm:$0xff]
        %v931 = vld [vmem:[#allocation11 + $0x78] sm:$0xff]
        %v932 = vld [vmem:[#allocation11 + $0x80] sm:$0xff]
        %v933 = vld [vmem:[#allocation11 + $0x88] sm:$0xff]
        %v934 = vld [vmem:[#allocation11 + $0x90] sm:$0xff]
        %v935 = vld [vmem:[#allocation11 + $0x98] sm:$0xff]
        %v936 = vld [vmem:[#allocation11 + $0xa0] sm:$0xff]
        %v937 = vld [vmem:[#allocation11 + $0xa8] sm:$0xff]
        %v938 = vld [vmem:[#allocation11 + $0xb0] sm:$0xff]
        %v939 = vld [vmem:[#allocation11 + $0xb8] sm:$0xff]
        %v940 = vld [vmem:[#allocation11 + $0xc0] sm:$0xff]
        %v941 = vld [vmem:[#allocation11 + $0xc8] sm:$0xff]
        %v942 = vld [vmem:[#allocation11 + $0xd0] sm:$0xff]
        %v943 = vld [vmem:[#allocation11 + $0xd8] sm:$0xff]
        %v944 = vld [vmem:[#allocation11 + $0xe0] sm:$0xff]
        %v945 = vld [vmem:[#allocation11 + $0xe8] sm:$0xff]
        %v946 = vld [vmem:[#allocation11 + $0xf0] sm:$0xff]
        %v947 = vld [vmem:[#allocation11 + $0xf8] sm:$0xff]
        %v948 = vld [vmem:[#allocation13] sm:$0xff]
        %v949 = vld [vmem:[#allocation13 + $0x8] sm:$0xff]
        %v950 = vld [vmem:[#allocation13 + $0x10] sm:$0xff]
        %v951 = vld [vmem:[#allocation13 + $0x18] sm:$0xff]
        %v952 = vld [vmem:[#allocation13 + $0x20] sm:$0xff]
        %v953 = vld [vmem:[#allocation13 + $0x28] sm:$0xff]
        %v954 = vld [vmem:[#allocation13 + $0x30] sm:$0xff]
        %v955 = vld [vmem:[#allocation13 + $0x38] sm:$0xff]
        %v956 = vld [vmem:[#allocation13 + $0x40] sm:$0xff]
        %v957 = vld [vmem:[#allocation13 + $0x48] sm:$0xff]
        %v958 = vld [vmem:[#allocation13 + $0x50] sm:$0xff]
        %v959 = vld [vmem:[#allocation13 + $0x58] sm:$0xff]
        %v960 = vld [vmem:[#allocation13 + $0x60] sm:$0xff]
        %v961 = vld [vmem:[#allocation13 + $0x68] sm:$0xff]
        %v962 = vld [vmem:[#allocation13 + $0x70] sm:$0xff]
        %v963 = vld [vmem:[#allocation13 + $0x78] sm:$0xff]
        %964 = vmatprep.subr.mxu0 0.0
        %965 = vmatpush1.msra.mxu0 %v915
        %966 = vmatprep.subr.mxu0 0.0
        %967 = vmatpush1.msra.mxu0 %v914
        %968 = vmatprep.subr.mxu0 0.0
        %969 = vmatpush1.msra.mxu0 %v913
        %970 = vmatprep.subr.mxu0 0.0
        %971 = vmatpush1.msra.mxu0 %v912
        %972 = vmatprep.subr.mxu0 0.0
        %973 = vmatpush1.msra.mxu0 %v911
        %974 = vmatprep.subr.mxu0 0.0
        %975 = vmatpush1.msra.mxu0 %v910
        %976 = vmatprep.subr.mxu0 0.0
        %977 = vmatpush1.msra.mxu0 %v909
        %978 = vmatprep.subr.mxu0 0.0
        %979 = vmatpush1.msra.mxu0 %v908
        %980 = vmatprep.subr.mxu0 0.0
        %981 = vmatpush1.msra.mxu0 %v907
        %982 = vmatprep.subr.mxu0 0.0
        %983 = vmatpush1.msra.mxu0 %v906
        %984 = vmatprep.subr.mxu0 0.0
        %985 = vmatpush1.msra.mxu0 %v905
        %986 = vmatprep.subr.mxu0 0.0
        %987 = vmatpush1.msra.mxu0 %v904
        %988 = vmatprep.subr.mxu0 0.0
        %989 = vmatpush1.msra.mxu0 %v903
        %990 = vmatprep.subr.mxu0 0.0
        %991 = vmatpush1.msra.mxu0 %v902
        %992 = vmatprep.subr.mxu0 0.0
        %993 = vmatpush1.msra.mxu0 %v901
        %994 = vmatprep.subr.mxu0 0.0
        %995 = vmatpush1.msra.mxu0 %v900
        %996 = vmatprep.subr.mxu0 0.0
        %997 = vmatpush2.msra.mxu0 0.0
        %998 = vmatprep.subr.mxu0 0.0
        %999 = vmatpush2.msra.mxu0 0.0
        %1000 = vmatprep.subr.mxu0 0.0
        %1001 = vmatpush2.msra.mxu0 0.0
        %1002 = vmatprep.subr.mxu0 0.0
        %1003 = vmatpush2.msra.mxu0 0.0
        %1004 = vmatprep.subr.mxu0 0.0
        %1005 = vmatpush2.msra.mxu0 0.0
        %1006 = vmatprep.subr.mxu0 0.0
        %1007 = vmatpush2.msra.mxu0 0.0
        %1008 = vmatprep.subr.mxu0 0.0
        %1009 = vmatpush2.msra.mxu0 0.0
        %1010 = vmatprep.subr.mxu0 0.0
        %1011 = vmatpush2.msra.mxu0 0.0
        %1012 = vmatprep.subr.mxu0 0.0
        %1013 = vmatpush2.msra.mxu0 0.0
        %1014 = vmatprep.subr.mxu0 0.0
        %1015 = vmatpush2.msra.mxu0 0.0
        %1016 = vmatprep.subr.mxu0 0.0
        %1017 = vmatpush2.msra.mxu0 0.0
        %1018 = vmatprep.subr.mxu0 0.0
        %1019 = vmatpush2.msra.mxu0 0.0
        %1020 = vmatprep.subr.mxu0 0.0
        %1021 = vmatpush2.msra.mxu0 0.0
        %1022 = vmatprep.subr.mxu0 0.0
        %1023 = vmatpush2.msra.mxu0 0.0
        %1024 = vmatprep.subr.mxu0 0.0
        %1025 = vmatpush2.msra.mxu0 0.0
        %1026 = vmatprep.subr.mxu0 0.0
        %1027 = vmatpush2.msra.mxu0 0.0
        %1028 = vmatprep.mubr.f32.mxu0 0.0
        %1029 = vmatmul.mubr.f32.gmra.mxu0 %v893
        %v1030 = vpop.f32.mrf.mxu0
        %v1031 = vadd.f32 0.0, %v1030
        %v1032 = vpop.f32.mrf.mxu0
        %1033 = vdwg.mxu0
        %1034 = vmatprep.subr.mxu0 %v947
        %1035 = vmatpush1.msra.mxu0 %v946
        %1036 = vmatprep.subr.mxu0 %v945
        %1037 = vmatpush1.msra.mxu0 %v944
        %1038 = vmatprep.subr.mxu0 %v943
        %1039 = vmatpush1.msra.mxu0 %v942
        %1040 = vmatprep.subr.mxu0 %v941
        %1041 = vmatpush1.msra.mxu0 %v940
        %1042 = vmatprep.subr.mxu0 %v939
        %1043 = vmatpush1.msra.mxu0 %v938
        %1044 = vmatprep.subr.mxu0 %v937
        %1045 = vmatpush1.msra.mxu0 %v936
        %1046 = vmatprep.subr.mxu0 %v935
        %1047 = vmatpush1.msra.mxu0 %v934
        %1048 = vmatprep.subr.mxu0 %v933
        %1049 = vmatpush1.msra.mxu0 %v932
        %1050 = vmatprep.subr.mxu0 %v931
        %1051 = vmatpush1.msra.mxu0 %v930
        %1052 = vmatprep.subr.mxu0 %v929
        %1053 = vmatpush1.msra.mxu0 %v928
        %1054 = vmatprep.subr.mxu0 %v927
        %1055 = vmatpush1.msra.mxu0 %v926
        %1056 = vmatprep.subr.mxu0 %v925
        %1057 = vmatpush1.msra.mxu0 %v924
        %1058 = vmatprep.subr.mxu0 %v923
        %1059 = vmatpush1.msra.mxu0 %v922
        %1060 = vmatprep.subr.mxu0 %v921
        %1061 = vmatpush1.msra.mxu0 %v920
        %1062 = vmatprep.subr.mxu0 %v919
        %1063 = vmatpush1.msra.mxu0 %v918
        %1064 = vmatprep.subr.mxu0 %v917
        %1065 = vmatpush1.msra.mxu0 %v916
        %1066 = vmatprep.subr.mxu0 0.0
        %1067 = vmatpush2.msra.mxu0 0.0
        %1068 = vmatprep.subr.mxu0 0.0
        %1069 = vmatpush2.msra.mxu0 0.0
        %1070 = vmatprep.subr.mxu0 0.0
        %1071 = vmatpush2.msra.mxu0 0.0
        %1072 = vmatprep.subr.mxu0 0.0
        %1073 = vmatpush2.msra.mxu0 0.0
        %1074 = vmatprep.subr.mxu0 0.0
        %1075 = vmatpush2.msra.mxu0 0.0
        %1076 = vmatprep.subr.mxu0 0.0
        %1077 = vmatpush2.msra.mxu0 0.0
        %1078 = vmatprep.subr.mxu0 0.0
        %1079 = vmatpush2.msra.mxu0 0.0
        %1080 = vmatprep.subr.mxu0 0.0
        %1081 = vmatpush2.msra.mxu0 0.0
        %1082 = vmatprep.subr.mxu0 0.0
        %1083 = vmatpush2.msra.mxu0 0.0
        %1084 = vmatprep.subr.mxu0 0.0
        %1085 = vmatpush2.msra.mxu0 0.0
        %1086 = vmatprep.subr.mxu0 0.0
        %1087 = vmatpush2.msra.mxu0 0.0
        %1088 = vmatprep.subr.mxu0 0.0
        %1089 = vmatpush2.msra.mxu0 0.0
        %1090 = vmatprep.subr.mxu0 0.0
        %1091 = vmatpush2.msra.mxu0 0.0
        %1092 = vmatprep.subr.mxu0 0.0
        %1093 = vmatpush2.msra.mxu0 0.0
        %1094 = vmatprep.subr.mxu0 0.0
        %1095 = vmatpush2.msra.mxu0 0.0
        %1096 = vmatprep.subr.mxu0 0.0
        %1097 = vmatpush2.msra.mxu0 0.0
        %1098 = vmatprep.mubr.f32.mxu0 0.0
        %1099 = vmatmul.mubr.f32.gmra.mxu0 %v890
        %v1100 = vpop.f32.mrf.mxu0
        %v1101 = vadd.f32 0.0, %v1100
        %v1102 = vpop.f32.mrf.mxu0
        %v1103 = vadd.f32 0.0, %v1102
        %1104 = vmatprep.mubr.f32.mxu0 0.0
        %1105 = vmatmul.mubr.f32.gmra.mxu0 %v891
        %v1106 = vpop.f32.mrf.mxu0
        %v1107 = vadd.f32 0.0, %v1106
        %v1108 = vpop.f32.mrf.mxu0
        %v1109 = vadd.f32 0.0, %v1108
        %1110 = vdwg.mxu0
        %v1111 = vmul.f32 %v1031, 0.17677669
        %1113 = vrot.lane.b32.xlu0 %v1111, 96
        %v1114 = vpop.permute.xlu0 %1113
        %1115 = vrot.lane.b32.xlu0 %v1111, 64
        %v1116 = vpop.permute.xlu0 %1115
        %1117 = vrot.lane.b32.xlu0 %v1111, 32
        %v1118 = vpop.permute.xlu0 %1117
        %1121 = vrot.lane.b32.xlu0 %v1101, 96
        %v1122 = vpop.permute.xlu0 %1121
        %1123 = vrot.lane.b32.xlu0 %v1107, 96
        %v1124 = vpop.permute.xlu0 %1123
        %1125 = vrot.lane.b32.xlu0 %v1101, 64
        %v1126 = vpop.permute.xlu0 %1125
        %1127 = vrot.lane.b32.xlu0 %v1107, 64
        %v1128 = vpop.permute.xlu0 %1127
        %1129 = vrot.lane.b32.xlu0 %v1101, 32
        %v1130 = vpop.permute.xlu0 %1129
        %1131 = vrot.lane.b32.xlu0 %v1107, 32
        %v1132 = vpop.permute.xlu0 %1131
        %1135 = vrot.lane.b32.xlu0 %v1103, 96
        %v1136 = vpop.permute.xlu0 %1135
        %1137 = vrot.lane.b32.xlu0 %v1109, 96
        %v1138 = vpop.permute.xlu0 %1137
        %1141 = vrot.lane.b32.xlu0 %v1103, 64
        %v1142 = vpop.permute.xlu0 %1141
        %1143 = vrot.lane.b32.xlu0 %v1109, 64
        %v1144 = vpop.permute.xlu0 %1143
        %1147 = vrot.lane.b32.xlu0 %v1103, 32
        %v1148 = vpop.permute.xlu0 %1147
        %1149 = vrot.lane.b32.xlu0 %v1109, 32
        %v1150 = vpop.permute.xlu0 %1149
        %vm1153 = vcmask 261120
        %v1154 = vsel %vm1153, %v1111, 0
        %v1156 = vsel %vm1153, %v1101, 0
        %v1158 = vsel %vm1153, %v1107, 0
        %1160 = vmatprep.subr.mxu0 0.0
        %1161 = vmatpush1.xpose.msra.mxu0 0.0
        %1162 = vmatprep.subr.mxu0 0.0
        %1163 = vmatpush1.xpose.msra.mxu0 0.0
        %1164 = vmatprep.subr.mxu0 0.0
        %1165 = vmatpush1.xpose.msra.mxu0 0.0
        %1166 = vmatprep.subr.mxu0 0.0
        %1167 = vmatpush1.xpose.msra.mxu0 0.0
        %1168 = vmatprep.subr.mxu0 0.0
        %1169 = vmatpush1.xpose.msra.mxu0 0.0
        %1170 = vmatprep.subr.mxu0 0.0
        %1171 = vmatpush1.xpose.msra.mxu0 0.0
        %1172 = vmatprep.subr.mxu0 0.0
        %1173 = vmatpush1.xpose.msra.mxu0 0.0
        %1174 = vmatprep.subr.mxu0 0.0
        %1175 = vmatpush1.xpose.msra.mxu0 0.0
        %1176 = vmatprep.subr.mxu0 0.0
        %1177 = vmatpush1.xpose.msra.mxu0 0.0
        %1178 = vmatprep.subr.mxu0 0.0
        %1179 = vmatpush1.xpose.msra.mxu0 0.0
        %1180 = vmatprep.subr.mxu0 0.0
        %1181 = vmatpush1.xpose.msra.mxu0 0.0
        %1182 = vmatprep.subr.mxu0 0.0
        %1183 = vmatpush1.xpose.msra.mxu0 0.0
        %1184 = vmatprep.subr.mxu0 0.0
        %1185 = vmatpush1.xpose.msra.mxu0 0.0
        %1186 = vmatprep.subr.mxu0 0.0
        %1187 = vmatpush1.xpose.msra.mxu0 0.0
        %1188 = vmatprep.subr.mxu0 0.0
        %1189 = vmatpush1.xpose.msra.mxu0 %v1158
        %1190 = vmatprep.subr.mxu0 0.0
        %1191 = vmatpush1.xpose.msra.mxu0 %v1156
        %1192 = vmatprep.subr.mxu0 0.0
        %1193 = vmatpush2.xpose.msra.mxu0 0.0
        %1194 = vmatprep.subr.mxu0 0.0
        %1195 = vmatpush2.xpose.msra.mxu0 0.0
        %1196 = vmatprep.subr.mxu0 0.0
        %1197 = vmatpush2.xpose.msra.mxu0 0.0
        %1198 = vmatprep.subr.mxu0 0.0
        %1199 = vmatpush2.xpose.msra.mxu0 0.0
        %1200 = vmatprep.subr.mxu0 0.0
        %1201 = vmatpush2.xpose.msra.mxu0 0.0
        %1202 = vmatprep.subr.mxu0 0.0
        %1203 = vmatpush2.xpose.msra.mxu0 0.0
        %1204 = vmatprep.subr.mxu0 0.0
        %1205 = vmatpush2.xpose.msra.mxu0 0.0
        %1206 = vmatprep.subr.mxu0 0.0
        %1207 = vmatpush2.xpose.msra.mxu0 0.0
        %1208 = vmatprep.subr.mxu0 0.0
        %1209 = vmatpush2.xpose.msra.mxu0 0.0
        %1210 = vmatprep.subr.mxu0 0.0
        %1211 = vmatpush2.xpose.msra.mxu0 0.0
        %1212 = vmatprep.subr.mxu0 0.0
        %1213 = vmatpush2.xpose.msra.mxu0 0.0
        %1214 = vmatprep.subr.mxu0 0.0
        %1215 = vmatpush2.xpose.msra.mxu0 0.0
        %1216 = vmatprep.subr.mxu0 0.0
        %1217 = vmatpush2.xpose.msra.mxu0 0.0
        %1218 = vmatprep.subr.mxu0 0.0
        %1219 = vmatpush2.xpose.msra.mxu0 0.0
        %1220 = vmatprep.subr.mxu0 0.0
        %1221 = vmatpush2.xpose.msra.mxu0 0.0
        %1222 = vmatprep.subr.mxu0 0.0
        %1223 = vmatpush2.xpose.msra.mxu0 0.0
        %1224 = vmatprep.mubr.f32.mxu0 0.0
        %1225 = vmatmul.mubr.f32.gmra.mxu0 %v1154
        %v1226 = vpop.f32.mrf.mxu0
        %v1227 = vadd.f32 0.0, %v1226
        %v1228 = vpop.f32.mrf.mxu0
        %1229 = vdwg.mxu0
        %v1230 = vsel %vm1153, %v1114, 0
        %v1232 = vsel %vm1153, %v1122, 0
        %v1234 = vsel %vm1153, %v1124, 0
        %1236 = vmatprep.subr.mxu0 0.0
        %1237 = vmatpush1.xpose.msra.mxu0 0.0
        %1238 = vmatprep.subr.mxu0 0.0
        %1239 = vmatpush1.xpose.msra.mxu0 0.0
        %1240 = vmatprep.subr.mxu0 0.0
        %1241 = vmatpush1.xpose.msra.mxu0 0.0
        %1242 = vmatprep.subr.mxu0 0.0
        %1243 = vmatpush1.xpose.msra.mxu0 0.0
        %1244 = vmatprep.subr.mxu0 0.0
        %1245 = vmatpush1.xpose.msra.mxu0 0.0
        %1246 = vmatprep.subr.mxu0 0.0
        %1247 = vmatpush1.xpose.msra.mxu0 0.0
        %1248 = vmatprep.subr.mxu0 0.0
        %1249 = vmatpush1.xpose.msra.mxu0 0.0
        %1250 = vmatprep.subr.mxu0 0.0
        %1251 = vmatpush1.xpose.msra.mxu0 0.0
        %1252 = vmatprep.subr.mxu0 0.0
        %1253 = vmatpush1.xpose.msra.mxu0 0.0
        %1254 = vmatprep.subr.mxu0 0.0
        %1255 = vmatpush1.xpose.msra.mxu0 0.0
        %1256 = vmatprep.subr.mxu0 0.0
        %1257 = vmatpush1.xpose.msra.mxu0 0.0
        %1258 = vmatprep.subr.mxu0 0.0
        %1259 = vmatpush1.xpose.msra.mxu0 0.0
        %1260 = vmatprep.subr.mxu0 0.0
        %1261 = vmatpush1.xpose.msra.mxu0 0.0
        %1262 = vmatprep.subr.mxu0 0.0
        %1263 = vmatpush1.xpose.msra.mxu0 0.0
        %1264 = vmatprep.subr.mxu0 0.0
        %1265 = vmatpush1.xpose.msra.mxu0 %v1234
        %1266 = vmatprep.subr.mxu0 0.0
        %1267 = vmatpush1.xpose.msra.mxu0 %v1232
        %1268 = vmatprep.subr.mxu0 0.0
        %1269 = vmatpush2.xpose.msra.mxu0 0.0
        %1270 = vmatprep.subr.mxu0 0.0
        %1271 = vmatpush2.xpose.msra.mxu0 0.0
        %1272 = vmatprep.subr.mxu0 0.0
        %1273 = vmatpush2.xpose.msra.mxu0 0.0
        %1274 = vmatprep.subr.mxu0 0.0
        %1275 = vmatpush2.xpose.msra.mxu0 0.0
        %1276 = vmatprep.subr.mxu0 0.0
        %1277 = vmatpush2.xpose.msra.mxu0 0.0
        %1278 = vmatprep.subr.mxu0 0.0
        %1279 = vmatpush2.xpose.msra.mxu0 0.0
        %1280 = vmatprep.subr.mxu0 0.0
        %1281 = vmatpush2.xpose.msra.mxu0 0.0
        %1282 = vmatprep.subr.mxu0 0.0
        %1283 = vmatpush2.xpose.msra.mxu0 0.0
        %1284 = vmatprep.subr.mxu0 0.0
        %1285 = vmatpush2.xpose.msra.mxu0 0.0
        %1286 = vmatprep.subr.mxu0 0.0
        %1287 = vmatpush2.xpose.msra.mxu0 0.0
        %1288 = vmatprep.subr.mxu0 0.0
        %1289 = vmatpush2.xpose.msra.mxu0 0.0
        %1290 = vmatprep.subr.mxu0 0.0
        %1291 = vmatpush2.xpose.msra.mxu0 0.0
        %1292 = vmatprep.subr.mxu0 0.0
        %1293 = vmatpush2.xpose.msra.mxu0 0.0
        %1294 = vmatprep.subr.mxu0 0.0
        %1295 = vmatpush2.xpose.msra.mxu0 0.0
        %1296 = vmatprep.subr.mxu0 0.0
        %1297 = vmatpush2.xpose.msra.mxu0 0.0
        %1298 = vmatprep.subr.mxu0 0.0
        %1299 = vmatpush2.xpose.msra.mxu0 0.0
        %1300 = vmatprep.mubr.f32.mxu0 0.0
        %1301 = vmatmul.mubr.f32.gmra.mxu0 %v1230
        %v1302 = vpop.f32.mrf.mxu0
        %v1303 = vadd.f32 0.0, %v1302
        %v1304 = vpop.f32.mrf.mxu0
        %1305 = vdwg.mxu0
        %v1306 = vsel %vm1153, %v1116, 0
        %v1308 = vsel %vm1153, %v1126, 0
        %v1310 = vsel %vm1153, %v1128, 0
        %1312 = vmatprep.subr.mxu0 0.0
        %1313 = vmatpush1.xpose.msra.mxu0 0.0
        %1314 = vmatprep.subr.mxu0 0.0
        %1315 = vmatpush1.xpose.msra.mxu0 0.0
        %1316 = vmatprep.subr.mxu0 0.0
        %1317 = vmatpush1.xpose.msra.mxu0 0.0
        %1318 = vmatprep.subr.mxu0 0.0
        %1319 = vmatpush1.xpose.msra.mxu0 0.0
        %1320 = vmatprep.subr.mxu0 0.0
        %1321 = vmatpush1.xpose.msra.mxu0 0.0
        %1322 = vmatprep.subr.mxu0 0.0
        %1323 = vmatpush1.xpose.msra.mxu0 0.0
        %1324 = vmatprep.subr.mxu0 0.0
        %1325 = vmatpush1.xpose.msra.mxu0 0.0
        %1326 = vmatprep.subr.mxu0 0.0
        %1327 = vmatpush1.xpose.msra.mxu0 0.0
        %1328 = vmatprep.subr.mxu0 0.0
        %1329 = vmatpush1.xpose.msra.mxu0 0.0
        %1330 = vmatprep.subr.mxu0 0.0
        %1331 = vmatpush1.xpose.msra.mxu0 0.0
        %1332 = vmatprep.subr.mxu0 0.0
        %1333 = vmatpush1.xpose.msra.mxu0 0.0
        %1334 = vmatprep.subr.mxu0 0.0
        %1335 = vmatpush1.xpose.msra.mxu0 0.0
        %1336 = vmatprep.subr.mxu0 0.0
        %1337 = vmatpush1.xpose.msra.mxu0 0.0
        %1338 = vmatprep.subr.mxu0 0.0
        %1339 = vmatpush1.xpose.msra.mxu0 0.0
        %1340 = vmatprep.subr.mxu0 0.0
        %1341 = vmatpush1.xpose.msra.mxu0 %v1310
        %1342 = vmatprep.subr.mxu0 0.0
        %1343 = vmatpush1.xpose.msra.mxu0 %v1308
        %1344 = vmatprep.subr.mxu0 0.0
        %1345 = vmatpush2.xpose.msra.mxu0 0.0
        %1346 = vmatprep.subr.mxu0 0.0
        %1347 = vmatpush2.xpose.msra.mxu0 0.0
        %1348 = vmatprep.subr.mxu0 0.0
        %1349 = vmatpush2.xpose.msra.mxu0 0.0
        %1350 = vmatprep.subr.mxu0 0.0
        %1351 = vmatpush2.xpose.msra.mxu0 0.0
        %1352 = vmatprep.subr.mxu0 0.0
        %1353 = vmatpush2.xpose.msra.mxu0 0.0
        %1354 = vmatprep.subr.mxu0 0.0
        %1355 = vmatpush2.xpose.msra.mxu0 0.0
        %1356 = vmatprep.subr.mxu0 0.0
        %1357 = vmatpush2.xpose.msra.mxu0 0.0
        %1358 = vmatprep.subr.mxu0 0.0
        %1359 = vmatpush2.xpose.msra.mxu0 0.0
        %1360 = vmatprep.subr.mxu0 0.0
        %1361 = vmatpush2.xpose.msra.mxu0 0.0
        %1362 = vmatprep.subr.mxu0 0.0
        %1363 = vmatpush2.xpose.msra.mxu0 0.0
        %1364 = vmatprep.subr.mxu0 0.0
        %1365 = vmatpush2.xpose.msra.mxu0 0.0
        %1366 = vmatprep.subr.mxu0 0.0
        %1367 = vmatpush2.xpose.msra.mxu0 0.0
        %1368 = vmatprep.subr.mxu0 0.0
        %1369 = vmatpush2.xpose.msra.mxu0 0.0
        %1370 = vmatprep.subr.mxu0 0.0
        %1371 = vmatpush2.xpose.msra.mxu0 0.0
        %1372 = vmatprep.subr.mxu0 0.0
        %1373 = vmatpush2.xpose.msra.mxu0 0.0
        %1374 = vmatprep.subr.mxu0 0.0
        %1375 = vmatpush2.xpose.msra.mxu0 0.0
        %1376 = vmatprep.mubr.f32.mxu0 0.0
        %1377 = vmatmul.mubr.f32.gmra.mxu0 %v1306
        %v1378 = vpop.f32.mrf.mxu0
        %v1379 = vadd.f32 0.0, %v1378
        %v1380 = vpop.f32.mrf.mxu0
        %1381 = vdwg.mxu0
        %v1382 = vsel %vm1153, %v1118, 0
        %v1384 = vsel %vm1153, %v1130, 0
        %v1386 = vsel %vm1153, %v1132, 0
        %1388 = vmatprep.subr.mxu0 0.0
        %1389 = vmatpush1.xpose.msra.mxu0 0.0
        %1390 = vmatprep.subr.mxu0 0.0
        %1391 = vmatpush1.xpose.msra.mxu0 0.0
        %1392 = vmatprep.subr.mxu0 0.0
        %1393 = vmatpush1.xpose.msra.mxu0 0.0
        %1394 = vmatprep.subr.mxu0 0.0
        %1395 = vmatpush1.xpose.msra.mxu0 0.0
        %1396 = vmatprep.subr.mxu0 0.0
        %1397 = vmatpush1.xpose.msra.mxu0 0.0
        %1398 = vmatprep.subr.mxu0 0.0
        %1399 = vmatpush1.xpose.msra.mxu0 0.0
        %1400 = vmatprep.subr.mxu0 0.0
        %1401 = vmatpush1.xpose.msra.mxu0 0.0
        %1402 = vmatprep.subr.mxu0 0.0
        %1403 = vmatpush1.xpose.msra.mxu0 0.0
        %1404 = vmatprep.subr.mxu0 0.0
        %1405 = vmatpush1.xpose.msra.mxu0 0.0
        %1406 = vmatprep.subr.mxu0 0.0
        %1407 = vmatpush1.xpose.msra.mxu0 0.0
        %1408 = vmatprep.subr.mxu0 0.0
        %1409 = vmatpush1.xpose.msra.mxu0 0.0
        %1410 = vmatprep.subr.mxu0 0.0
        %1411 = vmatpush1.xpose.msra.mxu0 0.0
        %1412 = vmatprep.subr.mxu0 0.0
        %1413 = vmatpush1.xpose.msra.mxu0 0.0
        %1414 = vmatprep.subr.mxu0 0.0
        %1415 = vmatpush1.xpose.msra.mxu0 0.0
        %1416 = vmatprep.subr.mxu0 0.0
        %1417 = vmatpush1.xpose.msra.mxu0 %v1386
        %1418 = vmatprep.subr.mxu0 0.0
        %1419 = vmatpush1.xpose.msra.mxu0 %v1384
        %1420 = vmatprep.subr.mxu0 0.0
        %1421 = vmatpush2.xpose.msra.mxu0 0.0
        %1422 = vmatprep.subr.mxu0 0.0
        %1423 = vmatpush2.xpose.msra.mxu0 0.0
        %1424 = vmatprep.subr.mxu0 0.0
        %1425 = vmatpush2.xpose.msra.mxu0 0.0
        %1426 = vmatprep.subr.mxu0 0.0
        %1427 = vmatpush2.xpose.msra.mxu0 0.0
        %1428 = vmatprep.subr.mxu0 0.0
        %1429 = vmatpush2.xpose.msra.mxu0 0.0
        %1430 = vmatprep.subr.mxu0 0.0
        %1431 = vmatpush2.xpose.msra.mxu0 0.0
        %1432 = vmatprep.subr.mxu0 0.0
        %1433 = vmatpush2.xpose.msra.mxu0 0.0
        %1434 = vmatprep.subr.mxu0 0.0
        %1435 = vmatpush2.xpose.msra.mxu0 0.0
        %1436 = vmatprep.subr.mxu0 0.0
        %1437 = vmatpush2.xpose.msra.mxu0 0.0
        %1438 = vmatprep.subr.mxu0 0.0
        %1439 = vmatpush2.xpose.msra.mxu0 0.0
        %1440 = vmatprep.subr.mxu0 0.0
        %1441 = vmatpush2.xpose.msra.mxu0 0.0
        %1442 = vmatprep.subr.mxu0 0.0
        %1443 = vmatpush2.xpose.msra.mxu0 0.0
        %1444 = vmatprep.subr.mxu0 0.0
        %1445 = vmatpush2.xpose.msra.mxu0 0.0
        %1446 = vmatprep.subr.mxu0 0.0
        %1447 = vmatpush2.xpose.msra.mxu0 0.0
        %1448 = vmatprep.subr.mxu0 0.0
        %1449 = vmatpush2.xpose.msra.mxu0 0.0
        %1450 = vmatprep.subr.mxu0 0.0
        %1451 = vmatpush2.xpose.msra.mxu0 0.0
        %1452 = vmatprep.mubr.f32.mxu0 0.0
        %1453 = vmatmul.mubr.f32.gmra.mxu0 %v1382
        %v1454 = vpop.f32.mrf.mxu0
        %v1455 = vadd.f32 0.0, %v1454
        %v1456 = vpop.f32.mrf.mxu0
        %1457 = vdwg.mxu0
        %v1458 = vsel %vm897, 1, 0
        %vm1459 = vcmp.eq.s32.totalorder %v1458, 1
        %v1460 = vsel %vm1459, -1e+09, %v1227
        %v1461 = vsel %vm1459, -1e+09, %v1303
        %v1462 = vsel %vm1459, -1e+09, %v1379
        %v1463 = vsel %vm1459, -1e+09, %v1455
        %vm1464 = vcmask 130048
        %v1465 = vsel %vm1464, %v1460, -inf
        %1466 = vmax.xlane.f32.xlu0 %v1465
        %v1467 = vpop.xlane.xlu0 %1466
        %v1468 = vsel %vm1464, %v1461, -inf
        %1469 = vmax.xlane.f32.xlu0 %v1468
        %v1470 = vpop.xlane.xlu0 %1469
        %v1471 = vsel %vm1464, %v1462, -inf
        %1472 = vmax.xlane.f32.xlu0 %v1471
        %v1473 = vpop.xlane.xlu0 %1472
        %v1474 = vsel %vm1464, %v1463, -inf
        %1475 = vmax.xlane.f32.xlu0 %v1474
        %v1476 = vpop.xlane.xlu0 %1475
        %v1477 = vsub.f32 %v1460, %v1467
        %v1478 = vsub.f32 %v1461, %v1470
        %v1479 = vsub.f32 %v1462, %v1473
        %v1480 = vsub.f32 %v1463, %v1476
        %v1481 = vmul.f32 %v1477, 1.442695
        %v1482 = vpow.pop %v1481
        %v1483 = vmul.f32 %v1478, 1.442695
        %v1484 = vpow.pop %v1483
        %v1485 = vmul.f32 %v1479, 1.442695
        %v1486 = vpow.pop %v1485
        %v1487 = vmul.f32 %v1480, 1.442695
        %v1488 = vpow.pop %v1487
        %v1489 = vsel %vm1464, %v1482, 0.0
        %1490 = vadd.xlane.f32.xlu0 %v1489
        %v1491 = vpop.xlane.xlu0 %1490
        %v1492 = vsel %vm1464, %v1484, 0.0
        %1493 = vadd.xlane.f32.xlu0 %v1492
        %v1494 = vpop.xlane.xlu0 %1493
        %v1495 = vsel %vm1464, %v1486, 0.0
        %1496 = vadd.xlane.f32.xlu0 %v1495
        %v1497 = vpop.xlane.xlu0 %1496
        %v1498 = vsel %vm1464, %v1488, 0.0
        %1499 = vadd.xlane.f32.xlu0 %v1498
        %v1500 = vpop.xlane.xlu0 %1499
        %v1501 = vrcp.pop %v1491
        %v1502 = vrcp.pop %v1494
        %v1503 = vrcp.pop %v1497
        %v1504 = vrcp.pop %v1500
        %v1505 = vmul.f32 %v1482, %v1501
        %v1506 = vmul.f32 %v1484, %v1502
        %v1507 = vmul.f32 %v1486, %v1503
        %v1508 = vmul.f32 %v1488, %v1504
        %v1510 = vsel %vm1464, %v1505, 0
        %1512 = vmatprep.subr.mxu0 0.0
        %1513 = vmatpush1.msra.mxu0 0.0
        %1514 = vmatprep.subr.mxu0 0.0
        %1515 = vmatpush1.msra.mxu0 0.0
        %1516 = vmatprep.subr.mxu0 0.0
        %1517 = vmatpush1.msra.mxu0 0.0
        %1518 = vmatprep.subr.mxu0 0.0
        %1519 = vmatpush1.msra.mxu0 0.0
        %1520 = vmatprep.subr.mxu0 0.0
        %1521 = vmatpush1.msra.mxu0 0.0
        %1522 = vmatprep.subr.mxu0 0.0
        %1523 = vmatpush1.msra.mxu0 0.0
        %1524 = vmatprep.subr.mxu0 0.0
        %1525 = vmatpush1.msra.mxu0 0.0
        %1526 = vmatprep.subr.mxu0 0.0
        %1527 = vmatpush1.msra.mxu0 0.0
        %1528 = vmatprep.subr.mxu0 0.0
        %1529 = vmatpush1.msra.mxu0 0.0
        %1530 = vmatprep.subr.mxu0 0.0
        %1531 = vmatpush1.msra.mxu0 0.0
        %1532 = vmatprep.subr.mxu0 0.0
        %1533 = vmatpush1.msra.mxu0 0.0
        %1534 = vmatprep.subr.mxu0 0.0
        %1535 = vmatpush1.msra.mxu0 0.0
        %1536 = vmatprep.subr.mxu0 0.0
        %1537 = vmatpush1.msra.mxu0 0.0
        %1538 = vmatprep.subr.mxu0 0.0
        %1539 = vmatpush1.msra.mxu0 0.0
        %1540 = vmatprep.subr.mxu0 0.0
        %1541 = vmatpush1.msra.mxu0 %v1109
        %1542 = vmatprep.subr.mxu0 0.0
        %1543 = vmatpush1.msra.mxu0 %v1103
        %1544 = vmatprep.subr.mxu0 0.0
        %1545 = vmatpush2.msra.mxu0 0.0
        %1546 = vmatprep.subr.mxu0 0.0
        %1547 = vmatpush2.msra.mxu0 0.0
        %1548 = vmatprep.subr.mxu0 0.0
        %1549 = vmatpush2.msra.mxu0 0.0
        %1550 = vmatprep.subr.mxu0 0.0
        %1551 = vmatpush2.msra.mxu0 0.0
        %1552 = vmatprep.subr.mxu0 0.0
        %1553 = vmatpush2.msra.mxu0 0.0
        %1554 = vmatprep.subr.mxu0 0.0
        %1555 = vmatpush2.msra.mxu0 0.0
        %1556 = vmatprep.subr.mxu0 0.0
        %1557 = vmatpush2.msra.mxu0 0.0
        %1558 = vmatprep.subr.mxu0 0.0
        %1559 = vmatpush2.msra.mxu0 0.0
        %1560 = vmatprep.subr.mxu0 0.0
        %1561 = vmatpush2.msra.mxu0 0.0
        %1562 = vmatprep.subr.mxu0 0.0
        %1563 = vmatpush2.msra.mxu0 0.0
        %1564 = vmatprep.subr.mxu0 0.0
        %1565 = vmatpush2.msra.mxu0 0.0
        %1566 = vmatprep.subr.mxu0 0.0
        %1567 = vmatpush2.msra.mxu0 0.0
        %1568 = vmatprep.subr.mxu0 0.0
        %1569 = vmatpush2.msra.mxu0 0.0
        %1570 = vmatprep.subr.mxu0 0.0
        %1571 = vmatpush2.msra.mxu0 0.0
        %1572 = vmatprep.subr.mxu0 0.0
        %1573 = vmatpush2.msra.mxu0 0.0
        %1574 = vmatprep.subr.mxu0 0.0
        %1575 = vmatpush2.msra.mxu0 0.0
        %1576 = vmatprep.mubr.f32.mxu0 0.0
        %1577 = vmatmul.mubr.f32.gmra.mxu0 %v1510
        %v1578 = vpop.f32.mrf.mxu0
        %v1579 = vadd.f32 0.0, %v1578
        %v1580 = vpop.f32.mrf.mxu0
        %1581 = vdwg.mxu0
        %v1583 = vsel %vm1464, %v1506, 0
        %1585 = vmatprep.subr.mxu0 0.0
        %1586 = vmatpush1.msra.mxu0 0.0
        %1587 = vmatprep.subr.mxu0 0.0
        %1588 = vmatpush1.msra.mxu0 0.0
        %1589 = vmatprep.subr.mxu0 0.0
        %1590 = vmatpush1.msra.mxu0 0.0
        %1591 = vmatprep.subr.mxu0 0.0
        %1592 = vmatpush1.msra.mxu0 0.0
        %1593 = vmatprep.subr.mxu0 0.0
        %1594 = vmatpush1.msra.mxu0 0.0
        %1595 = vmatprep.subr.mxu0 0.0
        %1596 = vmatpush1.msra.mxu0 0.0
        %1597 = vmatprep.subr.mxu0 0.0
        %1598 = vmatpush1.msra.mxu0 0.0
        %1599 = vmatprep.subr.mxu0 0.0
        %1600 = vmatpush1.msra.mxu0 0.0
        %1601 = vmatprep.subr.mxu0 0.0
        %1602 = vmatpush1.msra.mxu0 0.0
        %1603 = vmatprep.subr.mxu0 0.0
        %1604 = vmatpush1.msra.mxu0 0.0
        %1605 = vmatprep.subr.mxu0 0.0
        %1606 = vmatpush1.msra.mxu0 0.0
        %1607 = vmatprep.subr.mxu0 0.0
        %1608 = vmatpush1.msra.mxu0 0.0
        %1609 = vmatprep.subr.mxu0 0.0
        %1610 = vmatpush1.msra.mxu0 0.0
        %1611 = vmatprep.subr.mxu0 0.0
        %1612 = vmatpush1.msra.mxu0 0.0
        %1613 = vmatprep.subr.mxu0 0.0
        %1614 = vmatpush1.msra.mxu0 %v1138
        %1615 = vmatprep.subr.mxu0 0.0
        %1616 = vmatpush1.msra.mxu0 %v1136
        %1617 = vmatprep.subr.mxu0 0.0
        %1618 = vmatpush2.msra.mxu0 0.0
        %1619 = vmatprep.subr.mxu0 0.0
        %1620 = vmatpush2.msra.mxu0 0.0
        %1621 = vmatprep.subr.mxu0 0.0
        %1622 = vmatpush2.msra.mxu0 0.0
        %1623 = vmatprep.subr.mxu0 0.0
        %1624 = vmatpush2.msra.mxu0 0.0
        %1625 = vmatprep.subr.mxu0 0.0
        %1626 = vmatpush2.msra.mxu0 0.0
        %1627 = vmatprep.subr.mxu0 0.0
        %1628 = vmatpush2.msra.mxu0 0.0
        %1629 = vmatprep.subr.mxu0 0.0
        %1630 = vmatpush2.msra.mxu0 0.0
        %1631 = vmatprep.subr.mxu0 0.0
        %1632 = vmatpush2.msra.mxu0 0.0
        %1633 = vmatprep.subr.mxu0 0.0
        %1634 = vmatpush2.msra.mxu0 0.0
        %1635 = vmatprep.subr.mxu0 0.0
        %1636 = vmatpush2.msra.mxu0 0.0
        %1637 = vmatprep.subr.mxu0 0.0
        %1638 = vmatpush2.msra.mxu0 0.0
        %1639 = vmatprep.subr.mxu0 0.0
        %1640 = vmatpush2.msra.mxu0 0.0
        %1641 = vmatprep.subr.mxu0 0.0
        %1642 = vmatpush2.msra.mxu0 0.0
        %1643 = vmatprep.subr.mxu0 0.0
        %1644 = vmatpush2.msra.mxu0 0.0
        %1645 = vmatprep.subr.mxu0 0.0
        %1646 = vmatpush2.msra.mxu0 0.0
        %1647 = vmatprep.subr.mxu0 0.0
        %1648 = vmatpush2.msra.mxu0 0.0
        %1649 = vmatprep.mubr.f32.mxu0 0.0
        %1650 = vmatmul.mubr.f32.gmra.mxu0 %v1583
        %v1651 = vpop.f32.mrf.mxu0
        %v1652 = vadd.f32 0.0, %v1651
        %v1653 = vpop.f32.mrf.mxu0
        %1654 = vdwg.mxu0
        %v1656 = vsel %vm1464, %v1507, 0
        %1658 = vmatprep.subr.mxu0 0.0
        %1659 = vmatpush1.msra.mxu0 0.0
        %1660 = vmatprep.subr.mxu0 0.0
        %1661 = vmatpush1.msra.mxu0 0.0
        %1662 = vmatprep.subr.mxu0 0.0
        %1663 = vmatpush1.msra.mxu0 0.0
        %1664 = vmatprep.subr.mxu0 0.0
        %1665 = vmatpush1.msra.mxu0 0.0
        %1666 = vmatprep.subr.mxu0 0.0
        %1667 = vmatpush1.msra.mxu0 0.0
        %1668 = vmatprep.subr.mxu0 0.0
        %1669 = vmatpush1.msra.mxu0 0.0
        %1670 = vmatprep.subr.mxu0 0.0
        %1671 = vmatpush1.msra.mxu0 0.0
        %1672 = vmatprep.subr.mxu0 0.0
        %1673 = vmatpush1.msra.mxu0 0.0
        %1674 = vmatprep.subr.mxu0 0.0
        %1675 = vmatpush1.msra.mxu0 0.0
        %1676 = vmatprep.subr.mxu0 0.0
        %1677 = vmatpush1.msra.mxu0 0.0
        %1678 = vmatprep.subr.mxu0 0.0
        %1679 = vmatpush1.msra.mxu0 0.0
        %1680 = vmatprep.subr.mxu0 0.0
        %1681 = vmatpush1.msra.mxu0 0.0
        %1682 = vmatprep.subr.mxu0 0.0
        %1683 = vmatpush1.msra.mxu0 0.0
        %1684 = vmatprep.subr.mxu0 0.0
        %1685 = vmatpush1.msra.mxu0 0.0
        %1686 = vmatprep.subr.mxu0 0.0
        %1687 = vmatpush1.msra.mxu0 %v1144
        %1688 = vmatprep.subr.mxu0 0.0
        %1689 = vmatpush1.msra.mxu0 %v1142
        %1690 = vmatprep.subr.mxu0 0.0
        %1691 = vmatpush2.msra.mxu0 0.0
        %1692 = vmatprep.subr.mxu0 0.0
        %1693 = vmatpush2.msra.mxu0 0.0
        %1694 = vmatprep.subr.mxu0 0.0
        %1695 = vmatpush2.msra.mxu0 0.0
        %1696 = vmatprep.subr.mxu0 0.0
        %1697 = vmatpush2.msra.mxu0 0.0
        %1698 = vmatprep.subr.mxu0 0.0
        %1699 = vmatpush2.msra.mxu0 0.0
        %1700 = vmatprep.subr.mxu0 0.0
        %1701 = vmatpush2.msra.mxu0 0.0
        %1702 = vmatprep.subr.mxu0 0.0
        %1703 = vmatpush2.msra.mxu0 0.0
        %1704 = vmatprep.subr.mxu0 0.0
        %1705 = vmatpush2.msra.mxu0 0.0
        %1706 = vmatprep.subr.mxu0 0.0
        %1707 = vmatpush2.msra.mxu0 0.0
        %1708 = vmatprep.subr.mxu0 0.0
        %1709 = vmatpush2.msra.mxu0 0.0
        %1710 = vmatprep.subr.mxu0 0.0
        %1711 = vmatpush2.msra.mxu0 0.0
        %1712 = vmatprep.subr.mxu0 0.0
        %1713 = vmatpush2.msra.mxu0 0.0
        %1714 = vmatprep.subr.mxu0 0.0
        %1715 = vmatpush2.msra.mxu0 0.0
        %1716 = vmatprep.subr.mxu0 0.0
        %1717 = vmatpush2.msra.mxu0 0.0
        %1718 = vmatprep.subr.mxu0 0.0
        %1719 = vmatpush2.msra.mxu0 0.0
        %1720 = vmatprep.subr.mxu0 0.0
        %1721 = vmatpush2.msra.mxu0 0.0
        %1722 = vmatprep.mubr.f32.mxu0 0.0
        %1723 = vmatmul.mubr.f32.gmra.mxu0 %v1656
        %v1724 = vpop.f32.mrf.mxu0
        %v1725 = vadd.f32 0.0, %v1724
        %v1726 = vpop.f32.mrf.mxu0
        %1727 = vdwg.mxu0
        %v1729 = vsel %vm1464, %v1508, 0
        %1731 = vmatprep.subr.mxu0 0.0
        %1732 = vmatpush1.msra.mxu0 0.0
        %1733 = vmatprep.subr.mxu0 0.0
        %1734 = vmatpush1.msra.mxu0 0.0
        %1735 = vmatprep.subr.mxu0 0.0
        %1736 = vmatpush1.msra.mxu0 0.0
        %1737 = vmatprep.subr.mxu0 0.0
        %1738 = vmatpush1.msra.mxu0 0.0
        %1739 = vmatprep.subr.mxu0 0.0
        %1740 = vmatpush1.msra.mxu0 0.0
        %1741 = vmatprep.subr.mxu0 0.0
        %1742 = vmatpush1.msra.mxu0 0.0
        %1743 = vmatprep.subr.mxu0 0.0
        %1744 = vmatpush1.msra.mxu0 0.0
        %1745 = vmatprep.subr.mxu0 0.0
        %1746 = vmatpush1.msra.mxu0 0.0
        %1747 = vmatprep.subr.mxu0 0.0
        %1748 = vmatpush1.msra.mxu0 0.0
        %1749 = vmatprep.subr.mxu0 0.0
        %1750 = vmatpush1.msra.mxu0 0.0
        %1751 = vmatprep.subr.mxu0 0.0
        %1752 = vmatpush1.msra.mxu0 0.0
        %1753 = vmatprep.subr.mxu0 0.0
        %1754 = vmatpush1.msra.mxu0 0.0
        %1755 = vmatprep.subr.mxu0 0.0
        %1756 = vmatpush1.msra.mxu0 0.0
        %1757 = vmatprep.subr.mxu0 0.0
        %1758 = vmatpush1.msra.mxu0 0.0
        %1759 = vmatprep.subr.mxu0 0.0
        %1760 = vmatpush1.msra.mxu0 %v1150
        %1761 = vmatprep.subr.mxu0 0.0
        %1762 = vmatpush1.msra.mxu0 %v1148
        %1763 = vmatprep.subr.mxu0 0.0
        %1764 = vmatpush2.msra.mxu0 0.0
        %1765 = vmatprep.subr.mxu0 0.0
        %1766 = vmatpush2.msra.mxu0 0.0
        %1767 = vmatprep.subr.mxu0 0.0
        %1768 = vmatpush2.msra.mxu0 0.0
        %1769 = vmatprep.subr.mxu0 0.0
        %1770 = vmatpush2.msra.mxu0 0.0
        %1771 = vmatprep.subr.mxu0 0.0
        %1772 = vmatpush2.msra.mxu0 0.0
        %1773 = vmatprep.subr.mxu0 0.0
        %1774 = vmatpush2.msra.mxu0 0.0
        %1775 = vmatprep.subr.mxu0 0.0
        %1776 = vmatpush2.msra.mxu0 0.0
        %1777 = vmatprep.subr.mxu0 0.0
        %1778 = vmatpush2.msra.mxu0 0.0
        %1779 = vmatprep.subr.mxu0 0.0
        %1780 = vmatpush2.msra.mxu0 0.0
        %1781 = vmatprep.subr.mxu0 0.0
        %1782 = vmatpush2.msra.mxu0 0.0
        %1783 = vmatprep.subr.mxu0 0.0
        %1784 = vmatpush2.msra.mxu0 0.0
        %1785 = vmatprep.subr.mxu0 0.0
        %1786 = vmatpush2.msra.mxu0 0.0
        %1787 = vmatprep.subr.mxu0 0.0
        %1788 = vmatpush2.msra.mxu0 0.0
        %1789 = vmatprep.subr.mxu0 0.0
        %1790 = vmatpush2.msra.mxu0 0.0
        %1791 = vmatprep.subr.mxu0 0.0
        %1792 = vmatpush2.msra.mxu0 0.0
        %1793 = vmatprep.subr.mxu0 0.0
        %1794 = vmatpush2.msra.mxu0 0.0
        %1795 = vmatprep.mubr.f32.mxu0 0.0
        %1796 = vmatmul.mubr.f32.gmra.mxu0 %v1729
        %v1797 = vpop.f32.mrf.mxu0
        %v1798 = vadd.f32 0.0, %v1797
        %v1799 = vpop.f32.mrf.mxu0
        %1800 = vdwg.mxu0
        %1802 = vrot.lane.b32.xlu0 %v1652, 32
        %v1803 = vpop.permute.xlu0 %1802
        %1806 = vrot.lane.b32.xlu0 %v1725, 64
        %v1807 = vpop.permute.xlu0 %1806
        %1810 = vrot.lane.b32.xlu0 %v1798, 96
        %v1811 = vpop.permute.xlu0 %1810
        %v1813 = vsel %vm1153, %v1579, %v1803
        %vm1814 = vcmask 523264
        %v1815 = vsel %vm1814, %v1813, %v1807
        %vm1816 = vcmask 785408
        %v1817 = vsel %vm1816, %v1815, %v1811
        %1818 = vmatprep.subr.mxu0 0.0
        %1819 = vmatpush1.msra.mxu0 %v963
        %1820 = vmatprep.subr.mxu0 0.0
        %1821 = vmatpush1.msra.mxu0 %v962
        %1822 = vmatprep.subr.mxu0 0.0
        %1823 = vmatpush1.msra.mxu0 %v961
        %1824 = vmatprep.subr.mxu0 0.0
        %1825 = vmatpush1.msra.mxu0 %v960
        %1826 = vmatprep.subr.mxu0 0.0
        %1827 = vmatpush1.msra.mxu0 %v959
        %1828 = vmatprep.subr.mxu0 0.0
        %1829 = vmatpush1.msra.mxu0 %v958
        %1830 = vmatprep.subr.mxu0 0.0
        %1831 = vmatpush1.msra.mxu0 %v957
        %1832 = vmatprep.subr.mxu0 0.0
        %1833 = vmatpush1.msra.mxu0 %v956
        %1834 = vmatprep.subr.mxu0 0.0
        %1835 = vmatpush1.msra.mxu0 %v955
        %1836 = vmatprep.subr.mxu0 0.0
        %1837 = vmatpush1.msra.mxu0 %v954
        %1838 = vmatprep.subr.mxu0 0.0
        %1839 = vmatpush1.msra.mxu0 %v953
        %1840 = vmatprep.subr.mxu0 0.0
        %1841 = vmatpush1.msra.mxu0 %v952
        %1842 = vmatprep.subr.mxu0 0.0
        %1843 = vmatpush1.msra.mxu0 %v951
        %1844 = vmatprep.subr.mxu0 0.0
        %1845 = vmatpush1.msra.mxu0 %v950
        %1846 = vmatprep.subr.mxu0 0.0
        %1847 = vmatpush1.msra.mxu0 %v949
        %1848 = vmatprep.subr.mxu0 0.0
        %1849 = vmatpush1.msra.mxu0 %v948
        %1850 = vmatprep.subr.mxu0 0.0
        %1851 = vmatpush2.msra.mxu0 0.0
        %1852 = vmatprep.subr.mxu0 0.0
        %1853 = vmatpush2.msra.mxu0 0.0
        %1854 = vmatprep.subr.mxu0 0.0
        %1855 = vmatpush2.msra.mxu0 0.0
        %1856 = vmatprep.subr.mxu0 0.0
        %1857 = vmatpush2.msra.mxu0 0.0
        %1858 = vmatprep.subr.mxu0 0.0
        %1859 = vmatpush2.msra.mxu0 0.0
        %1860 = vmatprep.subr.mxu0 0.0
        %1861 = vmatpush2.msra.mxu0 0.0
        %1862 = vmatprep.subr.mxu0 0.0
        %1863 = vmatpush2.msra.mxu0 0.0
        %1864 = vmatprep.subr.mxu0 0.0
        %1865 = vmatpush2.msra.mxu0 0.0
        %1866 = vmatprep.subr.mxu0 0.0
        %1867 = vmatpush2.msra.mxu0 0.0
        %1868 = vmatprep.subr.mxu0 0.0
        %1869 = vmatpush2.msra.mxu0 0.0
        %1870 = vmatprep.subr.mxu0 0.0
        %1871 = vmatpush2.msra.mxu0 0.0
        %1872 = vmatprep.subr.mxu0 0.0
        %1873 = vmatpush2.msra.mxu0 0.0
        %1874 = vmatprep.subr.mxu0 0.0
        %1875 = vmatpush2.msra.mxu0 0.0
        %1876 = vmatprep.subr.mxu0 0.0
        %1877 = vmatpush2.msra.mxu0 0.0
        %1878 = vmatprep.subr.mxu0 0.0
        %1879 = vmatpush2.msra.mxu0 0.0
        %1880 = vmatprep.subr.mxu0 0.0
        %1881 = vmatpush2.msra.mxu0 0.0
        %1882 = vmatprep.mubr.f32.mxu0 0.0
        %1883 = vmatmul.mubr.f32.gmra.mxu0 %v1817
        %v1884 = vpop.f32.mrf.mxu0
        %v1885 = vadd.f32 0.0, %v1884
        %v1886 = vpop.f32.mrf.mxu0
        %1887 = vdwg.mxu0
        %v1888 = vadd.f32 %v893, %v1885
        %v1889 = vld [vmem:[%s14] sm:$0x1]
        %v1890 = vld [vmem:[%s15] sm:$0x1]
        %1891 = vadd.xlane.f32.xlu0 %v1888
        %v1892 = vpop.xlane.xlu0 %1891
        %v1893 = vrcp.pop 128.0
        %v1894 = vmul.f32 %v1892, %v1893
        %v1895 = vsub.f32 %v1888, %v1894
        %v1896 = vmul.f32 %v1895, %v1895
        %1897 = vadd.xlane.f32.xlu0 %v1896
        %v1898 = vpop.xlane.xlu0 %1897
        %v1899 = vmul.f32 %v1898, 0.007874016
        %v1900 = vrsqrt.pop %v1899
        %v1901 = vmul.f32 %v1899, %v1900
        %vm1902 = vcmp.eq.f32.partialorder %v1899, inf
        %v1903 = vsel %vm1902, %v1899, %v1901
        %vm1904 = vcmp.eq.f32.partialorder %v1899, 0.0
        %v1905 = vand.u32 %v1899, 2147483648
        %v1906 = vsel %vm1904, %v1905, %v1903
        %v1907 = vadd.f32 %v1906, 1e-06
        %v1908 = vrcp.pop %v1907
        %v1909 = vmul.f32 %v1895, %v1908
        %v1911 = vlaneseq
        %v1912 = vshrl.u32 %v1911, 7
        %v1913 = vsub.s32 0, %v1912
        %v1914 = vrot.slane %v1889, %v1913
        %v1916 = vmul.f32 %v1914, %v1909
        %v1918 = vlaneseq
        %v1919 = vshrl.u32 %v1918, 7
        %v1920 = vsub.s32 0, %v1919
        %v1921 = vrot.slane %v1890, %v1920
        %v1923 = vadd.f32 %v1916, %v1921
        %v1924 = vld [vmem:[#allocation14] sm:$0xff]
        %v1925 = vld [vmem:[#allocation14 + $0x8] sm:$0xff]
        %v1926 = vld [vmem:[#allocation14 + $0x10] sm:$0xff]
        %v1927 = vld [vmem:[#allocation14 + $0x18] sm:$0xff]
        %v1928 = vld [vmem:[#allocation14 + $0x20] sm:$0xff]
        %v1929 = vld [vmem:[#allocation14 + $0x28] sm:$0xff]
        %v1930 = vld [vmem:[#allocation14 + $0x30] sm:$0xff]
        %v1931 = vld [vmem:[#allocation14 + $0x38] sm:$0xff]
        %v1932 = vld [vmem:[#allocation14 + $0x40] sm:$0xff]
        %v1933 = vld [vmem:[#allocation14 + $0x48] sm:$0xff]
        %v1934 = vld [vmem:[#allocation14 + $0x50] sm:$0xff]
        %v1935 = vld [vmem:[#allocation14 + $0x58] sm:$0xff]
        %v1936 = vld [vmem:[#allocation14 + $0x60] sm:$0xff]
        %v1937 = vld [vmem:[#allocation14 + $0x68] sm:$0xff]
        %v1938 = vld [vmem:[#allocation14 + $0x70] sm:$0xff]
        %v1939 = vld [vmem:[#allocation14 + $0x78] sm:$0xff]
        %v1940 = vld [vmem:[#allocation16] sm:$0xff]
        %v1941 = vld [vmem:[#allocation16 + $0x8] sm:$0xff]
        %v1942 = vld [vmem:[#allocation16 + $0x10] sm:$0xff]
        %v1943 = vld [vmem:[#allocation16 + $0x18] sm:$0xff]
        %v1944 = vld [vmem:[#allocation16 + $0x20] sm:$0xff]
        %v1945 = vld [vmem:[#allocation16 + $0x28] sm:$0xff]
        %v1946 = vld [vmem:[#allocation16 + $0x30] sm:$0xff]
        %v1947 = vld [vmem:[#allocation16 + $0x38] sm:$0xff]
        %v1948 = vld [vmem:[#allocation16 + $0x40] sm:$0xff]
        %v1949 = vld [vmem:[#allocation16 + $0x48] sm:$0xff]
        %v1950 = vld [vmem:[#allocation16 + $0x50] sm:$0xff]
        %v1951 = vld [vmem:[#allocation16 + $0x58] sm:$0xff]
        %v1952 = vld [vmem:[#allocation16 + $0x60] sm:$0xff]
        %v1953 = vld [vmem:[#allocation16 + $0x68] sm:$0xff]
        %v1954 = vld [vmem:[#allocation16 + $0x70] sm:$0xff]
        %v1955 = vld [vmem:[#allocation16 + $0x78] sm:$0xff]
        %v1956 = vld [vmem:[#allocation16 + $0x80] sm:$0xff]
        %v1957 = vld [vmem:[#allocation16 + $0x88] sm:$0xff]
        %v1958 = vld [vmem:[#allocation16 + $0x90] sm:$0xff]
        %v1959 = vld [vmem:[#allocation16 + $0x98] sm:$0xff]
        %v1960 = vld [vmem:[#allocation16 + $0xa0] sm:$0xff]
        %v1961 = vld [vmem:[#allocation16 + $0xa8] sm:$0xff]
        %v1962 = vld [vmem:[#allocation16 + $0xb0] sm:$0xff]
        %v1963 = vld [vmem:[#allocation16 + $0xb8] sm:$0xff]
        %v1964 = vld [vmem:[#allocation16 + $0xc0] sm:$0xff]
        %v1965 = vld [vmem:[#allocation16 + $0xc8] sm:$0xff]
        %v1966 = vld [vmem:[#allocation16 + $0xd0] sm:$0xff]
        %v1967 = vld [vmem:[#allocation16 + $0xd8] sm:$0xff]
        %v1968 = vld [vmem:[#allocation16 + $0xe0] sm:$0xff]
        %v1969 = vld [vmem:[#allocation16 + $0xe8] sm:$0xff]
        %v1970 = vld [vmem:[#allocation16 + $0xf0] sm:$0xff]
        %v1971 = vld [vmem:[#allocation16 + $0xf8] sm:$0xff]
        %v1972 = vld [vmem:[#allocation17] sm:$0xff]
        %v1973 = vld [vmem:[#allocation17 + $0x8] sm:$0xff]
        %v1974 = vld [vmem:[#allocation17 + $0x10] sm:$0xff]
        %v1975 = vld [vmem:[#allocation17 + $0x18] sm:$0xff]
        %v1976 = vld [vmem:[#allocation17 + $0x20] sm:$0xff]
        %v1977 = vld [vmem:[#allocation17 + $0x28] sm:$0xff]
        %v1978 = vld [vmem:[#allocation17 + $0x30] sm:$0xff]
        %v1979 = vld [vmem:[#allocation17 + $0x38] sm:$0xff]
        %v1980 = vld [vmem:[#allocation17 + $0x40] sm:$0xff]
        %v1981 = vld [vmem:[#allocation17 + $0x48] sm:$0xff]
        %v1982 = vld [vmem:[#allocation17 + $0x50] sm:$0xff]
        %v1983 = vld [vmem:[#allocation17 + $0x58] sm:$0xff]
        %v1984 = vld [vmem:[#allocation17 + $0x60] sm:$0xff]
        %v1985 = vld [vmem:[#allocation17 + $0x68] sm:$0xff]
        %v1986 = vld [vmem:[#allocation17 + $0x70] sm:$0xff]
        %v1987 = vld [vmem:[#allocation17 + $0x78] sm:$0xff]
        %1988 = vmatprep.subr.mxu0 0.0
        %1989 = vmatpush1.msra.mxu0 %v1939
        %1990 = vmatprep.subr.mxu0 0.0
        %1991 = vmatpush1.msra.mxu0 %v1938
        %1992 = vmatprep.subr.mxu0 0.0
        %1993 = vmatpush1.msra.mxu0 %v1937
        %1994 = vmatprep.subr.mxu0 0.0
        %1995 = vmatpush1.msra.mxu0 %v1936
        %1996 = vmatprep.subr.mxu0 0.0
        %1997 = vmatpush1.msra.mxu0 %v1935
        %1998 = vmatprep.subr.mxu0 0.0
        %1999 = vmatpush1.msra.mxu0 %v1934
        %2000 = vmatprep.subr.mxu0 0.0
        %2001 = vmatpush1.msra.mxu0 %v1933
        %2002 = vmatprep.subr.mxu0 0.0
        %2003 = vmatpush1.msra.mxu0 %v1932
        %2004 = vmatprep.subr.mxu0 0.0
        %2005 = vmatpush1.msra.mxu0 %v1931
        %2006 = vmatprep.subr.mxu0 0.0
        %2007 = vmatpush1.msra.mxu0 %v1930
        %2008 = vmatprep.subr.mxu0 0.0
        %2009 = vmatpush1.msra.mxu0 %v1929
        %2010 = vmatprep.subr.mxu0 0.0
        %2011 = vmatpush1.msra.mxu0 %v1928
        %2012 = vmatprep.subr.mxu0 0.0
        %2013 = vmatpush1.msra.mxu0 %v1927
        %2014 = vmatprep.subr.mxu0 0.0
        %2015 = vmatpush1.msra.mxu0 %v1926
        %2016 = vmatprep.subr.mxu0 0.0
        %2017 = vmatpush1.msra.mxu0 %v1925
        %2018 = vmatprep.subr.mxu0 0.0
        %2019 = vmatpush1.msra.mxu0 %v1924
        %2020 = vmatprep.subr.mxu0 0.0
        %2021 = vmatpush2.msra.mxu0 0.0
        %2022 = vmatprep.subr.mxu0 0.0
        %2023 = vmatpush2.msra.mxu0 0.0
        %2024 = vmatprep.subr.mxu0 0.0
        %2025 = vmatpush2.msra.mxu0 0.0
        %2026 = vmatprep.subr.mxu0 0.0
        %2027 = vmatpush2.msra.mxu0 0.0
        %2028 = vmatprep.subr.mxu0 0.0
        %2029 = vmatpush2.msra.mxu0 0.0
        %2030 = vmatprep.subr.mxu0 0.0
        %2031 = vmatpush2.msra.mxu0 0.0
        %2032 = vmatprep.subr.mxu0 0.0
        %2033 = vmatpush2.msra.mxu0 0.0
        %2034 = vmatprep.subr.mxu0 0.0
        %2035 = vmatpush2.msra.mxu0 0.0
        %2036 = vmatprep.subr.mxu0 0.0
        %2037 = vmatpush2.msra.mxu0 0.0
        %2038 = vmatprep.subr.mxu0 0.0
        %2039 = vmatpush2.msra.mxu0 0.0
        %2040 = vmatprep.subr.mxu0 0.0
        %2041 = vmatpush2.msra.mxu0 0.0
        %2042 = vmatprep.subr.mxu0 0.0
        %2043 = vmatpush2.msra.mxu0 0.0
        %2044 = vmatprep.subr.mxu0 0.0
        %2045 = vmatpush2.msra.mxu0 0.0
        %2046 = vmatprep.subr.mxu0 0.0
        %2047 = vmatpush2.msra.mxu0 0.0
        %2048 = vmatprep.subr.mxu0 0.0
        %2049 = vmatpush2.msra.mxu0 0.0
        %2050 = vmatprep.subr.mxu0 0.0
        %2051 = vmatpush2.msra.mxu0 0.0
        %2052 = vmatprep.mubr.f32.mxu0 0.0
        %2053 = vmatmul.mubr.f32.gmra.mxu0 %v1923
        %v2054 = vpop.f32.mrf.mxu0
        %v2055 = vadd.f32 0.0, %v2054
        %v2056 = vpop.f32.mrf.mxu0
        %2057 = vdwg.mxu0
        %2058 = vmatprep.subr.mxu0 %v1971
        %2059 = vmatpush1.msra.mxu0 %v1970
        %2060 = vmatprep.subr.mxu0 %v1969
        %2061 = vmatpush1.msra.mxu0 %v1968
        %2062 = vmatprep.subr.mxu0 %v1967
        %2063 = vmatpush1.msra.mxu0 %v1966
        %2064 = vmatprep.subr.mxu0 %v1965
        %2065 = vmatpush1.msra.mxu0 %v1964
        %2066 = vmatprep.subr.mxu0 %v1963
        %2067 = vmatpush1.msra.mxu0 %v1962
        %2068 = vmatprep.subr.mxu0 %v1961
        %2069 = vmatpush1.msra.mxu0 %v1960
        %2070 = vmatprep.subr.mxu0 %v1959
        %2071 = vmatpush1.msra.mxu0 %v1958
        %2072 = vmatprep.subr.mxu0 %v1957
        %2073 = vmatpush1.msra.mxu0 %v1956
        %2074 = vmatprep.subr.mxu0 %v1955
        %2075 = vmatpush1.msra.mxu0 %v1954
        %2076 = vmatprep.subr.mxu0 %v1953
        %2077 = vmatpush1.msra.mxu0 %v1952
        %2078 = vmatprep.subr.mxu0 %v1951
        %2079 = vmatpush1.msra.mxu0 %v1950
        %2080 = vmatprep.subr.mxu0 %v1949
        %2081 = vmatpush1.msra.mxu0 %v1948
        %2082 = vmatprep.subr.mxu0 %v1947
        %2083 = vmatpush1.msra.mxu0 %v1946
        %2084 = vmatprep.subr.mxu0 %v1945
        %2085 = vmatpush1.msra.mxu0 %v1944
        %2086 = vmatprep.subr.mxu0 %v1943
        %2087 = vmatpush1.msra.mxu0 %v1942
        %2088 = vmatprep.subr.mxu0 %v1941
        %2089 = vmatpush1.msra.mxu0 %v1940
        %2090 = vmatprep.subr.mxu0 0.0
        %2091 = vmatpush2.msra.mxu0 0.0
        %2092 = vmatprep.subr.mxu0 0.0
        %2093 = vmatpush2.msra.mxu0 0.0
        %2094 = vmatprep.subr.mxu0 0.0
        %2095 = vmatpush2.msra.mxu0 0.0
        %2096 = vmatprep.subr.mxu0 0.0
        %2097 = vmatpush2.msra.mxu0 0.0
        %2098 = vmatprep.subr.mxu0 0.0
        %2099 = vmatpush2.msra.mxu0 0.0
        %2100 = vmatprep.subr.mxu0 0.0
        %2101 = vmatpush2.msra.mxu0 0.0
        %2102 = vmatprep.subr.mxu0 0.0
        %2103 = vmatpush2.msra.mxu0 0.0
        %2104 = vmatprep.subr.mxu0 0.0
        %2105 = vmatpush2.msra.mxu0 0.0
        %2106 = vmatprep.subr.mxu0 0.0
        %2107 = vmatpush2.msra.mxu0 0.0
        %2108 = vmatprep.subr.mxu0 0.0
        %2109 = vmatpush2.msra.mxu0 0.0
        %2110 = vmatprep.subr.mxu0 0.0
        %2111 = vmatpush2.msra.mxu0 0.0
        %2112 = vmatprep.subr.mxu0 0.0
        %2113 = vmatpush2.msra.mxu0 0.0
        %2114 = vmatprep.subr.mxu0 0.0
        %2115 = vmatpush2.msra.mxu0 0.0
        %2116 = vmatprep.subr.mxu0 0.0
        %2117 = vmatpush2.msra.mxu0 0.0
        %2118 = vmatprep.subr.mxu0 0.0
        %2119 = vmatpush2.msra.mxu0 0.0
        %2120 = vmatprep.subr.mxu0 0.0
        %2121 = vmatpush2.msra.mxu0 0.0
        %2122 = vmatprep.mubr.f32.mxu0 0.0
        %2123 = vmatmul.mubr.f32.gmra.mxu0 %v894
        %v2124 = vpop.f32.mrf.mxu0
        %v2125 = vadd.f32 0.0, %v2124
        %v2126 = vpop.f32.mrf.mxu0
        %v2127 = vadd.f32 0.0, %v2126
        %2128 = vmatprep.mubr.f32.mxu0 0.0
        %2129 = vmatmul.mubr.f32.gmra.mxu0 %v895
        %v2130 = vpop.f32.mrf.mxu0
        %v2131 = vadd.f32 0.0, %v2130
        %v2132 = vpop.f32.mrf.mxu0
        %v2133 = vadd.f32 0.0, %v2132
        %2134 = vdwg.mxu0
        %v2135 = vmul.f32 %v2055, 0.17677669
        %2137 = vrot.lane.b32.xlu0 %v2135, 96
        %v2138 = vpop.permute.xlu0 %2137
        %2139 = vrot.lane.b32.xlu0 %v2135, 64
        %v2140 = vpop.permute.xlu0 %2139
        %2141 = vrot.lane.b32.xlu0 %v2135, 32
        %v2142 = vpop.permute.xlu0 %2141
        %2145 = vrot.lane.b32.xlu0 %v2125, 96
        %v2146 = vpop.permute.xlu0 %2145
        %2147 = vrot.lane.b32.xlu0 %v2131, 96
        %v2148 = vpop.permute.xlu0 %2147
        %2149 = vrot.lane.b32.xlu0 %v2125, 64
        %v2150 = vpop.permute.xlu0 %2149
        %2151 = vrot.lane.b32.xlu0 %v2131, 64
        %v2152 = vpop.permute.xlu0 %2151
        %2153 = vrot.lane.b32.xlu0 %v2125, 32
        %v2154 = vpop.permute.xlu0 %2153
        %2155 = vrot.lane.b32.xlu0 %v2131, 32
        %v2156 = vpop.permute.xlu0 %2155
        %2159 = vrot.lane.b32.xlu0 %v2127, 96
        %v2160 = vpop.permute.xlu0 %2159
        %2161 = vrot.lane.b32.xlu0 %v2133, 96
        %v2162 = vpop.permute.xlu0 %2161
        %2165 = vrot.lane.b32.xlu0 %v2127, 64
        %v2166 = vpop.permute.xlu0 %2165
        %2167 = vrot.lane.b32.xlu0 %v2133, 64
        %v2168 = vpop.permute.xlu0 %2167
        %2171 = vrot.lane.b32.xlu0 %v2127, 32
        %v2172 = vpop.permute.xlu0 %2171
        %2173 = vrot.lane.b32.xlu0 %v2133, 32
        %v2174 = vpop.permute.xlu0 %2173
        %v2177 = vsel %vm1153, %v2135, 0
        %v2179 = vsel %vm1153, %v2125, 0
        %v2181 = vsel %vm1153, %v2131, 0
        %2183 = vmatprep.subr.mxu0 0.0
        %2184 = vmatpush1.xpose.msra.mxu0 0.0
        %2185 = vmatprep.subr.mxu0 0.0
        %2186 = vmatpush1.xpose.msra.mxu0 0.0
        %2187 = vmatprep.subr.mxu0 0.0
        %2188 = vmatpush1.xpose.msra.mxu0 0.0
        %2189 = vmatprep.subr.mxu0 0.0
        %2190 = vmatpush1.xpose.msra.mxu0 0.0
        %2191 = vmatprep.subr.mxu0 0.0
        %2192 = vmatpush1.xpose.msra.mxu0 0.0
        %2193 = vmatprep.subr.mxu0 0.0
        %2194 = vmatpush1.xpose.msra.mxu0 0.0
        %2195 = vmatprep.subr.mxu0 0.0
        %2196 = vmatpush1.xpose.msra.mxu0 0.0
        %2197 = vmatprep.subr.mxu0 0.0
        %2198 = vmatpush1.xpose.msra.mxu0 0.0
        %2199 = vmatprep.subr.mxu0 0.0
        %2200 = vmatpush1.xpose.msra.mxu0 0.0
        %2201 = vmatprep.subr.mxu0 0.0
        %2202 = vmatpush1.xpose.msra.mxu0 0.0
        %2203 = vmatprep.subr.mxu0 0.0
        %2204 = vmatpush1.xpose.msra.mxu0 0.0
        %2205 = vmatprep.subr.mxu0 0.0
        %2206 = vmatpush1.xpose.msra.mxu0 0.0
        %2207 = vmatprep.subr.mxu0 0.0
        %2208 = vmatpush1.xpose.msra.mxu0 0.0
        %2209 = vmatprep.subr.mxu0 0.0
        %2210 = vmatpush1.xpose.msra.mxu0 0.0
        %2211 = vmatprep.subr.mxu0 0.0
        %2212 = vmatpush1.xpose.msra.mxu0 %v2181
        %2213 = vmatprep.subr.mxu0 0.0
        %2214 = vmatpush1.xpose.msra.mxu0 %v2179
        %2215 = vmatprep.subr.mxu0 0.0
        %2216 = vmatpush2.xpose.msra.mxu0 0.0
        %2217 = vmatprep.subr.mxu0 0.0
        %2218 = vmatpush2.xpose.msra.mxu0 0.0
        %2219 = vmatprep.subr.mxu0 0.0
        %2220 = vmatpush2.xpose.msra.mxu0 0.0
        %2221 = vmatprep.subr.mxu0 0.0
        %2222 = vmatpush2.xpose.msra.mxu0 0.0
        %2223 = vmatprep.subr.mxu0 0.0
        %2224 = vmatpush2.xpose.msra.mxu0 0.0
        %2225 = vmatprep.subr.mxu0 0.0
        %2226 = vmatpush2.xpose.msra.mxu0 0.0
        %2227 = vmatprep.subr.mxu0 0.0
        %2228 = vmatpush2.xpose.msra.mxu0 0.0
        %2229 = vmatprep.subr.mxu0 0.0
        %2230 = vmatpush2.xpose.msra.mxu0 0.0
        %2231 = vmatprep.subr.mxu0 0.0
        %2232 = vmatpush2.xpose.msra.mxu0 0.0
        %2233 = vmatprep.subr.mxu0 0.0
        %2234 = vmatpush2.xpose.msra.mxu0 0.0
        %2235 = vmatprep.subr.mxu0 0.0
        %2236 = vmatpush2.xpose.msra.mxu0 0.0
        %2237 = vmatprep.subr.mxu0 0.0
        %2238 = vmatpush2.xpose.msra.mxu0 0.0
        %2239 = vmatprep.subr.mxu0 0.0
        %2240 = vmatpush2.xpose.msra.mxu0 0.0
        %2241 = vmatprep.subr.mxu0 0.0
        %2242 = vmatpush2.xpose.msra.mxu0 0.0
        %2243 = vmatprep.subr.mxu0 0.0
        %2244 = vmatpush2.xpose.msra.mxu0 0.0
        %2245 = vmatprep.subr.mxu0 0.0
        %2246 = vmatpush2.xpose.msra.mxu0 0.0
        %2247 = vmatprep.mubr.f32.mxu0 0.0
        %2248 = vmatmul.mubr.f32.gmra.mxu0 %v2177
        %v2249 = vpop.f32.mrf.mxu0
        %v2250 = vadd.f32 0.0, %v2249
        %v2251 = vpop.f32.mrf.mxu0
        %2252 = vdwg.mxu0
        %v2253 = vsel %vm1153, %v2138, 0
        %v2255 = vsel %vm1153, %v2146, 0
        %v2257 = vsel %vm1153, %v2148, 0
        %2259 = vmatprep.subr.mxu0 0.0
        %2260 = vmatpush1.xpose.msra.mxu0 0.0
        %2261 = vmatprep.subr.mxu0 0.0
        %2262 = vmatpush1.xpose.msra.mxu0 0.0
        %2263 = vmatprep.subr.mxu0 0.0
        %2264 = vmatpush1.xpose.msra.mxu0 0.0
        %2265 = vmatprep.subr.mxu0 0.0
        %2266 = vmatpush1.xpose.msra.mxu0 0.0
        %2267 = vmatprep.subr.mxu0 0.0
        %2268 = vmatpush1.xpose.msra.mxu0 0.0
        %2269 = vmatprep.subr.mxu0 0.0
        %2270 = vmatpush1.xpose.msra.mxu0 0.0
        %2271 = vmatprep.subr.mxu0 0.0
        %2272 = vmatpush1.xpose.msra.mxu0 0.0
        %2273 = vmatprep.subr.mxu0 0.0
        %2274 = vmatpush1.xpose.msra.mxu0 0.0
        %2275 = vmatprep.subr.mxu0 0.0
        %2276 = vmatpush1.xpose.msra.mxu0 0.0
        %2277 = vmatprep.subr.mxu0 0.0
        %2278 = vmatpush1.xpose.msra.mxu0 0.0
        %2279 = vmatprep.subr.mxu0 0.0
        %2280 = vmatpush1.xpose.msra.mxu0 0.0
        %2281 = vmatprep.subr.mxu0 0.0
        %2282 = vmatpush1.xpose.msra.mxu0 0.0
        %2283 = vmatprep.subr.mxu0 0.0
        %2284 = vmatpush1.xpose.msra.mxu0 0.0
        %2285 = vmatprep.subr.mxu0 0.0
        %2286 = vmatpush1.xpose.msra.mxu0 0.0
        %2287 = vmatprep.subr.mxu0 0.0
        %2288 = vmatpush1.xpose.msra.mxu0 %v2257
        %2289 = vmatprep.subr.mxu0 0.0
        %2290 = vmatpush1.xpose.msra.mxu0 %v2255
        %2291 = vmatprep.subr.mxu0 0.0
        %2292 = vmatpush2.xpose.msra.mxu0 0.0
        %2293 = vmatprep.subr.mxu0 0.0
        %2294 = vmatpush2.xpose.msra.mxu0 0.0
        %2295 = vmatprep.subr.mxu0 0.0
        %2296 = vmatpush2.xpose.msra.mxu0 0.0
        %2297 = vmatprep.subr.mxu0 0.0
        %2298 = vmatpush2.xpose.msra.mxu0 0.0
        %2299 = vmatprep.subr.mxu0 0.0
        %2300 = vmatpush2.xpose.msra.mxu0 0.0
        %2301 = vmatprep.subr.mxu0 0.0
        %2302 = vmatpush2.xpose.msra.mxu0 0.0
        %2303 = vmatprep.subr.mxu0 0.0
        %2304 = vmatpush2.xpose.msra.mxu0 0.0
        %2305 = vmatprep.subr.mxu0 0.0
        %2306 = vmatpush2.xpose.msra.mxu0 0.0
        %2307 = vmatprep.subr.mxu0 0.0
        %2308 = vmatpush2.xpose.msra.mxu0 0.0
        %2309 = vmatprep.subr.mxu0 0.0
        %2310 = vmatpush2.xpose.msra.mxu0 0.0
        %2311 = vmatprep.subr.mxu0 0.0
        %2312 = vmatpush2.xpose.msra.mxu0 0.0
        %2313 = vmatprep.subr.mxu0 0.0
        %2314 = vmatpush2.xpose.msra.mxu0 0.0
        %2315 = vmatprep.subr.mxu0 0.0
        %2316 = vmatpush2.xpose.msra.mxu0 0.0
        %2317 = vmatprep.subr.mxu0 0.0
        %2318 = vmatpush2.xpose.msra.mxu0 0.0
        %2319 = vmatprep.subr.mxu0 0.0
        %2320 = vmatpush2.xpose.msra.mxu0 0.0
        %2321 = vmatprep.subr.mxu0 0.0
        %2322 = vmatpush2.xpose.msra.mxu0 0.0
        %2323 = vmatprep.mubr.f32.mxu0 0.0
        %2324 = vmatmul.mubr.f32.gmra.mxu0 %v2253
        %v2325 = vpop.f32.mrf.mxu0
        %v2326 = vadd.f32 0.0, %v2325
        %v2327 = vpop.f32.mrf.mxu0
        %2328 = vdwg.mxu0
        %v2329 = vsel %vm1153, %v2140, 0
        %v2331 = vsel %vm1153, %v2150, 0
        %v2333 = vsel %vm1153, %v2152, 0
        %2335 = vmatprep.subr.mxu0 0.0
        %2336 = vmatpush1.xpose.msra.mxu0 0.0
        %2337 = vmatprep.subr.mxu0 0.0
        %2338 = vmatpush1.xpose.msra.mxu0 0.0
        %2339 = vmatprep.subr.mxu0 0.0
        %2340 = vmatpush1.xpose.msra.mxu0 0.0
        %2341 = vmatprep.subr.mxu0 0.0
        %2342 = vmatpush1.xpose.msra.mxu0 0.0
        %2343 = vmatprep.subr.mxu0 0.0
        %2344 = vmatpush1.xpose.msra.mxu0 0.0
        %2345 = vmatprep.subr.mxu0 0.0
        %2346 = vmatpush1.xpose.msra.mxu0 0.0
        %2347 = vmatprep.subr.mxu0 0.0
        %2348 = vmatpush1.xpose.msra.mxu0 0.0
        %2349 = vmatprep.subr.mxu0 0.0
        %2350 = vmatpush1.xpose.msra.mxu0 0.0
        %2351 = vmatprep.subr.mxu0 0.0
        %2352 = vmatpush1.xpose.msra.mxu0 0.0
        %2353 = vmatprep.subr.mxu0 0.0
        %2354 = vmatpush1.xpose.msra.mxu0 0.0
        %2355 = vmatprep.subr.mxu0 0.0
        %2356 = vmatpush1.xpose.msra.mxu0 0.0
        %2357 = vmatprep.subr.mxu0 0.0
        %2358 = vmatpush1.xpose.msra.mxu0 0.0
        %2359 = vmatprep.subr.mxu0 0.0
        %2360 = vmatpush1.xpose.msra.mxu0 0.0
        %2361 = vmatprep.subr.mxu0 0.0
        %2362 = vmatpush1.xpose.msra.mxu0 0.0
        %2363 = vmatprep.subr.mxu0 0.0
        %2364 = vmatpush1.xpose.msra.mxu0 %v2333
        %2365 = vmatprep.subr.mxu0 0.0
        %2366 = vmatpush1.xpose.msra.mxu0 %v2331
        %2367 = vmatprep.subr.mxu0 0.0
        %2368 = vmatpush2.xpose.msra.mxu0 0.0
        %2369 = vmatprep.subr.mxu0 0.0
        %2370 = vmatpush2.xpose.msra.mxu0 0.0
        %2371 = vmatprep.subr.mxu0 0.0
        %2372 = vmatpush2.xpose.msra.mxu0 0.0
        %2373 = vmatprep.subr.mxu0 0.0
        %2374 = vmatpush2.xpose.msra.mxu0 0.0
        %2375 = vmatprep.subr.mxu0 0.0
        %2376 = vmatpush2.xpose.msra.mxu0 0.0
        %2377 = vmatprep.subr.mxu0 0.0
        %2378 = vmatpush2.xpose.msra.mxu0 0.0
        %2379 = vmatprep.subr.mxu0 0.0
        %2380 = vmatpush2.xpose.msra.mxu0 0.0
        %2381 = vmatprep.subr.mxu0 0.0
        %2382 = vmatpush2.xpose.msra.mxu0 0.0
        %2383 = vmatprep.subr.mxu0 0.0
        %2384 = vmatpush2.xpose.msra.mxu0 0.0
        %2385 = vmatprep.subr.mxu0 0.0
        %2386 = vmatpush2.xpose.msra.mxu0 0.0
        %2387 = vmatprep.subr.mxu0 0.0
        %2388 = vmatpush2.xpose.msra.mxu0 0.0
        %2389 = vmatprep.subr.mxu0 0.0
        %2390 = vmatpush2.xpose.msra.mxu0 0.0
        %2391 = vmatprep.subr.mxu0 0.0
        %2392 = vmatpush2.xpose.msra.mxu0 0.0
        %2393 = vmatprep.subr.mxu0 0.0
        %2394 = vmatpush2.xpose.msra.mxu0 0.0
        %2395 = vmatprep.subr.mxu0 0.0
        %2396 = vmatpush2.xpose.msra.mxu0 0.0
        %2397 = vmatprep.subr.mxu0 0.0
        %2398 = vmatpush2.xpose.msra.mxu0 0.0
        %2399 = vmatprep.mubr.f32.mxu0 0.0
        %2400 = vmatmul.mubr.f32.gmra.mxu0 %v2329
        %v2401 = vpop.f32.mrf.mxu0
        %v2402 = vadd.f32 0.0, %v2401
        %v2403 = vpop.f32.mrf.mxu0
        %2404 = vdwg.mxu0
        %v2405 = vsel %vm1153, %v2142, 0
        %v2407 = vsel %vm1153, %v2154, 0
        %v2409 = vsel %vm1153, %v2156, 0
        %2411 = vmatprep.subr.mxu0 0.0
        %2412 = vmatpush1.xpose.msra.mxu0 0.0
        %2413 = vmatprep.subr.mxu0 0.0
        %2414 = vmatpush1.xpose.msra.mxu0 0.0
        %2415 = vmatprep.subr.mxu0 0.0
        %2416 = vmatpush1.xpose.msra.mxu0 0.0
        %2417 = vmatprep.subr.mxu0 0.0
        %2418 = vmatpush1.xpose.msra.mxu0 0.0
        %2419 = vmatprep.subr.mxu0 0.0
        %2420 = vmatpush1.xpose.msra.mxu0 0.0
        %2421 = vmatprep.subr.mxu0 0.0
        %2422 = vmatpush1.xpose.msra.mxu0 0.0
        %2423 = vmatprep.subr.mxu0 0.0
        %2424 = vmatpush1.xpose.msra.mxu0 0.0
        %2425 = vmatprep.subr.mxu0 0.0
        %2426 = vmatpush1.xpose.msra.mxu0 0.0
        %2427 = vmatprep.subr.mxu0 0.0
        %2428 = vmatpush1.xpose.msra.mxu0 0.0
        %2429 = vmatprep.subr.mxu0 0.0
        %2430 = vmatpush1.xpose.msra.mxu0 0.0
        %2431 = vmatprep.subr.mxu0 0.0
        %2432 = vmatpush1.xpose.msra.mxu0 0.0
        %2433 = vmatprep.subr.mxu0 0.0
        %2434 = vmatpush1.xpose.msra.mxu0 0.0
        %2435 = vmatprep.subr.mxu0 0.0
        %2436 = vmatpush1.xpose.msra.mxu0 0.0
        %2437 = vmatprep.subr.mxu0 0.0
        %2438 = vmatpush1.xpose.msra.mxu0 0.0
        %2439 = vmatprep.subr.mxu0 0.0
        %2440 = vmatpush1.xpose.msra.mxu0 %v2409
        %2441 = vmatprep.subr.mxu0 0.0
        %2442 = vmatpush1.xpose.msra.mxu0 %v2407
        %2443 = vmatprep.subr.mxu0 0.0
        %2444 = vmatpush2.xpose.msra.mxu0 0.0
        %2445 = vmatprep.subr.mxu0 0.0
        %2446 = vmatpush2.xpose.msra.mxu0 0.0
        %2447 = vmatprep.subr.mxu0 0.0
        %2448 = vmatpush2.xpose.msra.mxu0 0.0
        %2449 = vmatprep.subr.mxu0 0.0
        %2450 = vmatpush2.xpose.msra.mxu0 0.0
        %2451 = vmatprep.subr.mxu0 0.0
        %2452 = vmatpush2.xpose.msra.mxu0 0.0
        %2453 = vmatprep.subr.mxu0 0.0
        %2454 = vmatpush2.xpose.msra.mxu0 0.0
        %2455 = vmatprep.subr.mxu0 0.0
        %2456 = vmatpush2.xpose.msra.mxu0 0.0
        %2457 = vmatprep.subr.mxu0 0.0
        %2458 = vmatpush2.xpose.msra.mxu0 0.0
        %2459 = vmatprep.subr.mxu0 0.0
        %2460 = vmatpush2.xpose.msra.mxu0 0.0
        %2461 = vmatprep.subr.mxu0 0.0
        %2462 = vmatpush2.xpose.msra.mxu0 0.0
        %2463 = vmatprep.subr.mxu0 0.0
        %2464 = vmatpush2.xpose.msra.mxu0 0.0
        %2465 = vmatprep.subr.mxu0 0.0
        %2466 = vmatpush2.xpose.msra.mxu0 0.0
        %2467 = vmatprep.subr.mxu0 0.0
        %2468 = vmatpush2.xpose.msra.mxu0 0.0
        %2469 = vmatprep.subr.mxu0 0.0
        %2470 = vmatpush2.xpose.msra.mxu0 0.0
        %2471 = vmatprep.subr.mxu0 0.0
        %2472 = vmatpush2.xpose.msra.mxu0 0.0
        %2473 = vmatprep.subr.mxu0 0.0
        %2474 = vmatpush2.xpose.msra.mxu0 0.0
        %2475 = vmatprep.mubr.f32.mxu0 0.0
        %2476 = vmatmul.mubr.f32.gmra.mxu0 %v2405
        %v2477 = vpop.f32.mrf.mxu0
        %v2478 = vadd.f32 0.0, %v2477
        %v2479 = vpop.f32.mrf.mxu0
        %2480 = vdwg.mxu0
        %v2481 = vsel %vm899, 1, 0
        %vm2482 = vcmp.eq.s32.totalorder %v2481, 1
        %v2483 = vsel %vm2482, -1e+09, %v2250
        %v2484 = vsel %vm2482, -1e+09, %v2326
        %v2485 = vsel %vm2482, -1e+09, %v2402
        %v2486 = vsel %vm2482, -1e+09, %v2478
        %v2487 = vsel %vm1464, %v2483, -inf
        %2488 = vmax.xlane.f32.xlu0 %v2487
        %v2489 = vpop.xlane.xlu0 %2488
        %v2490 = vsel %vm1464, %v2484, -inf
        %2491 = vmax.xlane.f32.xlu0 %v2490
        %v2492 = vpop.xlane.xlu0 %2491
        %v2493 = vsel %vm1464, %v2485, -inf
        %2494 = vmax.xlane.f32.xlu0 %v2493
        %v2495 = vpop.xlane.xlu0 %2494
        %v2496 = vsel %vm1464, %v2486, -inf
        %2497 = vmax.xlane.f32.xlu0 %v2496
        %v2498 = vpop.xlane.xlu0 %2497
        %v2499 = vsub.f32 %v2483, %v2489
        %v2500 = vsub.f32 %v2484, %v2492
        %v2501 = vsub.f32 %v2485, %v2495
        %v2502 = vsub.f32 %v2486, %v2498
        %v2503 = vmul.f32 %v2499, 1.442695
        %v2504 = vpow.pop %v2503
        %v2505 = vmul.f32 %v2500, 1.442695
        %v2506 = vpow.pop %v2505
        %v2507 = vmul.f32 %v2501, 1.442695
        %v2508 = vpow.pop %v2507
        %v2509 = vmul.f32 %v2502, 1.442695
        %v2510 = vpow.pop %v2509
        %v2511 = vsel %vm1464, %v2504, 0.0
        %2512 = vadd.xlane.f32.xlu0 %v2511
        %v2513 = vpop.xlane.xlu0 %2512
        %v2514 = vsel %vm1464, %v2506, 0.0
        %2515 = vadd.xlane.f32.xlu0 %v2514
        %v2516 = vpop.xlane.xlu0 %2515
        %v2517 = vsel %vm1464, %v2508, 0.0
        %2518 = vadd.xlane.f32.xlu0 %v2517
        %v2519 = vpop.xlane.xlu0 %2518
        %v2520 = vsel %vm1464, %v2510, 0.0
        %2521 = vadd.xlane.f32.xlu0 %v2520
        %v2522 = vpop.xlane.xlu0 %2521
        %v2523 = vrcp.pop %v2513
        %v2524 = vrcp.pop %v2516
        %v2525 = vrcp.pop %v2519
        %v2526 = vrcp.pop %v2522
        %v2527 = vmul.f32 %v2504, %v2523
        %v2528 = vmul.f32 %v2506, %v2524
        %v2529 = vmul.f32 %v2508, %v2525
        %v2530 = vmul.f32 %v2510, %v2526
        %v2532 = vsel %vm1464, %v2527, 0
        %2534 = vmatprep.subr.mxu0 0.0
        %2535 = vmatpush1.msra.mxu0 0.0
        %2536 = vmatprep.subr.mxu0 0.0
        %2537 = vmatpush1.msra.mxu0 0.0
        %2538 = vmatprep.subr.mxu0 0.0
        %2539 = vmatpush1.msra.mxu0 0.0
        %2540 = vmatprep.subr.mxu0 0.0
        %2541 = vmatpush1.msra.mxu0 0.0
        %2542 = vmatprep.subr.mxu0 0.0
        %2543 = vmatpush1.msra.mxu0 0.0
        %2544 = vmatprep.subr.mxu0 0.0
        %2545 = vmatpush1.msra.mxu0 0.0
        %2546 = vmatprep.subr.mxu0 0.0
        %2547 = vmatpush1.msra.mxu0 0.0
        %2548 = vmatprep.subr.mxu0 0.0
        %2549 = vmatpush1.msra.mxu0 0.0
        %2550 = vmatprep.subr.mxu0 0.0
        %2551 = vmatpush1.msra.mxu0 0.0
        %2552 = vmatprep.subr.mxu0 0.0
        %2553 = vmatpush1.msra.mxu0 0.0
        %2554 = vmatprep.subr.mxu0 0.0
        %2555 = vmatpush1.msra.mxu0 0.0
        %2556 = vmatprep.subr.mxu0 0.0
        %2557 = vmatpush1.msra.mxu0 0.0
        %2558 = vmatprep.subr.mxu0 0.0
        %2559 = vmatpush1.msra.mxu0 0.0
        %2560 = vmatprep.subr.mxu0 0.0
        %2561 = vmatpush1.msra.mxu0 0.0
        %2562 = vmatprep.subr.mxu0 0.0
        %2563 = vmatpush1.msra.mxu0 %v2133
        %2564 = vmatprep.subr.mxu0 0.0
        %2565 = vmatpush1.msra.mxu0 %v2127
        %2566 = vmatprep.subr.mxu0 0.0
        %2567 = vmatpush2.msra.mxu0 0.0
        %2568 = vmatprep.subr.mxu0 0.0
        %2569 = vmatpush2.msra.mxu0 0.0
        %2570 = vmatprep.subr.mxu0 0.0
        %2571 = vmatpush2.msra.mxu0 0.0
        %2572 = vmatprep.subr.mxu0 0.0
        %2573 = vmatpush2.msra.mxu0 0.0
        %2574 = vmatprep.subr.mxu0 0.0
        %2575 = vmatpush2.msra.mxu0 0.0
        %2576 = vmatprep.subr.mxu0 0.0
        %2577 = vmatpush2.msra.mxu0 0.0
        %2578 = vmatprep.subr.mxu0 0.0
        %2579 = vmatpush2.msra.mxu0 0.0
        %2580 = vmatprep.subr.mxu0 0.0
        %2581 = vmatpush2.msra.mxu0 0.0
        %2582 = vmatprep.subr.mxu0 0.0
        %2583 = vmatpush2.msra.mxu0 0.0
        %2584 = vmatprep.subr.mxu0 0.0
        %2585 = vmatpush2.msra.mxu0 0.0
        %2586 = vmatprep.subr.mxu0 0.0
        %2587 = vmatpush2.msra.mxu0 0.0
        %2588 = vmatprep.subr.mxu0 0.0
        %2589 = vmatpush2.msra.mxu0 0.0
        %2590 = vmatprep.subr.mxu0 0.0
        %2591 = vmatpush2.msra.mxu0 0.0
        %2592 = vmatprep.subr.mxu0 0.0
        %2593 = vmatpush2.msra.mxu0 0.0
        %2594 = vmatprep.subr.mxu0 0.0
        %2595 = vmatpush2.msra.mxu0 0.0
        %2596 = vmatprep.subr.mxu0 0.0
        %2597 = vmatpush2.msra.mxu0 0.0
        %2598 = vmatprep.mubr.f32.mxu0 0.0
        %2599 = vmatmul.mubr.f32.gmra.mxu0 %v2532
        %v2600 = vpop.f32.mrf.mxu0
        %v2601 = vadd.f32 0.0, %v2600
        %v2602 = vpop.f32.mrf.mxu0
        %2603 = vdwg.mxu0
        %v2605 = vsel %vm1464, %v2528, 0
        %2607 = vmatprep.subr.mxu0 0.0
        %2608 = vmatpush1.msra.mxu0 0.0
        %2609 = vmatprep.subr.mxu0 0.0
        %2610 = vmatpush1.msra.mxu0 0.0
        %2611 = vmatprep.subr.mxu0 0.0
        %2612 = vmatpush1.msra.mxu0 0.0
        %2613 = vmatprep.subr.mxu0 0.0
        %2614 = vmatpush1.msra.mxu0 0.0
        %2615 = vmatprep.subr.mxu0 0.0
        %2616 = vmatpush1.msra.mxu0 0.0
        %2617 = vmatprep.subr.mxu0 0.0
        %2618 = vmatpush1.msra.mxu0 0.0
        %2619 = vmatprep.subr.mxu0 0.0
        %2620 = vmatpush1.msra.mxu0 0.0
        %2621 = vmatprep.subr.mxu0 0.0
        %2622 = vmatpush1.msra.mxu0 0.0
        %2623 = vmatprep.subr.mxu0 0.0
        %2624 = vmatpush1.msra.mxu0 0.0
        %2625 = vmatprep.subr.mxu0 0.0
        %2626 = vmatpush1.msra.mxu0 0.0
        %2627 = vmatprep.subr.mxu0 0.0
        %2628 = vmatpush1.msra.mxu0 0.0
        %2629 = vmatprep.subr.mxu0 0.0
        %2630 = vmatpush1.msra.mxu0 0.0
        %2631 = vmatprep.subr.mxu0 0.0
        %2632 = vmatpush1.msra.mxu0 0.0
        %2633 = vmatprep.subr.mxu0 0.0
        %2634 = vmatpush1.msra.mxu0 0.0
        %2635 = vmatprep.subr.mxu0 0.0
        %2636 = vmatpush1.msra.mxu0 %v2162
        %2637 = vmatprep.subr.mxu0 0.0
        %2638 = vmatpush1.msra.mxu0 %v2160
        %2639 = vmatprep.subr.mxu0 0.0
        %2640 = vmatpush2.msra.mxu0 0.0
        %2641 = vmatprep.subr.mxu0 0.0
        %2642 = vmatpush2.msra.mxu0 0.0
        %2643 = vmatprep.subr.mxu0 0.0
        %2644 = vmatpush2.msra.mxu0 0.0
        %2645 = vmatprep.subr.mxu0 0.0
        %2646 = vmatpush2.msra.mxu0 0.0
        %2647 = vmatprep.subr.mxu0 0.0
        %2648 = vmatpush2.msra.mxu0 0.0
        %2649 = vmatprep.subr.mxu0 0.0
        %2650 = vmatpush2.msra.mxu0 0.0
        %2651 = vmatprep.subr.mxu0 0.0
        %2652 = vmatpush2.msra.mxu0 0.0
        %2653 = vmatprep.subr.mxu0 0.0
        %2654 = vmatpush2.msra.mxu0 0.0
        %2655 = vmatprep.subr.mxu0 0.0
        %2656 = vmatpush2.msra.mxu0 0.0
        %2657 = vmatprep.subr.mxu0 0.0
        %2658 = vmatpush2.msra.mxu0 0.0
        %2659 = vmatprep.subr.mxu0 0.0
        %2660 = vmatpush2.msra.mxu0 0.0
        %2661 = vmatprep.subr.mxu0 0.0
        %2662 = vmatpush2.msra.mxu0 0.0
        %2663 = vmatprep.subr.mxu0 0.0
        %2664 = vmatpush2.msra.mxu0 0.0
        %2665 = vmatprep.subr.mxu0 0.0
        %2666 = vmatpush2.msra.mxu0 0.0
        %2667 = vmatprep.subr.mxu0 0.0
        %2668 = vmatpush2.msra.mxu0 0.0
        %2669 = vmatprep.subr.mxu0 0.0
        %2670 = vmatpush2.msra.mxu0 0.0
        %2671 = vmatprep.mubr.f32.mxu0 0.0
        %2672 = vmatmul.mubr.f32.gmra.mxu0 %v2605
        %v2673 = vpop.f32.mrf.mxu0
        %v2674 = vadd.f32 0.0, %v2673
        %v2675 = vpop.f32.mrf.mxu0
        %2676 = vdwg.mxu0
        %v2678 = vsel %vm1464, %v2529, 0
        %2680 = vmatprep.subr.mxu0 0.0
        %2681 = vmatpush1.msra.mxu0 0.0
        %2682 = vmatprep.subr.mxu0 0.0
        %2683 = vmatpush1.msra.mxu0 0.0
        %2684 = vmatprep.subr.mxu0 0.0
        %2685 = vmatpush1.msra.mxu0 0.0
        %2686 = vmatprep.subr.mxu0 0.0
        %2687 = vmatpush1.msra.mxu0 0.0
        %2688 = vmatprep.subr.mxu0 0.0
        %2689 = vmatpush1.msra.mxu0 0.0
        %2690 = vmatprep.subr.mxu0 0.0
        %2691 = vmatpush1.msra.mxu0 0.0
        %2692 = vmatprep.subr.mxu0 0.0
        %2693 = vmatpush1.msra.mxu0 0.0
        %2694 = vmatprep.subr.mxu0 0.0
        %2695 = vmatpush1.msra.mxu0 0.0
        %2696 = vmatprep.subr.mxu0 0.0
        %2697 = vmatpush1.msra.mxu0 0.0
        %2698 = vmatprep.subr.mxu0 0.0
        %2699 = vmatpush1.msra.mxu0 0.0
        %2700 = vmatprep.subr.mxu0 0.0
        %2701 = vmatpush1.msra.mxu0 0.0
        %2702 = vmatprep.subr.mxu0 0.0
        %2703 = vmatpush1.msra.mxu0 0.0
        %2704 = vmatprep.subr.mxu0 0.0
        %2705 = vmatpush1.msra.mxu0 0.0
        %2706 = vmatprep.subr.mxu0 0.0
        %2707 = vmatpush1.msra.mxu0 0.0
        %2708 = vmatprep.subr.mxu0 0.0
        %2709 = vmatpush1.msra.mxu0 %v2168
        %2710 = vmatprep.subr.mxu0 0.0
        %2711 = vmatpush1.msra.mxu0 %v2166
        %2712 = vmatprep.subr.mxu0 0.0
        %2713 = vmatpush2.msra.mxu0 0.0
        %2714 = vmatprep.subr.mxu0 0.0
        %2715 = vmatpush2.msra.mxu0 0.0
        %2716 = vmatprep.subr.mxu0 0.0
        %2717 = vmatpush2.msra.mxu0 0.0
        %2718 = vmatprep.subr.mxu0 0.0
        %2719 = vmatpush2.msra.mxu0 0.0
        %2720 = vmatprep.subr.mxu0 0.0
        %2721 = vmatpush2.msra.mxu0 0.0
        %2722 = vmatprep.subr.mxu0 0.0
        %2723 = vmatpush2.msra.mxu0 0.0
        %2724 = vmatprep.subr.mxu0 0.0
        %2725 = vmatpush2.msra.mxu0 0.0
        %2726 = vmatprep.subr.mxu0 0.0
        %2727 = vmatpush2.msra.mxu0 0.0
        %2728 = vmatprep.subr.mxu0 0.0
        %2729 = vmatpush2.msra.mxu0 0.0
        %2730 = vmatprep.subr.mxu0 0.0
        %2731 = vmatpush2.msra.mxu0 0.0
        %2732 = vmatprep.subr.mxu0 0.0
        %2733 = vmatpush2.msra.mxu0 0.0
        %2734 = vmatprep.subr.mxu0 0.0
        %2735 = vmatpush2.msra.mxu0 0.0
        %2736 = vmatprep.subr.mxu0 0.0
        %2737 = vmatpush2.msra.mxu0 0.0
        %2738 = vmatprep.subr.mxu0 0.0
        %2739 = vmatpush2.msra.mxu0 0.0
        %2740 = vmatprep.subr.mxu0 0.0
        %2741 = vmatpush2.msra.mxu0 0.0
        %2742 = vmatprep.subr.mxu0 0.0
        %2743 = vmatpush2.msra.mxu0 0.0
        %2744 = vmatprep.mubr.f32.mxu0 0.0
        %2745 = vmatmul.mubr.f32.gmra.mxu0 %v2678
        %v2746 = vpop.f32.mrf.mxu0
        %v2747 = vadd.f32 0.0, %v2746
        %v2748 = vpop.f32.mrf.mxu0
        %2749 = vdwg.mxu0
        %v2751 = vsel %vm1464, %v2530, 0
        %2753 = vmatprep.subr.mxu0 0.0
        %2754 = vmatpush1.msra.mxu0 0.0
        %2755 = vmatprep.subr.mxu0 0.0
        %2756 = vmatpush1.msra.mxu0 0.0
        %2757 = vmatprep.subr.mxu0 0.0
        %2758 = vmatpush1.msra.mxu0 0.0
        %2759 = vmatprep.subr.mxu0 0.0
        %2760 = vmatpush1.msra.mxu0 0.0
        %2761 = vmatprep.subr.mxu0 0.0
        %2762 = vmatpush1.msra.mxu0 0.0
        %2763 = vmatprep.subr.mxu0 0.0
        %2764 = vmatpush1.msra.mxu0 0.0
        %2765 = vmatprep.subr.mxu0 0.0
        %2766 = vmatpush1.msra.mxu0 0.0
        %2767 = vmatprep.subr.mxu0 0.0
        %2768 = vmatpush1.msra.mxu0 0.0
        %2769 = vmatprep.subr.mxu0 0.0
        %2770 = vmatpush1.msra.mxu0 0.0
        %2771 = vmatprep.subr.mxu0 0.0
        %2772 = vmatpush1.msra.mxu0 0.0
        %2773 = vmatprep.subr.mxu0 0.0
        %2774 = vmatpush1.msra.mxu0 0.0
        %2775 = vmatprep.subr.mxu0 0.0
        %2776 = vmatpush1.msra.mxu0 0.0
        %2777 = vmatprep.subr.mxu0 0.0
        %2778 = vmatpush1.msra.mxu0 0.0
        %2779 = vmatprep.subr.mxu0 0.0
        %2780 = vmatpush1.msra.mxu0 0.0
        %2781 = vmatprep.subr.mxu0 0.0
        %2782 = vmatpush1.msra.mxu0 %v2174
        %2783 = vmatprep.subr.mxu0 0.0
        %2784 = vmatpush1.msra.mxu0 %v2172
        %2785 = vmatprep.subr.mxu0 0.0
        %2786 = vmatpush2.msra.mxu0 0.0
        %2787 = vmatprep.subr.mxu0 0.0
        %2788 = vmatpush2.msra.mxu0 0.0
        %2789 = vmatprep.subr.mxu0 0.0
        %2790 = vmatpush2.msra.mxu0 0.0
        %2791 = vmatprep.subr.mxu0 0.0
        %2792 = vmatpush2.msra.mxu0 0.0
        %2793 = vmatprep.subr.mxu0 0.0
        %2794 = vmatpush2.msra.mxu0 0.0
        %2795 = vmatprep.subr.mxu0 0.0
        %2796 = vmatpush2.msra.mxu0 0.0
        %2797 = vmatprep.subr.mxu0 0.0
        %2798 = vmatpush2.msra.mxu0 0.0
        %2799 = vmatprep.subr.mxu0 0.0
        %2800 = vmatpush2.msra.mxu0 0.0
        %2801 = vmatprep.subr.mxu0 0.0
        %2802 = vmatpush2.msra.mxu0 0.0
        %2803 = vmatprep.subr.mxu0 0.0
        %2804 = vmatpush2.msra.mxu0 0.0
        %2805 = vmatprep.subr.mxu0 0.0
        %2806 = vmatpush2.msra.mxu0 0.0
        %2807 = vmatprep.subr.mxu0 0.0
        %2808 = vmatpush2.msra.mxu0 0.0
        %2809 = vmatprep.subr.mxu0 0.0
        %2810 = vmatpush2.msra.mxu0 0.0
        %2811 = vmatprep.subr.mxu0 0.0
        %2812 = vmatpush2.msra.mxu0 0.0
        %2813 = vmatprep.subr.mxu0 0.0
        %2814 = vmatpush2.msra.mxu0 0.0
        %2815 = vmatprep.subr.mxu0 0.0
        %2816 = vmatpush2.msra.mxu0 0.0
        %2817 = vmatprep.mubr.f32.mxu0 0.0
        %2818 = vmatmul.mubr.f32.gmra.mxu0 %v2751
        %v2819 = vpop.f32.mrf.mxu0
        %v2820 = vadd.f32 0.0, %v2819
        %v2821 = vpop.f32.mrf.mxu0
        %2822 = vdwg.mxu0
        %2824 = vrot.lane.b32.xlu0 %v2674, 32
        %v2825 = vpop.permute.xlu0 %2824
        %2828 = vrot.lane.b32.xlu0 %v2747, 64
        %v2829 = vpop.permute.xlu0 %2828
        %2832 = vrot.lane.b32.xlu0 %v2820, 96
        %v2833 = vpop.permute.xlu0 %2832
        %v2835 = vsel %vm1153, %v2601, %v2825
        %v2836 = vsel %vm1814, %v2835, %v2829
        %v2837 = vsel %vm1816, %v2836, %v2833
        %2838 = vmatprep.subr.mxu0 0.0
        %2839 = vmatpush1.msra.mxu0 %v1987
        %2840 = vmatprep.subr.mxu0 0.0
        %2841 = vmatpush1.msra.mxu0 %v1986
        %2842 = vmatprep.subr.mxu0 0.0
        %2843 = vmatpush1.msra.mxu0 %v1985
        %2844 = vmatprep.subr.mxu0 0.0
        %2845 = vmatpush1.msra.mxu0 %v1984
        %2846 = vmatprep.subr.mxu0 0.0
        %2847 = vmatpush1.msra.mxu0 %v1983
        %2848 = vmatprep.subr.mxu0 0.0
        %2849 = vmatpush1.msra.mxu0 %v1982
        %2850 = vmatprep.subr.mxu0 0.0
        %2851 = vmatpush1.msra.mxu0 %v1981
        %2852 = vmatprep.subr.mxu0 0.0
        %2853 = vmatpush1.msra.mxu0 %v1980
        %2854 = vmatprep.subr.mxu0 0.0
        %2855 = vmatpush1.msra.mxu0 %v1979
        %2856 = vmatprep.subr.mxu0 0.0
        %2857 = vmatpush1.msra.mxu0 %v1978
        %2858 = vmatprep.subr.mxu0 0.0
        %2859 = vmatpush1.msra.mxu0 %v1977
        %2860 = vmatprep.subr.mxu0 0.0
        %2861 = vmatpush1.msra.mxu0 %v1976
        %2862 = vmatprep.subr.mxu0 0.0
        %2863 = vmatpush1.msra.mxu0 %v1975
        %2864 = vmatprep.subr.mxu0 0.0
        %2865 = vmatpush1.msra.mxu0 %v1974
        %2866 = vmatprep.subr.mxu0 0.0
        %2867 = vmatpush1.msra.mxu0 %v1973
        %2868 = vmatprep.subr.mxu0 0.0
        %2869 = vmatpush1.msra.mxu0 %v1972
        %2870 = vmatprep.subr.mxu0 0.0
        %2871 = vmatpush2.msra.mxu0 0.0
        %2872 = vmatprep.subr.mxu0 0.0
        %2873 = vmatpush2.msra.mxu0 0.0
        %2874 = vmatprep.subr.mxu0 0.0
        %2875 = vmatpush2.msra.mxu0 0.0
        %2876 = vmatprep.subr.mxu0 0.0
        %2877 = vmatpush2.msra.mxu0 0.0
        %2878 = vmatprep.subr.mxu0 0.0
        %2879 = vmatpush2.msra.mxu0 0.0
        %2880 = vmatprep.subr.mxu0 0.0
        %2881 = vmatpush2.msra.mxu0 0.0
        %2882 = vmatprep.subr.mxu0 0.0
        %2883 = vmatpush2.msra.mxu0 0.0
        %2884 = vmatprep.subr.mxu0 0.0
        %2885 = vmatpush2.msra.mxu0 0.0
        %2886 = vmatprep.subr.mxu0 0.0
        %2887 = vmatpush2.msra.mxu0 0.0
        %2888 = vmatprep.subr.mxu0 0.0
        %2889 = vmatpush2.msra.mxu0 0.0
        %2890 = vmatprep.subr.mxu0 0.0
        %2891 = vmatpush2.msra.mxu0 0.0
        %2892 = vmatprep.subr.mxu0 0.0
        %2893 = vmatpush2.msra.mxu0 0.0
        %2894 = vmatprep.subr.mxu0 0.0
        %2895 = vmatpush2.msra.mxu0 0.0
        %2896 = vmatprep.subr.mxu0 0.0
        %2897 = vmatpush2.msra.mxu0 0.0
        %2898 = vmatprep.subr.mxu0 0.0
        %2899 = vmatpush2.msra.mxu0 0.0
        %2900 = vmatprep.subr.mxu0 0.0
        %2901 = vmatpush2.msra.mxu0 0.0
        %2902 = vmatprep.mubr.f32.mxu0 0.0
        %2903 = vmatmul.mubr.f32.gmra.mxu0 %v2837
        %v2904 = vpop.f32.mrf.mxu0
        %v2905 = vadd.f32 0.0, %v2904
        %v2906 = vpop.f32.mrf.mxu0
        %2907 = vdwg.mxu0
        %v2908 = vadd.f32 %v1923, %v2905
        %v2909 = vld [vmem:[%s16] sm:$0x1]
        %v2910 = vld [vmem:[%s17] sm:$0x1]
        %2911 = vadd.xlane.f32.xlu0 %v2908
        %v2912 = vpop.xlane.xlu0 %2911
        %v2913 = vmul.f32 %v2912, %v1893
        %v2914 = vsub.f32 %v2908, %v2913
        %v2915 = vmul.f32 %v2914, %v2914
        %2916 = vadd.xlane.f32.xlu0 %v2915
        %v2917 = vpop.xlane.xlu0 %2916
        %v2918 = vmul.f32 %v2917, 0.007874016
        %v2919 = vrsqrt.pop %v2918
        %v2920 = vmul.f32 %v2918, %v2919
        %vm2921 = vcmp.eq.f32.partialorder %v2918, inf
        %v2922 = vsel %vm2921, %v2918, %v2920
        %vm2923 = vcmp.eq.f32.partialorder %v2918, 0.0
        %v2924 = vand.u32 %v2918, 2147483648
        %v2925 = vsel %vm2923, %v2924, %v2922
        %v2926 = vadd.f32 %v2925, 1e-06
        %v2927 = vrcp.pop %v2926
        %v2928 = vmul.f32 %v2914, %v2927
        %v2930 = vlaneseq
        %v2931 = vshrl.u32 %v2930, 7
        %v2932 = vsub.s32 0, %v2931
        %v2933 = vrot.slane %v2909, %v2932
        %v2935 = vmul.f32 %v2933, %v2928
        %v2937 = vlaneseq
        %v2938 = vshrl.u32 %v2937, 7
        %v2939 = vsub.s32 0, %v2938
        %v2940 = vrot.slane %v2910, %v2939
        %v2942 = vadd.f32 %v2935, %v2940
        %v2943 = vld [vmem:[#allocation19] sm:$0xff]
        %v2944 = vld [vmem:[#allocation19 + $0x8] sm:$0xff]
        %v2945 = vld [vmem:[#allocation19 + $0x10] sm:$0xff]
        %v2946 = vld [vmem:[#allocation19 + $0x18] sm:$0xff]
        %v2947 = vld [vmem:[#allocation19 + $0x20] sm:$0xff]
        %v2948 = vld [vmem:[#allocation19 + $0x28] sm:$0xff]
        %v2949 = vld [vmem:[#allocation19 + $0x30] sm:$0xff]
        %v2950 = vld [vmem:[#allocation19 + $0x38] sm:$0xff]
        %v2951 = vld [vmem:[#allocation19 + $0x40] sm:$0xff]
        %v2952 = vld [vmem:[#allocation19 + $0x48] sm:$0xff]
        %v2953 = vld [vmem:[#allocation19 + $0x50] sm:$0xff]
        %v2954 = vld [vmem:[#allocation19 + $0x58] sm:$0xff]
        %v2955 = vld [vmem:[#allocation19 + $0x60] sm:$0xff]
        %v2956 = vld [vmem:[#allocation19 + $0x68] sm:$0xff]
        %v2957 = vld [vmem:[#allocation19 + $0x70] sm:$0xff]
        %v2958 = vld [vmem:[#allocation19 + $0x78] sm:$0xff]
        %v2959 = vld [vmem:[#allocation19 + $0x80] sm:$0xff]
        %v2960 = vld [vmem:[#allocation19 + $0x88] sm:$0xff]
        %v2961 = vld [vmem:[#allocation19 + $0x90] sm:$0xff]
        %v2962 = vld [vmem:[#allocation19 + $0x98] sm:$0xff]
        %v2963 = vld [vmem:[#allocation19 + $0xa0] sm:$0xff]
        %v2964 = vld [vmem:[#allocation19 + $0xa8] sm:$0xff]
        %v2965 = vld [vmem:[#allocation19 + $0xb0] sm:$0xff]
        %v2966 = vld [vmem:[#allocation19 + $0xb8] sm:$0xff]
        %v2967 = vld [vmem:[#allocation19 + $0xc0] sm:$0xff]
        %v2968 = vld [vmem:[#allocation19 + $0xc8] sm:$0xff]
        %v2969 = vld [vmem:[#allocation19 + $0xd0] sm:$0xff]
        %v2970 = vld [vmem:[#allocation19 + $0xd8] sm:$0xff]
        %v2971 = vld [vmem:[#allocation19 + $0xe0] sm:$0xff]
        %v2972 = vld [vmem:[#allocation19 + $0xe8] sm:$0xff]
        %v2973 = vld [vmem:[#allocation19 + $0xf0] sm:$0xff]
        %v2974 = vld [vmem:[#allocation19 + $0xf8] sm:$0xff]
        %v2975 = vld [vmem:[%s11] sm:$0x3]
        %v2977 = vlaneseq
        %v2978 = vshrl.u32 %v2977, 7
        %v2979 = vsub.s32 0, %v2978
        %v2980 = vrot.slane %v2975, %v2979
        %v2981 = vlaneseq
        %v2982 = vshrl.u32 %v2981, 7
        %v2983 = vsub.s32 1, %v2982
        %v2984 = vrot.slane %v2975, %v2983
        %2987 = vmatprep.subr.mxu0 %v2974
        %2988 = vmatpush1.msra.mxu0 %v2973
        %2989 = vmatprep.subr.mxu0 %v2972
        %2990 = vmatpush1.msra.mxu0 %v2971
        %2991 = vmatprep.subr.mxu0 %v2970
        %2992 = vmatpush1.msra.mxu0 %v2969
        %2993 = vmatprep.subr.mxu0 %v2968
        %2994 = vmatpush1.msra.mxu0 %v2967
        %2995 = vmatprep.subr.mxu0 %v2966
        %2996 = vmatpush1.msra.mxu0 %v2965
        %2997 = vmatprep.subr.mxu0 %v2964
        %2998 = vmatpush1.msra.mxu0 %v2963
        %2999 = vmatprep.subr.mxu0 %v2962
        %3000 = vmatpush1.msra.mxu0 %v2961
        %3001 = vmatprep.subr.mxu0 %v2960
        %3002 = vmatpush1.msra.mxu0 %v2959
        %3003 = vmatprep.subr.mxu0 %v2958
        %3004 = vmatpush1.msra.mxu0 %v2957
        %3005 = vmatprep.subr.mxu0 %v2956
        %3006 = vmatpush1.msra.mxu0 %v2955
        %3007 = vmatprep.subr.mxu0 %v2954
        %3008 = vmatpush1.msra.mxu0 %v2953
        %3009 = vmatprep.subr.mxu0 %v2952
        %3010 = vmatpush1.msra.mxu0 %v2951
        %3011 = vmatprep.subr.mxu0 %v2950
        %3012 = vmatpush1.msra.mxu0 %v2949
        %3013 = vmatprep.subr.mxu0 %v2948
        %3014 = vmatpush1.msra.mxu0 %v2947
        %3015 = vmatprep.subr.mxu0 %v2946
        %3016 = vmatpush1.msra.mxu0 %v2945
        %3017 = vmatprep.subr.mxu0 %v2944
        %3018 = vmatpush1.msra.mxu0 %v2943
        %3019 = vmatprep.subr.mxu0 0.0
        %3020 = vmatpush2.msra.mxu0 0.0
        %3021 = vmatprep.subr.mxu0 0.0
        %3022 = vmatpush2.msra.mxu0 0.0
        %3023 = vmatprep.subr.mxu0 0.0
        %3024 = vmatpush2.msra.mxu0 0.0
        %3025 = vmatprep.subr.mxu0 0.0
        %3026 = vmatpush2.msra.mxu0 0.0
        %3027 = vmatprep.subr.mxu0 0.0
        %3028 = vmatpush2.msra.mxu0 0.0
        %3029 = vmatprep.subr.mxu0 0.0
        %3030 = vmatpush2.msra.mxu0 0.0
        %3031 = vmatprep.subr.mxu0 0.0
        %3032 = vmatpush2.msra.mxu0 0.0
        %3033 = vmatprep.subr.mxu0 0.0
        %3034 = vmatpush2.msra.mxu0 0.0
        %3035 = vmatprep.subr.mxu0 0.0
        %3036 = vmatpush2.msra.mxu0 0.0
        %3037 = vmatprep.subr.mxu0 0.0
        %3038 = vmatpush2.msra.mxu0 0.0
        %3039 = vmatprep.subr.mxu0 0.0
        %3040 = vmatpush2.msra.mxu0 0.0
        %3041 = vmatprep.subr.mxu0 0.0
        %3042 = vmatpush2.msra.mxu0 0.0
        %3043 = vmatprep.subr.mxu0 0.0
        %3044 = vmatpush2.msra.mxu0 0.0
        %3045 = vmatprep.subr.mxu0 0.0
        %3046 = vmatpush2.msra.mxu0 0.0
        %3047 = vmatprep.subr.mxu0 0.0
        %3048 = vmatpush2.msra.mxu0 0.0
        %3049 = vmatprep.subr.mxu0 0.0
        %3050 = vmatpush2.msra.mxu0 0.0
        %3051 = vmatprep.mubr.f32.mxu0 0.0
        %3052 = vmatmul.mubr.f32.gmra.mxu0 %v2942
        %v3053 = vpop.f32.mrf.mxu0
        %v3054 = vadd.f32 %v2980, %v3053
        %v3055 = vpop.f32.mrf.mxu0
        %v3056 = vadd.f32 %v2984, %v3055
        %3057 = vdwg.mxu0
        %v3058 = vmax.f32 %v3054, 0.0
        %v3059 = vmax.f32 %v3056, 0.0
        %v3060 = vld [vmem:[#allocation20] sm:$0xff]
        %v3061 = vld [vmem:[#allocation20 + $0x8] sm:$0xff]
        %v3062 = vld [vmem:[#allocation20 + $0x10] sm:$0xff]
        %v3063 = vld [vmem:[#allocation20 + $0x18] sm:$0xff]
        %v3064 = vld [vmem:[#allocation20 + $0x20] sm:$0xff]
        %v3065 = vld [vmem:[#allocation20 + $0x28] sm:$0xff]
        %v3066 = vld [vmem:[#allocation20 + $0x30] sm:$0xff]
        %v3067 = vld [vmem:[#allocation20 + $0x38] sm:$0xff]
        %v3068 = vld [vmem:[#allocation20 + $0x40] sm:$0xff]
        %v3069 = vld [vmem:[#allocation20 + $0x48] sm:$0xff]
        %v3070 = vld [vmem:[#allocation20 + $0x50] sm:$0xff]
        %v3071 = vld [vmem:[#allocation20 + $0x58] sm:$0xff]
        %v3072 = vld [vmem:[#allocation20 + $0x60] sm:$0xff]
        %v3073 = vld [vmem:[#allocation20 + $0x68] sm:$0xff]
        %v3074 = vld [vmem:[#allocation20 + $0x70] sm:$0xff]
        %v3075 = vld [vmem:[#allocation20 + $0x78] sm:$0xff]
        %v3076 = vld [vmem:[#allocation20 + $0x80] sm:$0xff]
        %v3077 = vld [vmem:[#allocation20 + $0x88] sm:$0xff]
        %v3078 = vld [vmem:[#allocation20 + $0x90] sm:$0xff]
        %v3079 = vld [vmem:[#allocation20 + $0x98] sm:$0xff]
        %v3080 = vld [vmem:[#allocation20 + $0xa0] sm:$0xff]
        %v3081 = vld [vmem:[#allocation20 + $0xa8] sm:$0xff]
        %v3082 = vld [vmem:[#allocation20 + $0xb0] sm:$0xff]
        %v3083 = vld [vmem:[#allocation20 + $0xb8] sm:$0xff]
        %v3084 = vld [vmem:[#allocation20 + $0xc0] sm:$0xff]
        %v3085 = vld [vmem:[#allocation20 + $0xc8] sm:$0xff]
        %v3086 = vld [vmem:[#allocation20 + $0xd0] sm:$0xff]
        %v3087 = vld [vmem:[#allocation20 + $0xd8] sm:$0xff]
        %v3088 = vld [vmem:[#allocation20 + $0xe0] sm:$0xff]
        %v3089 = vld [vmem:[#allocation20 + $0xe8] sm:$0xff]
        %v3090 = vld [vmem:[#allocation20 + $0xf0] sm:$0xff]
        %v3091 = vld [vmem:[#allocation20 + $0xf8] sm:$0xff]
        %v3092 = vld [vmem:[%s13] sm:$0x1]
        %v3094 = vlaneseq
        %v3095 = vshrl.u32 %v3094, 7
        %v3096 = vsub.s32 0, %v3095
        %v3097 = vrot.slane %v3092, %v3096
        %3099 = vmatprep.subr.mxu0 0.0
        %3100 = vmatpush1.msra.mxu0 %v3075
        %3101 = vmatprep.subr.mxu0 0.0
        %3102 = vmatpush1.msra.mxu0 %v3074
        %3103 = vmatprep.subr.mxu0 0.0
        %3104 = vmatpush1.msra.mxu0 %v3073
        %3105 = vmatprep.subr.mxu0 0.0
        %3106 = vmatpush1.msra.mxu0 %v3072
        %3107 = vmatprep.subr.mxu0 0.0
        %3108 = vmatpush1.msra.mxu0 %v3071
        %3109 = vmatprep.subr.mxu0 0.0
        %3110 = vmatpush1.msra.mxu0 %v3070
        %3111 = vmatprep.subr.mxu0 0.0
        %3112 = vmatpush1.msra.mxu0 %v3069
        %3113 = vmatprep.subr.mxu0 0.0
        %3114 = vmatpush1.msra.mxu0 %v3068
        %3115 = vmatprep.subr.mxu0 0.0
        %3116 = vmatpush1.msra.mxu0 %v3067
        %3117 = vmatprep.subr.mxu0 0.0
        %3118 = vmatpush1.msra.mxu0 %v3066
        %3119 = vmatprep.subr.mxu0 0.0
        %3120 = vmatpush1.msra.mxu0 %v3065
        %3121 = vmatprep.subr.mxu0 0.0
        %3122 = vmatpush1.msra.mxu0 %v3064
        %3123 = vmatprep.subr.mxu0 0.0
        %3124 = vmatpush1.msra.mxu0 %v3063
        %3125 = vmatprep.subr.mxu0 0.0
        %3126 = vmatpush1.msra.mxu0 %v3062
        %3127 = vmatprep.subr.mxu0 0.0
        %3128 = vmatpush1.msra.mxu0 %v3061
        %3129 = vmatprep.subr.mxu0 0.0
        %3130 = vmatpush1.msra.mxu0 %v3060
        %3131 = vmatprep.subr.mxu0 0.0
        %3132 = vmatpush2.msra.mxu0 %v3091
        %3133 = vmatprep.subr.mxu0 0.0
        %3134 = vmatpush2.msra.mxu0 %v3090
        %3135 = vmatprep.subr.mxu0 0.0
        %3136 = vmatpush2.msra.mxu0 %v3089
        %3137 = vmatprep.subr.mxu0 0.0
        %3138 = vmatpush2.msra.mxu0 %v3088
        %3139 = vmatprep.subr.mxu0 0.0
        %3140 = vmatpush2.msra.mxu0 %v3087
        %3141 = vmatprep.subr.mxu0 0.0
        %3142 = vmatpush2.msra.mxu0 %v3086
        %3143 = vmatprep.subr.mxu0 0.0
        %3144 = vmatpush2.msra.mxu0 %v3085
        %3145 = vmatprep.subr.mxu0 0.0
        %3146 = vmatpush2.msra.mxu0 %v3084
        %3147 = vmatprep.subr.mxu0 0.0
        %3148 = vmatpush2.msra.mxu0 %v3083
        %3149 = vmatprep.subr.mxu0 0.0
        %3150 = vmatpush2.msra.mxu0 %v3082
        %3151 = vmatprep.subr.mxu0 0.0
        %3152 = vmatpush2.msra.mxu0 %v3081
        %3153 = vmatprep.subr.mxu0 0.0
        %3154 = vmatpush2.msra.mxu0 %v3080
        %3155 = vmatprep.subr.mxu0 0.0
        %3156 = vmatpush2.msra.mxu0 %v3079
        %3157 = vmatprep.subr.mxu0 0.0
        %3158 = vmatpush2.msra.mxu0 %v3078
        %3159 = vmatprep.subr.mxu0 0.0
        %3160 = vmatpush2.msra.mxu0 %v3077
        %3161 = vmatprep.subr.mxu0 0.0
        %3162 = vmatpush2.msra.mxu0 %v3076
        %3163 = vmatprep.mubr.f32.mxu0 %v3059
        %3164 = vmatmul.mubr.f32.gmra.mxu0 %v3058
        %v3165 = vpop.f32.mrf.mxu0
        %v3166 = vadd.f32 %v3097, %v3165
        %v3167 = vpop.f32.mrf.mxu0
        %3168 = vdwg.mxu0
        %v3169 = vadd.f32 %v2942, %v3166
        %v3170 = vld [vmem:[%s18] sm:$0x1]
        %v3171 = vld [vmem:[%s19] sm:$0x1]
        %3172 = vadd.xlane.f32.xlu0 %v3169
        %v3173 = vpop.xlane.xlu0 %3172
        %v3174 = vmul.f32 %v3173, %v1893
        %v3175 = vsub.f32 %v3169, %v3174
        %v3176 = vmul.f32 %v3175, %v3175
        %3177 = vadd.xlane.f32.xlu0 %v3176
        %v3178 = vpop.xlane.xlu0 %3177
        %v3179 = vmul.f32 %v3178, 0.007874016
        %v3180 = vrsqrt.pop %v3179
        %v3181 = vmul.f32 %v3179, %v3180
        %vm3182 = vcmp.eq.f32.partialorder %v3179, inf
        %v3183 = vsel %vm3182, %v3179, %v3181
        %vm3184 = vcmp.eq.f32.partialorder %v3179, 0.0
        %v3185 = vand.u32 %v3179, 2147483648
        %v3186 = vsel %vm3184, %v3185, %v3183
        %v3187 = vadd.f32 %v3186, 1e-06
        %v3188 = vrcp.pop %v3187
        %v3189 = vmul.f32 %v3175, %v3188
        %v3191 = vlaneseq
        %v3192 = vshrl.u32 %v3191, 7
        %v3193 = vsub.s32 0, %v3192
        %v3194 = vrot.slane %v3170, %v3193
        %v3196 = vmul.f32 %v3194, %v3189
        %v3198 = vlaneseq
        %v3199 = vshrl.u32 %v3198, 7
        %v3200 = vsub.s32 0, %v3199
        %v3201 = vrot.slane %v3171, %v3200
        %v3203 = vadd.f32 %v3196, %v3201
        %3204 = vst [vmem:[%s888] sm:$0xff] %v3203
        %s3205 = sand.u32 %s509, 1
        %s3206 = scalar_lea.sflag [#allocation4], %s3205
        %s3207 = sand.u32 %s509, 1
        %s3208 = smul.addr %s3207, 8
        %s3209 = scalar_lea.vmem [#allocation22], %s3208
        // Predicated region
        $region149: #{tpu_custom_call.1} parent=99 // pred_check
          %p3210 = pneg %p519
        $region150: #{tpu_custom_call.1} parent=99 // pred_check_branch
          %3212 = sbr.rel (%p3210) target = $region152
        $region151: #{tpu_custom_call.1} parent=99 // pred_region
          %s3214 = ssub.s32 128, 128
          %3215 = vsyncadd %s3206, %s3214
          %s3216 = smul.addr %s51, 2
          %s3217 = sadd.s32 %s52, %s3216
          %s3218 = smul.addr %s3217, 128
          %s3219 = scalar_lea.hbm %s20, %s3218
          %s3221 = sshll.u32 %s3209, 4
          %s3222 = int_to_ptr.vmem [resolvable:$true] %s3221
          %3224 = dma.vmem_to_hbm [thread:$0]  %s3222, 128, %s3219, %s3206
        $region152: #{tpu_custom_call.1} parent=99 // pred_fallthru
          _
      $region100: #{tpu_custom_call.1} parent=5 // pred_fallthru
        _
      %p3225 = scmp.le.s32.totalorder 2, %s42
      // Predicated region
      $region153: #{tpu_custom_call.1} parent=5 // pred_check
        %p3226 = pneg %p3225
      $region154: #{tpu_custom_call.1} parent=5 // pred_check_branch
        %3228 = sbr.rel (%p3226) target = $region156
      $region155: #{tpu_custom_call.1} parent=5 // pred_region
        %s3229 = ssub.s32 %s42, 2
        // Predicated region
        $region157: #{tpu_custom_call.1} parent=155 // pred_check
          %p3230 = pneg %p525
        $region158: #{tpu_custom_call.1} parent=155 // pred_check_branch
          %3232 = sbr.rel (%p3230) target = $region160
        $region159: #{tpu_custom_call.1} parent=155 // pred_region
          %s3233 = sand.u32 %s510, 1
          %s3234 = scalar_lea.sflag [#allocation4], %s3233
          %s3235 = sand.u32 %s510, 1
          %s3236 = smul.addr %s3235, 8
          %s3237 = scalar_lea.vmem [#allocation22], %s3236
          %3238 = dma.done %s3234, 128
        $region160: #{tpu_custom_call.1} parent=155 // pred_fallthru
          _
      $region156: #{tpu_custom_call.1} parent=5 // pred_fallthru
        _
    $region6: #{tpu_custom_call.1} parent=1 // loop_footer
      %s46 = sadd.s32 1, %s42
    $region7: #{tpu_custom_call.1} parent=1 // loop_footer_branch
      %41 = sbr.rel target = $region3
    $region8: #{tpu_custom_call.1} parent=1 // loop_exit
      _
    %3239 = vsyncpa [#allocation3], 1
    %s3240 = scalar_lea.sflag [#allocation3], 1
    %3241 = vsyncpa %s3240, 1
    %3242 = vsyncpa [#allocation6], 1
    %s3243 = scalar_lea.sflag [#allocation6], 1
    %3244 = vsyncpa %s3243, 1
    %3245 = vsyncpa [#allocation9], 1
    %s3246 = scalar_lea.sflag [#allocation9], 1
    %3247 = vsyncpa %s3246, 1
    %3248 = vsyncpa [#allocation12], 1
    %3249 = vsyncpa [#allocation15], 1
    %3250 = vsyncpa [#allocation18], 1
    %3251 = vsyncpa [#allocation21], 1
    %3252 = vsyncpa [#allocation4], 1
    %s3253 = scalar_lea.sflag [#allocation4], 1
    %3254 = vsyncpa %s3253, 1

</llo_original>
